<compile_context>
chip_gen: v5e
topology: v5e:2x2
jax: 0.10.0
libtpu: 0.0.40
codegen_flags: <defaults>
</compile_context>

<pallas_src>
import functools

import jax
import jax.numpy as jnp
from jax.experimental import pallas as pl
from jax.experimental.pallas import tpu as pltpu


# ----------------------------------------------------------------------------
# Pallas kernel: both Q heads of the TD3 critic on one batch tile.
# ----------------------------------------------------------------------------
def _critic_td3_kernel(
    obs_ref, act_ref,
    w1_ref, b1_ref,                                           # fused layer 1 (both heads)
    w12_ref, b12_ref, w13_ref, b13_ref, w14_ref, b14_ref,     # head 1, layers 2-4
    w22_ref, b22_ref, w23_ref, b23_ref, w24_ref, b24_ref,     # head 2, layers 2-4
    q_ref,
):
    mx_dtype = w1_ref.dtype           # bf16 (default) or f32 MXU operand dtype

    # In-kernel lane concat (XLU) -> one layer-1 MXU pass for both heads.
    xu = jnp.concatenate(
        [obs_ref[...].astype(mx_dtype), act_ref[...].astype(mx_dtype)], axis=-1)

    h1 = jnp.dot(xu, w1_ref[...], preferred_element_type=jnp.float32)
    h1 = jnp.maximum(h1 + b1_ref[...].astype(jnp.float32), 0.0)

    half = w12_ref.shape[0]           # 512 (n_agents<=50) or 1024; lane-aligned split

    def tail(h, w2_ref, b2_ref, w3_ref, b3_ref, w4_ref, b4_ref):
        h = jnp.dot(h.astype(mx_dtype), w2_ref[...],
                    preferred_element_type=jnp.float32)
        h = jnp.maximum(h + b2_ref[...].astype(jnp.float32), 0.0)
        h = jnp.dot(h.astype(mx_dtype), w3_ref[...],
                    preferred_element_type=jnp.float32)
        h = jnp.maximum(h + b3_ref[...].astype(jnp.float32), 0.0)
        # Final [128, 1] layer on VPU + XLU (MXU would run nearly empty at N=1).
        w4 = w4_ref[...].astype(jnp.float32)          # [1, 128], pre-transposed
        return jnp.sum(h * w4, axis=-1, keepdims=True) + b4_ref[...].astype(jnp.float32)

    q1 = tail(h1[:, :half], w12_ref, b12_ref, w13_ref, b13_ref, w14_ref, b14_ref)
    q2 = tail(h1[:, half:], w22_ref, b22_ref, w23_ref, b23_ref, w24_ref, b24_ref)

    # Single packed store [TB, 2] (one masked vst instead of two 1-lane stores).
    q_ref[...] = jnp.concatenate([q1, q2], axis=-1).astype(q_ref.dtype)


# ----------------------------------------------------------------------------
# Parameter construction (deterministic, mirrors nn.Linear default init).
# ----------------------------------------------------------------------------
def _linear_params(key, fan_in, fan_out, dtype):
    kw, kb = jax.random.split(key)
    bound = 1.0 / jnp.sqrt(jnp.asarray(fan_in, jnp.float32))
    # stored as [fan_in, fan_out] so forward is x @ W + b
    w = jax.random.uniform(kw, (fan_in, fan_out), dtype, -bound, bound)
    b = jax.random.uniform(kb, (1, fan_out), dtype, -bound, bound)
    return w, b


def make_critic_params(key, n_agents, obs_dim, act_dim, unique_obs_dim=0,
                       dtype=jnp.float32):
    obs_dim_total = obs_dim + unique_obs_dim * (n_agents - 1)
    act_dim_total = act_dim * n_agents
    d_in = obs_dim_total + act_dim_total
    dims = [d_in, 512, 256, 128, 1] if n_agents <= 50 else [d_in, 1024, 512, 128, 1]

    keys = jax.random.split(key, 8)
    params = []
    for head in range(2):
        for layer in range(4):
            params.extend(_linear_params(keys[head * 4 + layer],
                                         dims[layer], dims[layer + 1], dtype))
    return params, obs_dim_total, act_dim_total


def prepare_params(params, compute_dtype=jnp.bfloat16):
    """One-time restructure done outside the hot path:
      * fuse the two heads' layer-1 weights into one [D_in, 2*H1] matrix
        (matched by the in-kernel obs||act lane concat),
      * pre-transpose the [128, 1] output-layer weights to [1, 128],
      * cast MXU weights to `compute_dtype` (bf16 recommended on ALL
        generations: v5e's MXU is natively bf16 as well).
    Biases and the VPU-side output-layer weights stay f32 (f32 accumulation,
    v5e-safe VPU path)."""
    (w11, b11, w12, b12, w13, b13, w14, b14,
     w21, b21, w22, b22, w23, b23, w24, b24) = params
    w1 = jnp.concatenate([w11, w21], axis=1)          # [D_in, 2*H1]
    b1 = jnp.concatenate([b11, b21], axis=1)          # [1, 2*H1]
    mx = lambda x: x.astype(compute_dtype)
    f32 = lambda x: x.astype(jnp.float32)
    return (
        mx(w1), f32(b1),
        mx(w12), f32(b12), mx(w13), f32(b13), f32(w14.T), f32(b14),
        mx(w22), f32(b22), mx(w23), f32(b23), f32(w24.T), f32(b24),
    )


# ----------------------------------------------------------------------------
# Wrapper: generation-aware batch tiling + pallas_call.
# ----------------------------------------------------------------------------
def _round_up(x, m):
    return (x + m - 1) // m * m


def _big_vmem_chip():
    """True on 128 MiB-VMEM chips (v3/v4/v5e/v6e); False on v7x (64 MiB, 2 TCs)."""
    try:
        kind = jax.devices()[0].device_kind.lower()
    except Exception:
        return False                 # unknown -> conservative settings
    return not ("v7" in kind or "7x" in kind)


def _resident_spec(shape):
    """Whole-array, grid-invariant block; single-buffered (index never changes,
    so a second buffer is wasted VMEM)."""
    try:
        return pl.BlockSpec(shape, lambda i: (0, 0), pipeline_mode=pl.Buffered(1))
    except TypeError:                # older BlockSpec without pipeline_mode
        return pl.BlockSpec(shape, lambda i: (0, 0))


@functools.partial(jax.jit, static_argnames=("block_b",))
def critic_td3_forward(obs, actions, prepared, block_b=None):
    """Twin-Q forward.  Returns (q1, q2), each [B, 1]."""
    B, Do = obs.shape
    Da = actions.shape[1]
    out_dtype = obs.dtype

    w12 = prepared[2]
    w13 = prepared[4]
    H1, H2 = w12.shape               # 512/256 (small net) or 1024/512 (large net)
    H3 = w13.shape[1]
    d_in = Do + Da

    big_vmem = _big_vmem_chip()
    vmem_limit = (64 if big_vmem else 44) * 1024 * 1024

    # Batch tile: multiple of 128, generation/config-aware cap, grows with B.
    if block_b is None:
        cap = (2048 if H1 <= 512 else 1024) if big_vmem else (1024 if H1 <= 512 else 512)
    else:
        cap = max(128, _round_up(block_b, 128))
    TB = min(cap, max(128, _round_up(B, 128)))
    # v7x has 2 TensorCores: keep >= 2 grid steps so the "parallel" batch axis
    # can shard instead of leaving one core idle.
    if (not big_vmem) and B > 128:
        TB = min(TB, _round_up(-(-B // 2), 128))

    B_pad = _round_up(B, TB)
    if B_pad != B:
        obs = jnp.pad(obs, ((0, B_pad - B), (0, 0)))
        actions = jnp.pad(actions, ((0, B_pad - B), (0, 0)))

    in_specs = (
        [pl.BlockSpec((TB, Do), lambda i: (i, 0)),
         pl.BlockSpec((TB, Da), lambda i: (i, 0))]
        + [_resident_spec(p.shape) for p in prepared]
    )

    flops = 2 * B_pad * (d_in * 2 * H1 + 2 * (H1 * H2 + H2 * H3 + H3))
    bytes_accessed = int(
        obs.size * obs.dtype.itemsize
        + actions.size * actions.dtype.itemsize
        + sum(p.size * p.dtype.itemsize for p in prepared)   # DMA'd once (advisory)
        + B_pad * 2 * jnp.dtype(out_dtype).itemsize)

    q = pl.pallas_call(
        _critic_td3_kernel,
        out_shape=jax.ShapeDtypeStruct((B_pad, 2), out_dtype),
        grid=(B_pad // TB,),
        in_specs=in_specs,
        out_specs=pl.BlockSpec((TB, 2), lambda i: (i, 0)),
        compiler_params=pltpu.CompilerParams(
            dimension_semantics=("parallel",),          # megacore sharding on v7x
            vmem_limit_bytes=vmem_limit),
        cost_estimate=pl.CostEstimate(
            flops=flops, transcendentals=0, bytes_accessed=bytes_accessed),
    )(obs, actions, *prepared)

    return q[:B, 0:1], q[:B, 1:2]


# Pure-JAX reference for correctness checking (mirrors the PyTorch module).
def _reference_forward(obs, actions, params):
    xu = jnp.concatenate([obs, actions], axis=1).astype(jnp.float32)

    def head(p):
        h = xu
        for layer in range(4):
            w, b = p[2 * layer], p[2 * layer + 1]
            h = h @ w.astype(jnp.float32) + b.astype(jnp.float32)
            if layer < 3:
                h = jnp.maximum(h, 0.0)
        return h

    return head(params[:8]), head(params[8:])


if __name__ == "__main__":
    # Small, deterministic example consistent with the module.
    n_agents = 2
    obs_dim = 16
    act_dim = 4
    unique_obs_dim = 2
    batch = 2

    key = jax.random.PRNGKey(0)
    kp, ko, ka = jax.random.split(key, 3)

    raw_params, obs_dim_total, act_dim_total = make_critic_params(
        kp, n_agents, obs_dim, act_dim, unique_obs_dim, jnp.float32)

    obs = jax.random.normal(ko, (batch, obs_dim_total), jnp.float32)
    actions = jax.random.normal(ka, (batch, act_dim_total), jnp.float32)

    r1, r2 = _reference_forward(obs, actions, raw_params)

    # f32 weight path (exact vs. reference).
    prep_f32 = prepare_params(raw_params, jnp.float32)
    q1, q2 = critic_td3_forward(obs, actions, prep_f32)
    jax.block_until_ready((q1, q2))
    assert q1.shape == (batch, 1) and q2.shape == (batch, 1)
    assert jnp.allclose(q1, r1, atol=1e-4, rtol=1e-4)
    assert jnp.allclose(q2, r2, atol=1e-4, rtol=1e-4)

    # bf16 weight path (default: bf16 MXU on v5e/v6e/v7x, f32 accumulation).
    prep_bf16 = prepare_params(raw_params)
    q1b, q2b = critic_td3_forward(obs, actions, prep_bf16)
    jax.block_until_ready((q1b, q2b))
    assert jnp.allclose(q1b, r1, atol=1e-1, rtol=1e-1)
    assert jnp.allclose(q2b, r2, atol=1e-1, rtol=1e-1)

    print("KERNEL_OK")
</pallas_src>

<mosaic_0001>
module attributes {stable_mosaic.version = 11 : i64} {
  func.func @_critic_td3_kernel(%arg0: i32, %arg1: memref<128x18xf32, #tpu.memory_space<vmem>>, %arg2: memref<128x8xf32, #tpu.memory_space<vmem>>, %arg3: memref<26x1024xf32, #tpu.memory_space<vmem>>, %arg4: memref<1x1024xf32, #tpu.memory_space<vmem>>, %arg5: memref<512x256xf32, #tpu.memory_space<vmem>>, %arg6: memref<1x256xf32, #tpu.memory_space<vmem>>, %arg7: memref<256x128xf32, #tpu.memory_space<vmem>>, %arg8: memref<1x128xf32, #tpu.memory_space<vmem>>, %arg9: memref<1x128xf32, #tpu.memory_space<vmem>>, %arg10: memref<1x1xf32, #tpu.memory_space<vmem>>, %arg11: memref<512x256xf32, #tpu.memory_space<vmem>>, %arg12: memref<1x256xf32, #tpu.memory_space<vmem>>, %arg13: memref<256x128xf32, #tpu.memory_space<vmem>>, %arg14: memref<1x128xf32, #tpu.memory_space<vmem>>, %arg15: memref<1x128xf32, #tpu.memory_space<vmem>>, %arg16: memref<1x1xf32, #tpu.memory_space<vmem>>, %arg17: memref<128x2xf32, #tpu.memory_space<vmem>>) attributes {dimension_semantics = [#tpu.dimension_semantics<parallel>], iteration_bounds = array<i64: 1>, scalar_prefetch = 0 : i64, scratch_operands = 0 : i64, tpu.core_type = #tpu.core_type<tc>, window_params = [{transform_indices = @transform_0, window_bounds = array<i64: 128, 18>}, {transform_indices = @transform_1, window_bounds = array<i64: 128, 8>}, {pipeline_mode = #tpu.pipeline_mode<synchronous>, transform_indices = @transform_2, window_bounds = array<i64: 26, 1024>}, {pipeline_mode = #tpu.pipeline_mode<synchronous>, transform_indices = @transform_3, window_bounds = array<i64: 1, 1024>}, {pipeline_mode = #tpu.pipeline_mode<synchronous>, transform_indices = @transform_4, window_bounds = array<i64: 512, 256>}, {pipeline_mode = #tpu.pipeline_mode<synchronous>, transform_indices = @transform_5, window_bounds = array<i64: 1, 256>}, {pipeline_mode = #tpu.pipeline_mode<synchronous>, transform_indices = @transform_6, window_bounds = array<i64: 256, 128>}, {pipeline_mode = #tpu.pipeline_mode<synchronous>, transform_indices = @transform_7, window_bounds = array<i64: 1, 128>}, {pipeline_mode = #tpu.pipeline_mode<synchronous>, transform_indices = @transform_8, window_bounds = array<i64: 1, 128>}, {pipeline_mode = #tpu.pipeline_mode<synchronous>, transform_indices = @transform_9, window_bounds = array<i64: 1, 1>}, {pipeline_mode = #tpu.pipeline_mode<synchronous>, transform_indices = @transform_10, window_bounds = array<i64: 512, 256>}, {pipeline_mode = #tpu.pipeline_mode<synchronous>, transform_indices = @transform_11, window_bounds = array<i64: 1, 256>}, {pipeline_mode = #tpu.pipeline_mode<synchronous>, transform_indices = @transform_12, window_bounds = array<i64: 256, 128>}, {pipeline_mode = #tpu.pipeline_mode<synchronous>, transform_indices = @transform_13, window_bounds = array<i64: 1, 128>}, {pipeline_mode = #tpu.pipeline_mode<synchronous>, transform_indices = @transform_14, window_bounds = array<i64: 1, 128>}, {pipeline_mode = #tpu.pipeline_mode<synchronous>, transform_indices = @transform_15, window_bounds = array<i64: 1, 1>}, {transform_indices = @transform_16, window_bounds = array<i64: 128, 2>}]} {
    %c0 = arith.constant 0 : index
    %c0_0 = arith.constant 0 : index
    %0 = vector.load %arg1[%c0, %c0_0] : memref<128x18xf32, #tpu.memory_space<vmem>>, vector<128x18xf32>
    %c0_1 = arith.constant 0 : index
    %c0_2 = arith.constant 0 : index
    %1 = vector.load %arg2[%c0_1, %c0_2] : memref<128x8xf32, #tpu.memory_space<vmem>>, vector<128x8xf32>
    %2 = tpu.concatenate %0, %1 in 1 : vector<128x18xf32>, vector<128x8xf32> -> vector<128x26xf32>
    %c0_3 = arith.constant 0 : index
    %c0_4 = arith.constant 0 : index
    %3 = vector.load %arg3[%c0_3, %c0_4] : memref<26x1024xf32, #tpu.memory_space<vmem>>, vector<26x1024xf32>
    %cst = arith.constant dense<0.000000e+00> : vector<128x1024xf32>
    %4 = tpu.matmul %2, %3, %cst {dimension_numbers = #tpu.dot_dimension_numbers<[1], [0], [0], [1], [0, 0, 1, 1], [], []>} : vector<128x26xf32>, vector<26x1024xf32>, vector<128x1024xf32> -> vector<128x1024xf32>
    %c0_5 = arith.constant 0 : index
    %c0_6 = arith.constant 0 : index
    %5 = vector.load %arg4[%c0_5, %c0_6] : memref<1x1024xf32, #tpu.memory_space<vmem>>, vector<1x1024xf32>
    %6 = vector.broadcast %5 : vector<1x1024xf32> to vector<128x1024xf32>
    %7 = arith.addf %4, %6 : vector<128x1024xf32>
    %cst_7 = arith.constant 0.000000e+00 : f32
    %8 = vector.broadcast %cst_7 : f32 to vector<128x1024xf32>
    %9 = arith.maximumf %7, %8 : vector<128x1024xf32>
    %10 = vector.extract_strided_slice %9 {offsets = [0, 0], sizes = [128, 512], strides = [1, 1]} : vector<128x1024xf32> to vector<128x512xf32>
    %c0_8 = arith.constant 0 : index
    %c0_9 = arith.constant 0 : index
    %11 = vector.load %arg5[%c0_8, %c0_9] : memref<512x256xf32, #tpu.memory_space<vmem>>, vector<512x256xf32>
    %cst_10 = arith.constant dense<0.000000e+00> : vector<128x256xf32>
    %12 = tpu.matmul %10, %11, %cst_10 {dimension_numbers = #tpu.dot_dimension_numbers<[1], [0], [0], [1], [0, 0, 1, 1], [], []>} : vector<128x512xf32>, vector<512x256xf32>, vector<128x256xf32> -> vector<128x256xf32>
    %c0_11 = arith.constant 0 : index
    %c0_12 = arith.constant 0 : index
    %13 = vector.load %arg6[%c0_11, %c0_12] : memref<1x256xf32, #tpu.memory_space<vmem>>, vector<1x256xf32>
    %14 = vector.broadcast %13 : vector<1x256xf32> to vector<128x256xf32>
    %15 = arith.addf %12, %14 : vector<128x256xf32>
    %cst_13 = arith.constant 0.000000e+00 : f32
    %16 = vector.broadcast %cst_13 : f32 to vector<128x256xf32>
    %17 = arith.maximumf %15, %16 : vector<128x256xf32>
    %c0_14 = arith.constant 0 : index
    %c0_15 = arith.constant 0 : index
    %18 = vector.load %arg7[%c0_14, %c0_15] : memref<256x128xf32, #tpu.memory_space<vmem>>, vector<256x128xf32>
    %cst_16 = arith.constant dense<0.000000e+00> : vector<128x128xf32>
    %19 = tpu.matmul %17, %18, %cst_16 {dimension_numbers = #tpu.dot_dimension_numbers<[1], [0], [0], [1], [0, 0, 1, 1], [], []>} : vector<128x256xf32>, vector<256x128xf32>, vector<128x128xf32> -> vector<128x128xf32>
    %c0_17 = arith.constant 0 : index
    %c0_18 = arith.constant 0 : index
    %20 = vector.load %arg8[%c0_17, %c0_18] : memref<1x128xf32, #tpu.memory_space<vmem>>, vector<1x128xf32>
    %21 = vector.broadcast %20 : vector<1x128xf32> to vector<128x128xf32>
    %22 = arith.addf %19, %21 : vector<128x128xf32>
    %cst_19 = arith.constant 0.000000e+00 : f32
    %23 = vector.broadcast %cst_19 : f32 to vector<128x128xf32>
    %24 = arith.maximumf %22, %23 : vector<128x128xf32>
    %c0_20 = arith.constant 0 : index
    %c0_21 = arith.constant 0 : index
    %25 = vector.load %arg9[%c0_20, %c0_21] : memref<1x128xf32, #tpu.memory_space<vmem>>, vector<1x128xf32>
    %26 = vector.broadcast %25 : vector<1x128xf32> to vector<128x128xf32>
    %27 = arith.mulf %24, %26 : vector<128x128xf32>
    %cst_22 = arith.constant dense<0.000000e+00> : vector<128xf32>
    %28 = vector.multi_reduction <add>, %27, %cst_22 [1] : vector<128x128xf32> to vector<128xf32>
    %29 = vector.shape_cast %28 : vector<128xf32> to vector<128x1xf32>
    %c0_23 = arith.constant 0 : index
    %c0_24 = arith.constant 0 : index
    %30 = vector.load %arg10[%c0_23, %c0_24] : memref<1x1xf32, #tpu.memory_space<vmem>>, vector<1x1xf32>
    %31 = vector.broadcast %30 : vector<1x1xf32> to vector<128x1xf32>
    %32 = arith.addf %29, %31 : vector<128x1xf32>
    %33 = vector.extract_strided_slice %9 {offsets = [0, 512], sizes = [128, 512], strides = [1, 1]} : vector<128x1024xf32> to vector<128x512xf32>
    %c0_25 = arith.constant 0 : index
    %c0_26 = arith.constant 0 : index
    %34 = vector.load %arg11[%c0_25, %c0_26] : memref<512x256xf32, #tpu.memory_space<vmem>>, vector<512x256xf32>
    %cst_27 = arith.constant dense<0.000000e+00> : vector<128x256xf32>
    %35 = tpu.matmul %33, %34, %cst_27 {dimension_numbers = #tpu.dot_dimension_numbers<[1], [0], [0], [1], [0, 0, 1, 1], [], []>} : vector<128x512xf32>, vector<512x256xf32>, vector<128x256xf32> -> vector<128x256xf32>
    %c0_28 = arith.constant 0 : index
    %c0_29 = arith.constant 0 : index
    %36 = vector.load %arg12[%c0_28, %c0_29] : memref<1x256xf32, #tpu.memory_space<vmem>>, vector<1x256xf32>
    %37 = vector.broadcast %36 : vector<1x256xf32> to vector<128x256xf32>
    %38 = arith.addf %35, %37 : vector<128x256xf32>
    %cst_30 = arith.constant 0.000000e+00 : f32
    %39 = vector.broadcast %cst_30 : f32 to vector<128x256xf32>
    %40 = arith.maximumf %38, %39 : vector<128x256xf32>
    %c0_31 = arith.constant 0 : index
    %c0_32 = arith.constant 0 : index
    %41 = vector.load %arg13[%c0_31, %c0_32] : memref<256x128xf32, #tpu.memory_space<vmem>>, vector<256x128xf32>
    %cst_33 = arith.constant dense<0.000000e+00> : vector<128x128xf32>
    %42 = tpu.matmul %40, %41, %cst_33 {dimension_numbers = #tpu.dot_dimension_numbers<[1], [0], [0], [1], [0, 0, 1, 1], [], []>} : vector<128x256xf32>, vector<256x128xf32>, vector<128x128xf32> -> vector<128x128xf32>
    %c0_34 = arith.constant 0 : index
    %c0_35 = arith.constant 0 : index
    %43 = vector.load %arg14[%c0_34, %c0_35] : memref<1x128xf32, #tpu.memory_space<vmem>>, vector<1x128xf32>
    %44 = vector.broadcast %43 : vector<1x128xf32> to vector<128x128xf32>
    %45 = arith.addf %42, %44 : vector<128x128xf32>
    %cst_36 = arith.constant 0.000000e+00 : f32
    %46 = vector.broadcast %cst_36 : f32 to vector<128x128xf32>
    %47 = arith.maximumf %45, %46 : vector<128x128xf32>
    %c0_37 = arith.constant 0 : index
    %c0_38 = arith.constant 0 : index
    %48 = vector.load %arg15[%c0_37, %c0_38] : memref<1x128xf32, #tpu.memory_space<vmem>>, vector<1x128xf32>
    %49 = vector.broadcast %48 : vector<1x128xf32> to vector<128x128xf32>
    %50 = arith.mulf %47, %49 : vector<128x128xf32>
    %cst_39 = arith.constant dense<0.000000e+00> : vector<128xf32>
    %51 = vector.multi_reduction <add>, %50, %cst_39 [1] : vector<128x128xf32> to vector<128xf32>
    %52 = vector.shape_cast %51 : vector<128xf32> to vector<128x1xf32>
    %c0_40 = arith.constant 0 : index
    %c0_41 = arith.constant 0 : index
    %53 = vector.load %arg16[%c0_40, %c0_41] : memref<1x1xf32, #tpu.memory_space<vmem>>, vector<1x1xf32>
    %54 = vector.broadcast %53 : vector<1x1xf32> to vector<128x1xf32>
    %55 = arith.addf %52, %54 : vector<128x1xf32>
    %56 = tpu.concatenate %32, %55 in 1 : vector<128x1xf32>, vector<128x1xf32> -> vector<128x2xf32>
    %c0_42 = arith.constant 0 : index
    %c0_43 = arith.constant 0 : index
    %57 = vector.load %arg17[%c0_42, %c0_43] : memref<128x2xf32, #tpu.memory_space<vmem>>, vector<128x2xf32>
    tpu.vector_store %arg17[%c0_42, %c0_43], %56 {strides = array<i32>} : memref<128x2xf32, #tpu.memory_space<vmem>>, vector<128x2xf32>,
    return
  }
  func.func @transform_0(%arg0: i32) -> (i32, i32) {
    %c0_i32 = arith.constant 0 : i32
    %c0_i32_0 = arith.constant 0 : i32
    return %arg0, %c0_i32 : i32, i32
  }
  func.func @transform_1(%arg0: i32) -> (i32, i32) {
    %c0_i32 = arith.constant 0 : i32
    %c0_i32_0 = arith.constant 0 : i32
    return %arg0, %c0_i32 : i32, i32
  }
  func.func @transform_2(%arg0: i32) -> (i32, i32) {
    %c0_i32 = arith.constant 0 : i32
    %c0_i32_0 = arith.constant 0 : i32
    %c0_i32_1 = arith.constant 0 : i32
    return %c0_i32, %c0_i32_0 : i32, i32
  }
  func.func @transform_3(%arg0: i32) -> (i32, i32) {
    %c0_i32 = arith.constant 0 : i32
    %c0_i32_0 = arith.constant 0 : i32
    %c0_i32_1 = arith.constant 0 : i32
    return %c0_i32, %c0_i32_0 : i32, i32
  }
  func.func @transform_4(%arg0: i32) -> (i32, i32) {
    %c0_i32 = arith.constant 0 : i32
    %c0_i32_0 = arith.constant 0 : i32
    %c0_i32_1 = arith.constant 0 : i32
    return %c0_i32, %c0_i32_0 : i32, i32
  }
  func.func @transform_5(%arg0: i32) -> (i32, i32) {
    %c0_i32 = arith.constant 0 : i32
    %c0_i32_0 = arith.constant 0 : i32
    %c0_i32_1 = arith.constant 0 : i32
    return %c0_i32, %c0_i32_0 : i32, i32
  }
  func.func @transform_6(%arg0: i32) -> (i32, i32) {
    %c0_i32 = arith.constant 0 : i32
    %c0_i32_0 = arith.constant 0 : i32
    %c0_i32_1 = arith.constant 0 : i32
    return %c0_i32, %c0_i32_0 : i32, i32
  }
  func.func @transform_7(%arg0: i32) -> (i32, i32) {
    %c0_i32 = arith.constant 0 : i32
    %c0_i32_0 = arith.constant 0 : i32
    %c0_i32_1 = arith.constant 0 : i32
    return %c0_i32, %c0_i32_0 : i32, i32
  }
  func.func @transform_8(%arg0: i32) -> (i32, i32) {
    %c0_i32 = arith.constant 0 : i32
    %c0_i32_0 = arith.constant 0 : i32
    %c0_i32_1 = arith.constant 0 : i32
    return %c0_i32, %c0_i32_0 : i32, i32
  }
  func.func @transform_9(%arg0: i32) -> (i32, i32) {
    %c0_i32 = arith.constant 0 : i32
    %c0_i32_0 = arith.constant 0 : i32
    %c0_i32_1 = arith.constant 0 : i32
    return %c0_i32, %c0_i32_0 : i32, i32
  }
  func.func @transform_10(%arg0: i32) -> (i32, i32) {
    %c0_i32 = arith.constant 0 : i32
    %c0_i32_0 = arith.constant 0 : i32
    %c0_i32_1 = arith.constant 0 : i32
    return %c0_i32, %c0_i32_0 : i32, i32
  }
  func.func @transform_11(%arg0: i32) -> (i32, i32) {
    %c0_i32 = arith.constant 0 : i32
    %c0_i32_0 = arith.constant 0 : i32
    %c0_i32_1 = arith.constant 0 : i32
    return %c0_i32, %c0_i32_0 : i32, i32
  }
  func.func @transform_12(%arg0: i32) -> (i32, i32) {
    %c0_i32 = arith.constant 0 : i32
    %c0_i32_0 = arith.constant 0 : i32
    %c0_i32_1 = arith.constant 0 : i32
    return %c0_i32, %c0_i32_0 : i32, i32
  }
  func.func @transform_13(%arg0: i32) -> (i32, i32) {
    %c0_i32 = arith.constant 0 : i32
    %c0_i32_0 = arith.constant 0 : i32
    %c0_i32_1 = arith.constant 0 : i32
    return %c0_i32, %c0_i32_0 : i32, i32
  }
  func.func @transform_14(%arg0: i32) -> (i32, i32) {
    %c0_i32 = arith.constant 0 : i32
    %c0_i32_0 = arith.constant 0 : i32
    %c0_i32_1 = arith.constant 0 : i32
    return %c0_i32, %c0_i32_0 : i32, i32
  }
  func.func @transform_15(%arg0: i32) -> (i32, i32) {
    %c0_i32 = arith.constant 0 : i32
    %c0_i32_0 = arith.constant 0 : i32
    %c0_i32_1 = arith.constant 0 : i32
    return %c0_i32, %c0_i32_0 : i32, i32
  }
  func.func @transform_16(%arg0: i32) -> (i32, i32) {
    %c0_i32 = arith.constant 0 : i32
    %c0_i32_0 = arith.constant 0 : i32
    return %arg0, %c0_i32 : i32, i32
  }
}

</mosaic_0001>

<llo_original>
// kernel: critic_td3_forward.1
$region0: #{critic_td3_forward.1}
  #allocation0 [shape = 'u32[]', space=smem, size = 0x4, offset = 0x4, fixed_abs, tag = 'smem constant byte address 0x4 - core index']
  #allocation1 [shape = 'u32[72,128]{1,0:T(1,128)}', space=vmem, size = 0x9000, scoped, tag = 'internal scratch']
  #allocation2 [shape = 'f32[1,1]{1,0:T(1,128)S(1)}', space=vmem, size = 0x200, scoped, tag = 'scoped memory for critic_td3_forward.1']
  #allocation3 [shape = 'f32[1,1]{1,0:T(1,128)S(1)}', space=vmem, size = 0x200, scoped, tag = 'scoped memory for critic_td3_forward.1']
  %s0 = inlined_call_operand.vmem [shape: f32[128,18], index: 0, kind: input, shape index: {}]
  %s1 = inlined_call_operand.vmem [shape: f32[128,8], index: 1, kind: input, shape index: {}]
  %s2 = inlined_call_operand.vmem [shape: f32[26,1024], index: 2, kind: input, shape index: {}]
  %s3 = inlined_call_operand.vmem [shape: f32[1,1024], index: 3, kind: input, shape index: {}]
  %s4 = inlined_call_operand.hbm [shape: f32[512,256], index: 4, kind: input, shape index: {}]
  %s5 = inlined_call_operand.vmem [shape: f32[1,256], index: 5, kind: input, shape index: {}]
  %s6 = inlined_call_operand.hbm [shape: f32[256,128], index: 6, kind: input, shape index: {}]
  %s7 = inlined_call_operand.vmem [shape: f32[1,128], index: 7, kind: input, shape index: {}]
  %s8 = inlined_call_operand.vmem [shape: f32[1,128], index: 8, kind: input, shape index: {}]
  %s9 = inlined_call_operand.<no memory space> [shape: f32[1,1], index: 9, kind: input, shape index: {}]
  %s10 = inlined_call_operand.hbm [shape: f32[512,256], index: 10, kind: input, shape index: {}]
  %s11 = inlined_call_operand.vmem [shape: f32[1,256], index: 11, kind: input, shape index: {}]
  %s12 = inlined_call_operand.hbm [shape: f32[256,128], index: 12, kind: input, shape index: {}]
  %s13 = inlined_call_operand.vmem [shape: f32[1,128], index: 13, kind: input, shape index: {}]
  %s14 = inlined_call_operand.vmem [shape: f32[1,128], index: 14, kind: input, shape index: {}]
  %s15 = inlined_call_operand.<no memory space> [shape: f32[1,1], index: 15, kind: input, shape index: {}]
  %s16 = inlined_call_operand.vmem [shape: f32[128,2], index: 16, kind: output, shape index: {}]
  %s17 = sld [smem:[#allocation0]]
  $region90: #{critic_td3_forward.1} parent=0
    _
  %s19 = ssub.s32 1, %s17
  %s20 = scalar_select 0, %s19, %s17
  %v21 = vstv %s9
  %22 = vst [vmem:[#allocation2] sm:$0x1] %v21
  %v23 = vstv %s15
  %24 = vst [vmem:[#allocation3] sm:$0x1] %v23
  $region1: #{critic_td3_forward.1} parent=0
    #allocation4 [shape = 'u8[524288]{0}', space=vmem, size = 0x80000, scoped, tag = 'input window, operand 4, single buffered']
    #allocation5 [shape = 's32[1]{0}', space=sflag, size = 0x4, scoped, tag = 'scoped memory for critic_td3_forward.1']
    #allocation6 [shape = 'u8[131072]{0}', space=vmem, size = 0x20000, scoped, tag = 'input window, operand 6, single buffered']
    #allocation7 [shape = 's32[1]{0}', space=sflag, size = 0x4, scoped, tag = 'scoped memory for critic_td3_forward.1']
    #allocation8 [shape = 'u8[524288]{0}', space=vmem, size = 0x80000, scoped, tag = 'input window, operand 10, single buffered']
    #allocation9 [shape = 'u8[131072]{0}', space=vmem, size = 0x20000, scoped, tag = 'input window, operand 12, single buffered']
    #allocation10 [shape = 's32[1]{0}', space=sflag, size = 0x4, scoped, tag = 'scoped memory for critic_td3_forward.1']
    %25 = vsyncpa [#allocation5], 0
    %26 = vsyncpa [#allocation7], 0
    %27 = vsyncpa [#allocation10], 0
    // Predicated region
    $region2: #{critic_td3_forward.1} parent=1 // pred_check
      _
    $region3: #{critic_td3_forward.1} parent=1 // pred_check_branch
      %29 = sbr.rel (0) target = $region5
    $region4: #{critic_td3_forward.1} parent=1 // pred_region
      _
    $region5: #{critic_td3_forward.1} parent=1 // pred_fallthru
      _
    // Predicated region
    $region6: #{critic_td3_forward.1} parent=1 // pred_check
      _
    $region7: #{critic_td3_forward.1} parent=1 // pred_check_branch
      %31 = sbr.rel (0) target = $region9
    $region8: #{critic_td3_forward.1} parent=1 // pred_region
      _
    $region9: #{critic_td3_forward.1} parent=1 // pred_fallthru
      _
    // Predicated region
    $region10: #{critic_td3_forward.1} parent=1 // pred_check
      _
    $region11: #{critic_td3_forward.1} parent=1 // pred_check_branch
      %33 = sbr.rel (0) target = $region13
    $region12: #{critic_td3_forward.1} parent=1 // pred_region
      _
    $region13: #{critic_td3_forward.1} parent=1 // pred_fallthru
      _
    // Predicated region
    $region14: #{critic_td3_forward.1} parent=1 // pred_check
      _
    $region15: #{critic_td3_forward.1} parent=1 // pred_check_branch
      %35 = sbr.rel (0) target = $region17
    $region16: #{critic_td3_forward.1} parent=1 // pred_region
      _
    $region17: #{critic_td3_forward.1} parent=1 // pred_fallthru
      _
    // Predicated region
    $region18: #{critic_td3_forward.1} parent=1 // pred_check
      _
    $region19: #{critic_td3_forward.1} parent=1 // pred_check_branch
      %37 = sbr.rel (0) target = $region21
    $region20: #{critic_td3_forward.1} parent=1 // pred_region
      %39 = vsyncadd [#allocation5], 0
      %s40 = sshll.u32 %s4, 4
      %s41 = int_to_ptr.hbm [resolvable:$true] %s40
      %s42 = sshll.u32 [#allocation4], 4
      %s43 = int_to_ptr.vmem [resolvable:$true] %s42
      %48 = dma.hbm_to_vmem [thread:$0]  %s41, 16384, %s43, [#allocation5], 256, 256, 16
    $region21: #{critic_td3_forward.1} parent=1 // pred_fallthru
      _
    // Predicated region
    $region22: #{critic_td3_forward.1} parent=1 // pred_check
      _
    $region23: #{critic_td3_forward.1} parent=1 // pred_check_branch
      %50 = sbr.rel (0) target = $region25
    $region24: #{critic_td3_forward.1} parent=1 // pred_region
      _
    $region25: #{critic_td3_forward.1} parent=1 // pred_fallthru
      _
    // Predicated region
    $region26: #{critic_td3_forward.1} parent=1 // pred_check
      _
    $region27: #{critic_td3_forward.1} parent=1 // pred_check_branch
      %52 = sbr.rel (0) target = $region29
    $region28: #{critic_td3_forward.1} parent=1 // pred_region
      %54 = vsyncadd [#allocation7], 0
      %s55 = sshll.u32 %s6, 4
      %s56 = int_to_ptr.hbm [resolvable:$true] %s55
      %s57 = sshll.u32 [#allocation6], 4
      %s58 = int_to_ptr.vmem [resolvable:$true] %s57
      %63 = dma.hbm_to_vmem [thread:$0]  %s56, 4096, %s58, [#allocation7], 128, 128, 8
    $region29: #{critic_td3_forward.1} parent=1 // pred_fallthru
      _
    // Predicated region
    $region30: #{critic_td3_forward.1} parent=1 // pred_check
      _
    $region31: #{critic_td3_forward.1} parent=1 // pred_check_branch
      %65 = sbr.rel (0) target = $region33
    $region32: #{critic_td3_forward.1} parent=1 // pred_region
      _
    $region33: #{critic_td3_forward.1} parent=1 // pred_fallthru
      _
    // Predicated region
    $region34: #{critic_td3_forward.1} parent=1 // pred_check
      _
    $region35: #{critic_td3_forward.1} parent=1 // pred_check_branch
      %67 = sbr.rel (0) target = $region37
    $region36: #{critic_td3_forward.1} parent=1 // pred_region
      _
    $region37: #{critic_td3_forward.1} parent=1 // pred_fallthru
      _
    // Predicated region
    $region38: #{critic_td3_forward.1} parent=1 // pred_check
      _
    $region39: #{critic_td3_forward.1} parent=1 // pred_check_branch
      %69 = sbr.rel (0) target = $region41
    $region40: #{critic_td3_forward.1} parent=1 // pred_region
      _
    $region41: #{critic_td3_forward.1} parent=1 // pred_fallthru
      _
    // Predicated region
    $region42: #{critic_td3_forward.1} parent=1 // pred_check
      _
    $region43: #{critic_td3_forward.1} parent=1 // pred_check_branch
      %71 = sbr.rel (0) target = $region45
    $region44: #{critic_td3_forward.1} parent=1 // pred_region
      %73 = vsyncadd [#allocation7], 0
      %s74 = sshll.u32 %s10, 4
      %s75 = int_to_ptr.hbm [resolvable:$true] %s74
      %s76 = sshll.u32 [#allocation8], 4
      %s77 = int_to_ptr.vmem [resolvable:$true] %s76
      %82 = dma.hbm_to_vmem [thread:$0]  %s75, 16384, %s77, [#allocation7], 256, 256, 16
    $region45: #{critic_td3_forward.1} parent=1 // pred_fallthru
      _
    // Predicated region
    $region46: #{critic_td3_forward.1} parent=1 // pred_check
      _
    $region47: #{critic_td3_forward.1} parent=1 // pred_check_branch
      %84 = sbr.rel (0) target = $region49
    $region48: #{critic_td3_forward.1} parent=1 // pred_region
      _
    $region49: #{critic_td3_forward.1} parent=1 // pred_fallthru
      _
    // Predicated region
    $region50: #{critic_td3_forward.1} parent=1 // pred_check
      _
    $region51: #{critic_td3_forward.1} parent=1 // pred_check_branch
      %86 = sbr.rel (0) target = $region53
    $region52: #{critic_td3_forward.1} parent=1 // pred_region
      %88 = vsyncadd [#allocation10], 0
      %s89 = sshll.u32 %s12, 4
      %s90 = int_to_ptr.hbm [resolvable:$true] %s89
      %s91 = sshll.u32 [#allocation9], 4
      %s92 = int_to_ptr.vmem [resolvable:$true] %s91
      %97 = dma.hbm_to_vmem [thread:$0]  %s90, 4096, %s92, [#allocation10], 128, 128, 8
    $region53: #{critic_td3_forward.1} parent=1 // pred_fallthru
      _
    // Predicated region
    $region54: #{critic_td3_forward.1} parent=1 // pred_check
      _
    $region55: #{critic_td3_forward.1} parent=1 // pred_check_branch
      %99 = sbr.rel (0) target = $region57
    $region56: #{critic_td3_forward.1} parent=1 // pred_region
      _
    $region57: #{critic_td3_forward.1} parent=1 // pred_fallthru
      _
    // Predicated region
    $region58: #{critic_td3_forward.1} parent=1 // pred_check
      _
    $region59: #{critic_td3_forward.1} parent=1 // pred_check_branch
      %101 = sbr.rel (0) target = $region61
    $region60: #{critic_td3_forward.1} parent=1 // pred_region
      _
    $region61: #{critic_td3_forward.1} parent=1 // pred_fallthru
      _
    // Predicated region
    $region62: #{critic_td3_forward.1} parent=1 // pred_check
      _
    $region63: #{critic_td3_forward.1} parent=1 // pred_check_branch
      %103 = sbr.rel (0) target = $region65
    $region64: #{critic_td3_forward.1} parent=1 // pred_region
      _
    $region65: #{critic_td3_forward.1} parent=1 // pred_fallthru
      _
    // Predicated region
    $region66: #{critic_td3_forward.1} parent=1 // pred_check
      _
    $region67: #{critic_td3_forward.1} parent=1 // pred_check_branch
      %105 = sbr.rel (0) target = $region69
    $region68: #{critic_td3_forward.1} parent=1 // pred_region
      %107 = dma.done [#allocation5], 16384
    $region69: #{critic_td3_forward.1} parent=1 // pred_fallthru
      _
    // Predicated region
    $region70: #{critic_td3_forward.1} parent=1 // pred_check
      _
    $region71: #{critic_td3_forward.1} parent=1 // pred_check_branch
      %109 = sbr.rel (0) target = $region73
    $region72: #{critic_td3_forward.1} parent=1 // pred_region
      %111 = dma.done [#allocation7], 4096
    $region73: #{critic_td3_forward.1} parent=1 // pred_fallthru
      _
    // Predicated region
    $region74: #{critic_td3_forward.1} parent=1 // pred_check
      _
    $region75: #{critic_td3_forward.1} parent=1 // pred_check_branch
      %113 = sbr.rel (0) target = $region77
    $region76: #{critic_td3_forward.1} parent=1 // pred_region
      %115 = dma.done [#allocation7], 16384
    $region77: #{critic_td3_forward.1} parent=1 // pred_fallthru
      _
    // Predicated region
    $region78: #{critic_td3_forward.1} parent=1 // pred_check
      _
    $region79: #{critic_td3_forward.1} parent=1 // pred_check_branch
      %117 = sbr.rel (0) target = $region81
    $region80: #{critic_td3_forward.1} parent=1 // pred_region
      %119 = dma.done [#allocation10], 4096
    $region81: #{critic_td3_forward.1} parent=1 // pred_fallthru
      _
    %v120 = vld [vmem:[%s0] sm:$0xff]
    %v121 = vld [vmem:[%s0 + $0x8] sm:$0xff]
    %v122 = vld [vmem:[%s0 + $0x10] sm:$0xff]
    %v123 = vld [vmem:[%s0 + $0x18] sm:$0xff]
    %v124 = vld [vmem:[%s0 + $0x20] sm:$0xff]
    %v125 = vld [vmem:[%s0 + $0x28] sm:$0xff]
    %v126 = vld [vmem:[%s0 + $0x30] sm:$0xff]
    %v127 = vld [vmem:[%s0 + $0x38] sm:$0xff]
    %v128 = vld [vmem:[%s0 + $0x40] sm:$0xff]
    %v129 = vld [vmem:[%s0 + $0x48] sm:$0xff]
    %v130 = vld [vmem:[%s0 + $0x50] sm:$0xff]
    %v131 = vld [vmem:[%s0 + $0x58] sm:$0xff]
    %v132 = vld [vmem:[%s0 + $0x60] sm:$0xff]
    %v133 = vld [vmem:[%s0 + $0x68] sm:$0xff]
    %v134 = vld [vmem:[%s0 + $0x70] sm:$0xff]
    %v135 = vld [vmem:[%s0 + $0x78] sm:$0xff]
    %v136 = vld [vmem:[%s1] sm:$0xff]
    %v137 = vld [vmem:[%s1 + $0x8] sm:$0xff]
    %v138 = vld [vmem:[%s1 + $0x10] sm:$0xff]
    %v139 = vld [vmem:[%s1 + $0x18] sm:$0xff]
    %v140 = vld [vmem:[%s1 + $0x20] sm:$0xff]
    %v141 = vld [vmem:[%s1 + $0x28] sm:$0xff]
    %v142 = vld [vmem:[%s1 + $0x30] sm:$0xff]
    %v143 = vld [vmem:[%s1 + $0x38] sm:$0xff]
    %v144 = vld [vmem:[%s1 + $0x40] sm:$0xff]
    %v145 = vld [vmem:[%s1 + $0x48] sm:$0xff]
    %v146 = vld [vmem:[%s1 + $0x50] sm:$0xff]
    %v147 = vld [vmem:[%s1 + $0x58] sm:$0xff]
    %v148 = vld [vmem:[%s1 + $0x60] sm:$0xff]
    %v149 = vld [vmem:[%s1 + $0x68] sm:$0xff]
    %v150 = vld [vmem:[%s1 + $0x70] sm:$0xff]
    %v151 = vld [vmem:[%s1 + $0x78] sm:$0xff]
    %168 = vrot.lane.b32.xlu0 %v136, 18
    %v169 = vpop.permute.xlu0 %168
    %170 = vrot.lane.b32.xlu0 %v137, 18
    %v171 = vpop.permute.xlu0 %170
    %172 = vrot.lane.b32.xlu0 %v138, 18
    %v173 = vpop.permute.xlu0 %172
    %174 = vrot.lane.b32.xlu0 %v139, 18
    %v175 = vpop.permute.xlu0 %174
    %176 = vrot.lane.b32.xlu0 %v140, 18
    %v177 = vpop.permute.xlu0 %176
    %178 = vrot.lane.b32.xlu0 %v141, 18
    %v179 = vpop.permute.xlu0 %178
    %180 = vrot.lane.b32.xlu0 %v142, 18
    %v181 = vpop.permute.xlu0 %180
    %182 = vrot.lane.b32.xlu0 %v143, 18
    %v183 = vpop.permute.xlu0 %182
    %184 = vrot.lane.b32.xlu0 %v144, 18
    %v185 = vpop.permute.xlu0 %184
    %186 = vrot.lane.b32.xlu0 %v145, 18
    %v187 = vpop.permute.xlu0 %186
    %188 = vrot.lane.b32.xlu0 %v146, 18
    %v189 = vpop.permute.xlu0 %188
    %190 = vrot.lane.b32.xlu0 %v147, 18
    %v191 = vpop.permute.xlu0 %190
    %192 = vrot.lane.b32.xlu0 %v148, 18
    %v193 = vpop.permute.xlu0 %192
    %194 = vrot.lane.b32.xlu0 %v149, 18
    %v195 = vpop.permute.xlu0 %194
    %196 = vrot.lane.b32.xlu0 %v150, 18
    %v197 = vpop.permute.xlu0 %196
    %198 = vrot.lane.b32.xlu0 %v151, 18
    %v199 = vpop.permute.xlu0 %198
    %vm216 = vcmask 146432
    %v217 = vsel %vm216, %v120, %v169
    %v218 = vsel %vm216, %v121, %v171
    %v219 = vsel %vm216, %v122, %v173
    %v220 = vsel %vm216, %v123, %v175
    %v221 = vsel %vm216, %v124, %v177
    %v222 = vsel %vm216, %v125, %v179
    %v223 = vsel %vm216, %v126, %v181
    %v224 = vsel %vm216, %v127, %v183
    %v225 = vsel %vm216, %v128, %v185
    %v226 = vsel %vm216, %v129, %v187
    %v227 = vsel %vm216, %v130, %v189
    %v228 = vsel %vm216, %v131, %v191
    %v229 = vsel %vm216, %v132, %v193
    %v230 = vsel %vm216, %v133, %v195
    %v231 = vsel %vm216, %v134, %v197
    %v232 = vsel %vm216, %v135, %v199
    %v233 = vld [vmem:[%s2] sm:$0xff]
    %v234 = vld [vmem:[%s2 + $0x8] sm:$0xff]
    %v235 = vld [vmem:[%s2 + $0x10] sm:$0xff]
    %v236 = vld [vmem:[%s2 + $0x18] sm:$0xff]
    %v237 = vld [vmem:[%s2 + $0x20] sm:$0xff]
    %v238 = vld [vmem:[%s2 + $0x28] sm:$0xff]
    %v239 = vld [vmem:[%s2 + $0x30] sm:$0xff]
    %v240 = vld [vmem:[%s2 + $0x38] sm:$0xff]
    %v241 = vld [vmem:[%s2 + $0x40] sm:$0xff]
    %v242 = vld [vmem:[%s2 + $0x48] sm:$0xff]
    %v243 = vld [vmem:[%s2 + $0x50] sm:$0xff]
    %v244 = vld [vmem:[%s2 + $0x58] sm:$0xff]
    %v245 = vld [vmem:[%s2 + $0x60] sm:$0xff]
    %v246 = vld [vmem:[%s2 + $0x68] sm:$0xff]
    %v247 = vld [vmem:[%s2 + $0x70] sm:$0xff]
    %v248 = vld [vmem:[%s2 + $0x78] sm:$0xff]
    %v249 = vld [vmem:[%s2 + $0x80] sm:$0xff]
    %v250 = vld [vmem:[%s2 + $0x88] sm:$0xff]
    %v251 = vld [vmem:[%s2 + $0x90] sm:$0xff]
    %v252 = vld [vmem:[%s2 + $0x98] sm:$0xff]
    %v253 = vld [vmem:[%s2 + $0xa0] sm:$0xff]
    %v254 = vld [vmem:[%s2 + $0xa8] sm:$0xff]
    %v255 = vld [vmem:[%s2 + $0xb0] sm:$0xff]
    %v256 = vld [vmem:[%s2 + $0xb8] sm:$0xff]
    %v257 = vld [vmem:[%s2 + $0xc0] sm:$0x3]
    %v258 = vld [vmem:[%s2 + $0xc8] sm:$0x3]
    %v259 = vld [vmem:[%s2 + $0xd0] sm:$0x3]
    %v260 = vld [vmem:[%s2 + $0xd8] sm:$0x3]
    %v261 = vld [vmem:[%s2 + $0xe0] sm:$0x3]
    %v262 = vld [vmem:[%s2 + $0xe8] sm:$0x3]
    %v263 = vld [vmem:[%s2 + $0xf0] sm:$0x3]
    %v264 = vld [vmem:[%s2 + $0xf8] sm:$0x3]
    %v265 = vld [vmem:[%s3] sm:$0xff]
    %v267 = vperm.slane %v265, 0
    %v268 = vperm.slane %v265, 1
    %v269 = vperm.slane %v265, 2
    %v270 = vperm.slane %v265, 3
    %v271 = vperm.slane %v265, 4
    %v272 = vperm.slane %v265, 5
    %v273 = vperm.slane %v265, 6
    %v274 = vperm.slane %v265, 7
    %vm283 = vcmask 211968
    %v285 = vsel %vm283, %v217, 0
    %v288 = vsel %vm283, %v218, 0
    %v291 = vsel %vm283, %v219, 0
    %v294 = vsel %vm283, %v220, 0
    %v297 = vsel %vm283, %v221, 0
    %v300 = vsel %vm283, %v222, 0
    %v303 = vsel %vm283, %v223, 0
    %v306 = vsel %vm283, %v224, 0
    %v309 = vsel %vm283, %v225, 0
    %v312 = vsel %vm283, %v226, 0
    %v315 = vsel %vm283, %v227, 0
    %v318 = vsel %vm283, %v228, 0
    %v321 = vsel %vm283, %v229, 0
    %v324 = vsel %vm283, %v230, 0
    %v327 = vsel %vm283, %v231, 0
    %v330 = vsel %vm283, %v232, 0
    %vm332 = vcmask 1041408
    %v334 = vsel %vm332, %v257, 0
    %v337 = vsel %vm332, %v258, 0
    %v340 = vsel %vm332, %v259, 0
    %v343 = vsel %vm332, %v260, 0
    %v346 = vsel %vm332, %v261, 0
    %v349 = vsel %vm332, %v262, 0
    %v352 = vsel %vm332, %v263, 0
    %v355 = vsel %vm332, %v264, 0
    %357 = vmatpush.msra.mxu0 0.0
    %358 = vmatpush.msra.mxu0 0.0
    %359 = vmatpush.msra.mxu0 0.0
    %360 = vmatpush.msra.mxu0 0.0
    %361 = vmatpush.msra.mxu0 0.0
    %362 = vmatpush.msra.mxu0 0.0
    %363 = vmatpush.msra.mxu0 0.0
    %364 = vmatpush.msra.mxu0 0.0
    %365 = vmatpush.msra.mxu0 0.0
    %366 = vmatpush.msra.mxu0 0.0
    %367 = vmatpush.msra.mxu0 0.0
    %368 = vmatpush.msra.mxu0 0.0
    %369 = vmatpush.msra.mxu0 %v334
    %370 = vmatpush.msra.mxu0 %v249
    %371 = vmatpush.msra.mxu0 %v241
    %372 = vmatpush.msra.mxu0 %v233
    %373 = vmatmul.f32.gmra.mxu0 %v285
    %v374 = vpop.f32.mrf.mxu0
    %v375 = vadd.f32 %v267, %v374
    %376 = vmatmul.f32.gmra.mxu0 %v288
    %v377 = vpop.f32.mrf.mxu0
    %v378 = vadd.f32 %v267, %v377
    %379 = vmatmul.f32.gmra.mxu0 %v291
    %v380 = vpop.f32.mrf.mxu0
    %v381 = vadd.f32 %v267, %v380
    %382 = vmatmul.f32.gmra.mxu0 %v294
    %v383 = vpop.f32.mrf.mxu0
    %v384 = vadd.f32 %v267, %v383
    %385 = vmatmul.f32.gmra.mxu0 %v297
    %v386 = vpop.f32.mrf.mxu0
    %v387 = vadd.f32 %v267, %v386
    %388 = vmatmul.f32.gmra.mxu0 %v300
    %v389 = vpop.f32.mrf.mxu0
    %v390 = vadd.f32 %v267, %v389
    %391 = vmatmul.f32.gmra.mxu0 %v303
    %v392 = vpop.f32.mrf.mxu0
    %v393 = vadd.f32 %v267, %v392
    %394 = vmatmul.f32.gmra.mxu0 %v306
    %v395 = vpop.f32.mrf.mxu0
    %v396 = vadd.f32 %v267, %v395
    %397 = vmatmul.f32.gmra.mxu0 %v309
    %v398 = vpop.f32.mrf.mxu0
    %v399 = vadd.f32 %v267, %v398
    %400 = vmatmul.f32.gmra.mxu0 %v312
    %v401 = vpop.f32.mrf.mxu0
    %v402 = vadd.f32 %v267, %v401
    %403 = vmatmul.f32.gmra.mxu0 %v315
    %v404 = vpop.f32.mrf.mxu0
    %v405 = vadd.f32 %v267, %v404
    %406 = vmatmul.f32.gmra.mxu0 %v318
    %v407 = vpop.f32.mrf.mxu0
    %v408 = vadd.f32 %v267, %v407
    %409 = vmatmul.f32.gmra.mxu0 %v321
    %v410 = vpop.f32.mrf.mxu0
    %v411 = vadd.f32 %v267, %v410
    %412 = vmatmul.f32.gmra.mxu0 %v324
    %v413 = vpop.f32.mrf.mxu0
    %v414 = vadd.f32 %v267, %v413
    %415 = vmatmul.f32.gmra.mxu0 %v327
    %v416 = vpop.f32.mrf.mxu0
    %v417 = vadd.f32 %v267, %v416
    %418 = vmatmul.f32.gmra.mxu0 %v330
    %v419 = vpop.f32.mrf.mxu0
    %v420 = vadd.f32 %v267, %v419
    %421 = vdwg.mxu0
    %422 = vmatpush.msra.mxu0 0.0
    %423 = vmatpush.msra.mxu0 0.0
    %424 = vmatpush.msra.mxu0 0.0
    %425 = vmatpush.msra.mxu0 0.0
    %426 = vmatpush.msra.mxu0 0.0
    %427 = vmatpush.msra.mxu0 0.0
    %428 = vmatpush.msra.mxu0 0.0
    %429 = vmatpush.msra.mxu0 0.0
    %430 = vmatpush.msra.mxu0 0.0
    %431 = vmatpush.msra.mxu0 0.0
    %432 = vmatpush.msra.mxu0 0.0
    %433 = vmatpush.msra.mxu0 0.0
    %434 = vmatpush.msra.mxu0 %v337
    %435 = vmatpush.msra.mxu0 %v250
    %436 = vmatpush.msra.mxu0 %v242
    %437 = vmatpush.msra.mxu0 %v234
    %438 = vmatmul.f32.gmra.mxu0 %v285
    %v439 = vpop.f32.mrf.mxu0
    %v440 = vadd.f32 %v268, %v439
    %441 = vmatmul.f32.gmra.mxu0 %v288
    %v442 = vpop.f32.mrf.mxu0
    %v443 = vadd.f32 %v268, %v442
    %444 = vmatmul.f32.gmra.mxu0 %v291
    %v445 = vpop.f32.mrf.mxu0
    %v446 = vadd.f32 %v268, %v445
    %447 = vmatmul.f32.gmra.mxu0 %v294
    %v448 = vpop.f32.mrf.mxu0
    %v449 = vadd.f32 %v268, %v448
    %450 = vmatmul.f32.gmra.mxu0 %v297
    %v451 = vpop.f32.mrf.mxu0
    %v452 = vadd.f32 %v268, %v451
    %453 = vmatmul.f32.gmra.mxu0 %v300
    %v454 = vpop.f32.mrf.mxu0
    %v455 = vadd.f32 %v268, %v454
    %456 = vmatmul.f32.gmra.mxu0 %v303
    %v457 = vpop.f32.mrf.mxu0
    %v458 = vadd.f32 %v268, %v457
    %459 = vmatmul.f32.gmra.mxu0 %v306
    %v460 = vpop.f32.mrf.mxu0
    %v461 = vadd.f32 %v268, %v460
    %462 = vmatmul.f32.gmra.mxu0 %v309
    %v463 = vpop.f32.mrf.mxu0
    %v464 = vadd.f32 %v268, %v463
    %465 = vmatmul.f32.gmra.mxu0 %v312
    %v466 = vpop.f32.mrf.mxu0
    %v467 = vadd.f32 %v268, %v466
    %468 = vmatmul.f32.gmra.mxu0 %v315
    %v469 = vpop.f32.mrf.mxu0
    %v470 = vadd.f32 %v268, %v469
    %471 = vmatmul.f32.gmra.mxu0 %v318
    %v472 = vpop.f32.mrf.mxu0
    %v473 = vadd.f32 %v268, %v472
    %474 = vmatmul.f32.gmra.mxu0 %v321
    %v475 = vpop.f32.mrf.mxu0
    %v476 = vadd.f32 %v268, %v475
    %477 = vmatmul.f32.gmra.mxu0 %v324
    %v478 = vpop.f32.mrf.mxu0
    %v479 = vadd.f32 %v268, %v478
    %480 = vmatmul.f32.gmra.mxu0 %v327
    %v481 = vpop.f32.mrf.mxu0
    %v482 = vadd.f32 %v268, %v481
    %483 = vmatmul.f32.gmra.mxu0 %v330
    %v484 = vpop.f32.mrf.mxu0
    %v485 = vadd.f32 %v268, %v484
    %486 = vdwg.mxu0
    %487 = vmatpush.msra.mxu0 0.0
    %488 = vmatpush.msra.mxu0 0.0
    %489 = vmatpush.msra.mxu0 0.0
    %490 = vmatpush.msra.mxu0 0.0
    %491 = vmatpush.msra.mxu0 0.0
    %492 = vmatpush.msra.mxu0 0.0
    %493 = vmatpush.msra.mxu0 0.0
    %494 = vmatpush.msra.mxu0 0.0
    %495 = vmatpush.msra.mxu0 0.0
    %496 = vmatpush.msra.mxu0 0.0
    %497 = vmatpush.msra.mxu0 0.0
    %498 = vmatpush.msra.mxu0 0.0
    %499 = vmatpush.msra.mxu0 %v340
    %500 = vmatpush.msra.mxu0 %v251
    %501 = vmatpush.msra.mxu0 %v243
    %502 = vmatpush.msra.mxu0 %v235
    %503 = vmatmul.f32.gmra.mxu0 %v285
    %v504 = vpop.f32.mrf.mxu0
    %v505 = vadd.f32 %v269, %v504
    %506 = vmatmul.f32.gmra.mxu0 %v288
    %v507 = vpop.f32.mrf.mxu0
    %v508 = vadd.f32 %v269, %v507
    %509 = vmatmul.f32.gmra.mxu0 %v291
    %v510 = vpop.f32.mrf.mxu0
    %v511 = vadd.f32 %v269, %v510
    %512 = vmatmul.f32.gmra.mxu0 %v294
    %v513 = vpop.f32.mrf.mxu0
    %v514 = vadd.f32 %v269, %v513
    %515 = vmatmul.f32.gmra.mxu0 %v297
    %v516 = vpop.f32.mrf.mxu0
    %v517 = vadd.f32 %v269, %v516
    %518 = vmatmul.f32.gmra.mxu0 %v300
    %v519 = vpop.f32.mrf.mxu0
    %v520 = vadd.f32 %v269, %v519
    %521 = vmatmul.f32.gmra.mxu0 %v303
    %v522 = vpop.f32.mrf.mxu0
    %v523 = vadd.f32 %v269, %v522
    %524 = vmatmul.f32.gmra.mxu0 %v306
    %v525 = vpop.f32.mrf.mxu0
    %v526 = vadd.f32 %v269, %v525
    %527 = vmatmul.f32.gmra.mxu0 %v309
    %v528 = vpop.f32.mrf.mxu0
    %v529 = vadd.f32 %v269, %v528
    %530 = vmatmul.f32.gmra.mxu0 %v312
    %v531 = vpop.f32.mrf.mxu0
    %v532 = vadd.f32 %v269, %v531
    %533 = vmatmul.f32.gmra.mxu0 %v315
    %v534 = vpop.f32.mrf.mxu0
    %v535 = vadd.f32 %v269, %v534
    %536 = vmatmul.f32.gmra.mxu0 %v318
    %v537 = vpop.f32.mrf.mxu0
    %v538 = vadd.f32 %v269, %v537
    %539 = vmatmul.f32.gmra.mxu0 %v321
    %v540 = vpop.f32.mrf.mxu0
    %v541 = vadd.f32 %v269, %v540
    %542 = vmatmul.f32.gmra.mxu0 %v324
    %v543 = vpop.f32.mrf.mxu0
    %v544 = vadd.f32 %v269, %v543
    %545 = vmatmul.f32.gmra.mxu0 %v327
    %v546 = vpop.f32.mrf.mxu0
    %v547 = vadd.f32 %v269, %v546
    %548 = vmatmul.f32.gmra.mxu0 %v330
    %v549 = vpop.f32.mrf.mxu0
    %v550 = vadd.f32 %v269, %v549
    %551 = vdwg.mxu0
    %552 = vmatpush.msra.mxu0 0.0
    %553 = vmatpush.msra.mxu0 0.0
    %554 = vmatpush.msra.mxu0 0.0
    %555 = vmatpush.msra.mxu0 0.0
    %556 = vmatpush.msra.mxu0 0.0
    %557 = vmatpush.msra.mxu0 0.0
    %558 = vmatpush.msra.mxu0 0.0
    %559 = vmatpush.msra.mxu0 0.0
    %560 = vmatpush.msra.mxu0 0.0
    %561 = vmatpush.msra.mxu0 0.0
    %562 = vmatpush.msra.mxu0 0.0
    %563 = vmatpush.msra.mxu0 0.0
    %564 = vmatpush.msra.mxu0 %v343
    %565 = vmatpush.msra.mxu0 %v252
    %566 = vmatpush.msra.mxu0 %v244
    %567 = vmatpush.msra.mxu0 %v236
    %568 = vmatmul.f32.gmra.mxu0 %v285
    %v569 = vpop.f32.mrf.mxu0
    %v570 = vadd.f32 %v270, %v569
    %571 = vmatmul.f32.gmra.mxu0 %v288
    %v572 = vpop.f32.mrf.mxu0
    %v573 = vadd.f32 %v270, %v572
    %574 = vmatmul.f32.gmra.mxu0 %v291
    %v575 = vpop.f32.mrf.mxu0
    %v576 = vadd.f32 %v270, %v575
    %577 = vmatmul.f32.gmra.mxu0 %v294
    %v578 = vpop.f32.mrf.mxu0
    %v579 = vadd.f32 %v270, %v578
    %580 = vmatmul.f32.gmra.mxu0 %v297
    %v581 = vpop.f32.mrf.mxu0
    %v582 = vadd.f32 %v270, %v581
    %583 = vmatmul.f32.gmra.mxu0 %v300
    %v584 = vpop.f32.mrf.mxu0
    %v585 = vadd.f32 %v270, %v584
    %586 = vmatmul.f32.gmra.mxu0 %v303
    %v587 = vpop.f32.mrf.mxu0
    %v588 = vadd.f32 %v270, %v587
    %589 = vmatmul.f32.gmra.mxu0 %v306
    %v590 = vpop.f32.mrf.mxu0
    %v591 = vadd.f32 %v270, %v590
    %592 = vmatmul.f32.gmra.mxu0 %v309
    %v593 = vpop.f32.mrf.mxu0
    %v594 = vadd.f32 %v270, %v593
    %595 = vmatmul.f32.gmra.mxu0 %v312
    %v596 = vpop.f32.mrf.mxu0
    %v597 = vadd.f32 %v270, %v596
    %598 = vmatmul.f32.gmra.mxu0 %v315
    %v599 = vpop.f32.mrf.mxu0
    %v600 = vadd.f32 %v270, %v599
    %601 = vmatmul.f32.gmra.mxu0 %v318
    %v602 = vpop.f32.mrf.mxu0
    %v603 = vadd.f32 %v270, %v602
    %604 = vmatmul.f32.gmra.mxu0 %v321
    %v605 = vpop.f32.mrf.mxu0
    %v606 = vadd.f32 %v270, %v605
    %607 = vmatmul.f32.gmra.mxu0 %v324
    %v608 = vpop.f32.mrf.mxu0
    %v609 = vadd.f32 %v270, %v608
    %610 = vmatmul.f32.gmra.mxu0 %v327
    %v611 = vpop.f32.mrf.mxu0
    %v612 = vadd.f32 %v270, %v611
    %613 = vmatmul.f32.gmra.mxu0 %v330
    %v614 = vpop.f32.mrf.mxu0
    %v615 = vadd.f32 %v270, %v614
    %616 = vdwg.mxu0
    %617 = vmatpush.msra.mxu0 0.0
    %618 = vmatpush.msra.mxu0 0.0
    %619 = vmatpush.msra.mxu0 0.0
    %620 = vmatpush.msra.mxu0 0.0
    %621 = vmatpush.msra.mxu0 0.0
    %622 = vmatpush.msra.mxu0 0.0
    %623 = vmatpush.msra.mxu0 0.0
    %624 = vmatpush.msra.mxu0 0.0
    %625 = vmatpush.msra.mxu0 0.0
    %626 = vmatpush.msra.mxu0 0.0
    %627 = vmatpush.msra.mxu0 0.0
    %628 = vmatpush.msra.mxu0 0.0
    %629 = vmatpush.msra.mxu0 %v346
    %630 = vmatpush.msra.mxu0 %v253
    %631 = vmatpush.msra.mxu0 %v245
    %632 = vmatpush.msra.mxu0 %v237
    %633 = vmatmul.f32.gmra.mxu0 %v285
    %v634 = vpop.f32.mrf.mxu0
    %v635 = vadd.f32 %v271, %v634
    %636 = vmatmul.f32.gmra.mxu0 %v288
    %v637 = vpop.f32.mrf.mxu0
    %v638 = vadd.f32 %v271, %v637
    %639 = vmatmul.f32.gmra.mxu0 %v291
    %v640 = vpop.f32.mrf.mxu0
    %v641 = vadd.f32 %v271, %v640
    %642 = vmatmul.f32.gmra.mxu0 %v294
    %v643 = vpop.f32.mrf.mxu0
    %v644 = vadd.f32 %v271, %v643
    %645 = vmatmul.f32.gmra.mxu0 %v297
    %v646 = vpop.f32.mrf.mxu0
    %v647 = vadd.f32 %v271, %v646
    %648 = vmatmul.f32.gmra.mxu0 %v300
    %v649 = vpop.f32.mrf.mxu0
    %v650 = vadd.f32 %v271, %v649
    %651 = vmatmul.f32.gmra.mxu0 %v303
    %v652 = vpop.f32.mrf.mxu0
    %v653 = vadd.f32 %v271, %v652
    %654 = vmatmul.f32.gmra.mxu0 %v306
    %v655 = vpop.f32.mrf.mxu0
    %v656 = vadd.f32 %v271, %v655
    %657 = vmatmul.f32.gmra.mxu0 %v309
    %v658 = vpop.f32.mrf.mxu0
    %v659 = vadd.f32 %v271, %v658
    %660 = vmatmul.f32.gmra.mxu0 %v312
    %v661 = vpop.f32.mrf.mxu0
    %v662 = vadd.f32 %v271, %v661
    %663 = vmatmul.f32.gmra.mxu0 %v315
    %v664 = vpop.f32.mrf.mxu0
    %v665 = vadd.f32 %v271, %v664
    %666 = vmatmul.f32.gmra.mxu0 %v318
    %v667 = vpop.f32.mrf.mxu0
    %v668 = vadd.f32 %v271, %v667
    %669 = vmatmul.f32.gmra.mxu0 %v321
    %v670 = vpop.f32.mrf.mxu0
    %v671 = vadd.f32 %v271, %v670
    %672 = vmatmul.f32.gmra.mxu0 %v324
    %v673 = vpop.f32.mrf.mxu0
    %v674 = vadd.f32 %v271, %v673
    %675 = vmatmul.f32.gmra.mxu0 %v327
    %v676 = vpop.f32.mrf.mxu0
    %v677 = vadd.f32 %v271, %v676
    %678 = vmatmul.f32.gmra.mxu0 %v330
    %v679 = vpop.f32.mrf.mxu0
    %v680 = vadd.f32 %v271, %v679
    %681 = vdwg.mxu0
    %682 = vmatpush.msra.mxu0 0.0
    %683 = vmatpush.msra.mxu0 0.0
    %684 = vmatpush.msra.mxu0 0.0
    %685 = vmatpush.msra.mxu0 0.0
    %686 = vmatpush.msra.mxu0 0.0
    %687 = vmatpush.msra.mxu0 0.0
    %688 = vmatpush.msra.mxu0 0.0
    %689 = vmatpush.msra.mxu0 0.0
    %690 = vmatpush.msra.mxu0 0.0
    %691 = vmatpush.msra.mxu0 0.0
    %692 = vmatpush.msra.mxu0 0.0
    %693 = vmatpush.msra.mxu0 0.0
    %694 = vmatpush.msra.mxu0 %v349
    %695 = vmatpush.msra.mxu0 %v254
    %696 = vmatpush.msra.mxu0 %v246
    %697 = vmatpush.msra.mxu0 %v238
    %698 = vmatmul.f32.gmra.mxu0 %v285
    %v699 = vpop.f32.mrf.mxu0
    %v700 = vadd.f32 %v272, %v699
    %701 = vmatmul.f32.gmra.mxu0 %v288
    %v702 = vpop.f32.mrf.mxu0
    %v703 = vadd.f32 %v272, %v702
    %704 = vmatmul.f32.gmra.mxu0 %v291
    %v705 = vpop.f32.mrf.mxu0
    %v706 = vadd.f32 %v272, %v705
    %707 = vmatmul.f32.gmra.mxu0 %v294
    %v708 = vpop.f32.mrf.mxu0
    %v709 = vadd.f32 %v272, %v708
    %710 = vmatmul.f32.gmra.mxu0 %v297
    %v711 = vpop.f32.mrf.mxu0
    %v712 = vadd.f32 %v272, %v711
    %713 = vmatmul.f32.gmra.mxu0 %v300
    %v714 = vpop.f32.mrf.mxu0
    %v715 = vadd.f32 %v272, %v714
    %716 = vmatmul.f32.gmra.mxu0 %v303
    %v717 = vpop.f32.mrf.mxu0
    %v718 = vadd.f32 %v272, %v717
    %719 = vmatmul.f32.gmra.mxu0 %v306
    %v720 = vpop.f32.mrf.mxu0
    %v721 = vadd.f32 %v272, %v720
    %722 = vmatmul.f32.gmra.mxu0 %v309
    %v723 = vpop.f32.mrf.mxu0
    %v724 = vadd.f32 %v272, %v723
    %725 = vmatmul.f32.gmra.mxu0 %v312
    %v726 = vpop.f32.mrf.mxu0
    %v727 = vadd.f32 %v272, %v726
    %728 = vmatmul.f32.gmra.mxu0 %v315
    %v729 = vpop.f32.mrf.mxu0
    %v730 = vadd.f32 %v272, %v729
    %731 = vmatmul.f32.gmra.mxu0 %v318
    %v732 = vpop.f32.mrf.mxu0
    %v733 = vadd.f32 %v272, %v732
    %734 = vmatmul.f32.gmra.mxu0 %v321
    %v735 = vpop.f32.mrf.mxu0
    %v736 = vadd.f32 %v272, %v735
    %737 = vmatmul.f32.gmra.mxu0 %v324
    %v738 = vpop.f32.mrf.mxu0
    %v739 = vadd.f32 %v272, %v738
    %740 = vmatmul.f32.gmra.mxu0 %v327
    %v741 = vpop.f32.mrf.mxu0
    %v742 = vadd.f32 %v272, %v741
    %743 = vmatmul.f32.gmra.mxu0 %v330
    %v744 = vpop.f32.mrf.mxu0
    %v745 = vadd.f32 %v272, %v744
    %746 = vdwg.mxu0
    %747 = vmatpush.msra.mxu0 0.0
    %748 = vmatpush.msra.mxu0 0.0
    %749 = vmatpush.msra.mxu0 0.0
    %750 = vmatpush.msra.mxu0 0.0
    %751 = vmatpush.msra.mxu0 0.0
    %752 = vmatpush.msra.mxu0 0.0
    %753 = vmatpush.msra.mxu0 0.0
    %754 = vmatpush.msra.mxu0 0.0
    %755 = vmatpush.msra.mxu0 0.0
    %756 = vmatpush.msra.mxu0 0.0
    %757 = vmatpush.msra.mxu0 0.0
    %758 = vmatpush.msra.mxu0 0.0
    %759 = vmatpush.msra.mxu0 %v352
    %760 = vmatpush.msra.mxu0 %v255
    %761 = vmatpush.msra.mxu0 %v247
    %762 = vmatpush.msra.mxu0 %v239
    %763 = vmatmul.f32.gmra.mxu0 %v285
    %v764 = vpop.f32.mrf.mxu0
    %v765 = vadd.f32 %v273, %v764
    %766 = vmatmul.f32.gmra.mxu0 %v288
    %v767 = vpop.f32.mrf.mxu0
    %v768 = vadd.f32 %v273, %v767
    %769 = vmatmul.f32.gmra.mxu0 %v291
    %v770 = vpop.f32.mrf.mxu0
    %v771 = vadd.f32 %v273, %v770
    %772 = vmatmul.f32.gmra.mxu0 %v294
    %v773 = vpop.f32.mrf.mxu0
    %v774 = vadd.f32 %v273, %v773
    %775 = vmatmul.f32.gmra.mxu0 %v297
    %v776 = vpop.f32.mrf.mxu0
    %v777 = vadd.f32 %v273, %v776
    %778 = vmatmul.f32.gmra.mxu0 %v300
    %v779 = vpop.f32.mrf.mxu0
    %v780 = vadd.f32 %v273, %v779
    %781 = vmatmul.f32.gmra.mxu0 %v303
    %v782 = vpop.f32.mrf.mxu0
    %v783 = vadd.f32 %v273, %v782
    %784 = vmatmul.f32.gmra.mxu0 %v306
    %v785 = vpop.f32.mrf.mxu0
    %v786 = vadd.f32 %v273, %v785
    %787 = vmatmul.f32.gmra.mxu0 %v309
    %v788 = vpop.f32.mrf.mxu0
    %v789 = vadd.f32 %v273, %v788
    %790 = vmatmul.f32.gmra.mxu0 %v312
    %v791 = vpop.f32.mrf.mxu0
    %v792 = vadd.f32 %v273, %v791
    %793 = vmatmul.f32.gmra.mxu0 %v315
    %v794 = vpop.f32.mrf.mxu0
    %v795 = vadd.f32 %v273, %v794
    %796 = vmatmul.f32.gmra.mxu0 %v318
    %v797 = vpop.f32.mrf.mxu0
    %v798 = vadd.f32 %v273, %v797
    %799 = vmatmul.f32.gmra.mxu0 %v321
    %v800 = vpop.f32.mrf.mxu0
    %v801 = vadd.f32 %v273, %v800
    %802 = vmatmul.f32.gmra.mxu0 %v324
    %v803 = vpop.f32.mrf.mxu0
    %v804 = vadd.f32 %v273, %v803
    %805 = vmatmul.f32.gmra.mxu0 %v327
    %v806 = vpop.f32.mrf.mxu0
    %v807 = vadd.f32 %v273, %v806
    %808 = vmatmul.f32.gmra.mxu0 %v330
    %v809 = vpop.f32.mrf.mxu0
    %v810 = vadd.f32 %v273, %v809
    %811 = vdwg.mxu0
    %812 = vmatpush.msra.mxu0 0.0
    %813 = vmatpush.msra.mxu0 0.0
    %814 = vmatpush.msra.mxu0 0.0
    %815 = vmatpush.msra.mxu0 0.0
    %816 = vmatpush.msra.mxu0 0.0
    %817 = vmatpush.msra.mxu0 0.0
    %818 = vmatpush.msra.mxu0 0.0
    %819 = vmatpush.msra.mxu0 0.0
    %820 = vmatpush.msra.mxu0 0.0
    %821 = vmatpush.msra.mxu0 0.0
    %822 = vmatpush.msra.mxu0 0.0
    %823 = vmatpush.msra.mxu0 0.0
    %824 = vmatpush.msra.mxu0 %v355
    %825 = vmatpush.msra.mxu0 %v256
    %826 = vmatpush.msra.mxu0 %v248
    %827 = vmatpush.msra.mxu0 %v240
    %828 = vmatmul.f32.gmra.mxu0 %v285
    %v829 = vpop.f32.mrf.mxu0
    %v830 = vadd.f32 %v274, %v829
    %831 = vmatmul.f32.gmra.mxu0 %v288
    %v832 = vpop.f32.mrf.mxu0
    %v833 = vadd.f32 %v274, %v832
    %834 = vmatmul.f32.gmra.mxu0 %v291
    %v835 = vpop.f32.mrf.mxu0
    %v836 = vadd.f32 %v274, %v835
    %837 = vmatmul.f32.gmra.mxu0 %v294
    %v838 = vpop.f32.mrf.mxu0
    %v839 = vadd.f32 %v274, %v838
    %840 = vmatmul.f32.gmra.mxu0 %v297
    %v841 = vpop.f32.mrf.mxu0
    %v842 = vadd.f32 %v274, %v841
    %843 = vmatmul.f32.gmra.mxu0 %v300
    %v844 = vpop.f32.mrf.mxu0
    %v845 = vadd.f32 %v274, %v844
    %846 = vmatmul.f32.gmra.mxu0 %v303
    %v847 = vpop.f32.mrf.mxu0
    %v848 = vadd.f32 %v274, %v847
    %849 = vmatmul.f32.gmra.mxu0 %v306
    %v850 = vpop.f32.mrf.mxu0
    %v851 = vadd.f32 %v274, %v850
    %852 = vmatmul.f32.gmra.mxu0 %v309
    %v853 = vpop.f32.mrf.mxu0
    %v854 = vadd.f32 %v274, %v853
    %855 = vmatmul.f32.gmra.mxu0 %v312
    %v856 = vpop.f32.mrf.mxu0
    %v857 = vadd.f32 %v274, %v856
    %858 = vmatmul.f32.gmra.mxu0 %v315
    %v859 = vpop.f32.mrf.mxu0
    %v860 = vadd.f32 %v274, %v859
    %861 = vmatmul.f32.gmra.mxu0 %v318
    %v862 = vpop.f32.mrf.mxu0
    %v863 = vadd.f32 %v274, %v862
    %864 = vmatmul.f32.gmra.mxu0 %v321
    %v865 = vpop.f32.mrf.mxu0
    %v866 = vadd.f32 %v274, %v865
    %867 = vmatmul.f32.gmra.mxu0 %v324
    %v868 = vpop.f32.mrf.mxu0
    %v869 = vadd.f32 %v274, %v868
    %870 = vmatmul.f32.gmra.mxu0 %v327
    %v871 = vpop.f32.mrf.mxu0
    %v872 = vadd.f32 %v274, %v871
    %873 = vmatmul.f32.gmra.mxu0 %v330
    %v874 = vpop.f32.mrf.mxu0
    %v875 = vadd.f32 %v274, %v874
    %876 = vdwg.mxu0
    %v877 = vmax.f32 %v375, 0.0
    %v878 = vmax.f32 %v440, 0.0
    %v879 = vmax.f32 %v505, 0.0
    %v880 = vmax.f32 %v570, 0.0
    %v881 = vmax.f32 %v635, 0.0
    %v882 = vmax.f32 %v700, 0.0
    %v883 = vmax.f32 %v765, 0.0
    %v884 = vmax.f32 %v830, 0.0
    %v885 = vmax.f32 %v378, 0.0
    %v886 = vmax.f32 %v443, 0.0
    %v887 = vmax.f32 %v508, 0.0
    %v888 = vmax.f32 %v573, 0.0
    %v889 = vmax.f32 %v638, 0.0
    %v890 = vmax.f32 %v703, 0.0
    %v891 = vmax.f32 %v768, 0.0
    %v892 = vmax.f32 %v833, 0.0
    %v893 = vmax.f32 %v381, 0.0
    %v894 = vmax.f32 %v446, 0.0
    %v895 = vmax.f32 %v511, 0.0
    %v896 = vmax.f32 %v576, 0.0
    %v897 = vmax.f32 %v641, 0.0
    %v898 = vmax.f32 %v706, 0.0
    %v899 = vmax.f32 %v771, 0.0
    %v900 = vmax.f32 %v836, 0.0
    %v901 = vmax.f32 %v384, 0.0
    %v902 = vmax.f32 %v449, 0.0
    %v903 = vmax.f32 %v514, 0.0
    %v904 = vmax.f32 %v579, 0.0
    %v905 = vmax.f32 %v644, 0.0
    %v906 = vmax.f32 %v709, 0.0
    %v907 = vmax.f32 %v774, 0.0
    %v908 = vmax.f32 %v839, 0.0
    %v909 = vmax.f32 %v387, 0.0
    %v910 = vmax.f32 %v452, 0.0
    %v911 = vmax.f32 %v517, 0.0
    %v912 = vmax.f32 %v582, 0.0
    %v913 = vmax.f32 %v647, 0.0
    %v914 = vmax.f32 %v712, 0.0
    %v915 = vmax.f32 %v777, 0.0
    %v916 = vmax.f32 %v842, 0.0
    %v917 = vmax.f32 %v390, 0.0
    %v918 = vmax.f32 %v455, 0.0
    %v919 = vmax.f32 %v520, 0.0
    %v920 = vmax.f32 %v585, 0.0
    %v921 = vmax.f32 %v650, 0.0
    %v922 = vmax.f32 %v715, 0.0
    %v923 = vmax.f32 %v780, 0.0
    %v924 = vmax.f32 %v845, 0.0
    %v925 = vmax.f32 %v393, 0.0
    %v926 = vmax.f32 %v458, 0.0
    %v927 = vmax.f32 %v523, 0.0
    %v928 = vmax.f32 %v588, 0.0
    %v929 = vmax.f32 %v653, 0.0
    %v930 = vmax.f32 %v718, 0.0
    %v931 = vmax.f32 %v783, 0.0
    %v932 = vmax.f32 %v848, 0.0
    %v933 = vmax.f32 %v396, 0.0
    %v934 = vmax.f32 %v461, 0.0
    %v935 = vmax.f32 %v526, 0.0
    %v936 = vmax.f32 %v591, 0.0
    %v937 = vmax.f32 %v656, 0.0
    %v938 = vmax.f32 %v721, 0.0
    %v939 = vmax.f32 %v786, 0.0
    %v940 = vmax.f32 %v851, 0.0
    %v941 = vmax.f32 %v399, 0.0
    %v942 = vmax.f32 %v464, 0.0
    %v943 = vmax.f32 %v529, 0.0
    %v944 = vmax.f32 %v594, 0.0
    %v945 = vmax.f32 %v659, 0.0
    %v946 = vmax.f32 %v724, 0.0
    %v947 = vmax.f32 %v789, 0.0
    %v948 = vmax.f32 %v854, 0.0
    %v949 = vmax.f32 %v402, 0.0
    %v950 = vmax.f32 %v467, 0.0
    %v951 = vmax.f32 %v532, 0.0
    %v952 = vmax.f32 %v597, 0.0
    %v953 = vmax.f32 %v662, 0.0
    %v954 = vmax.f32 %v727, 0.0
    %v955 = vmax.f32 %v792, 0.0
    %v956 = vmax.f32 %v857, 0.0
    %v957 = vmax.f32 %v405, 0.0
    %v958 = vmax.f32 %v470, 0.0
    %v959 = vmax.f32 %v535, 0.0
    %v960 = vmax.f32 %v600, 0.0
    %v961 = vmax.f32 %v665, 0.0
    %v962 = vmax.f32 %v730, 0.0
    %v963 = vmax.f32 %v795, 0.0
    %v964 = vmax.f32 %v860, 0.0
    %v965 = vmax.f32 %v408, 0.0
    %v966 = vmax.f32 %v473, 0.0
    %v967 = vmax.f32 %v538, 0.0
    %v968 = vmax.f32 %v603, 0.0
    %v969 = vmax.f32 %v668, 0.0
    %v970 = vmax.f32 %v733, 0.0
    %v971 = vmax.f32 %v798, 0.0
    %v972 = vmax.f32 %v863, 0.0
    %v973 = vmax.f32 %v411, 0.0
    %v974 = vmax.f32 %v476, 0.0
    %v975 = vmax.f32 %v541, 0.0
    %v976 = vmax.f32 %v606, 0.0
    %v977 = vmax.f32 %v671, 0.0
    %v978 = vmax.f32 %v736, 0.0
    %v979 = vmax.f32 %v801, 0.0
    %v980 = vmax.f32 %v866, 0.0
    %v981 = vmax.f32 %v414, 0.0
    %v982 = vmax.f32 %v479, 0.0
    %v983 = vmax.f32 %v544, 0.0
    %v984 = vmax.f32 %v609, 0.0
    %v985 = vmax.f32 %v674, 0.0
    %v986 = vmax.f32 %v739, 0.0
    %v987 = vmax.f32 %v804, 0.0
    %v988 = vmax.f32 %v869, 0.0
    %v989 = vmax.f32 %v417, 0.0
    %v990 = vmax.f32 %v482, 0.0
    %v991 = vmax.f32 %v547, 0.0
    %v992 = vmax.f32 %v612, 0.0
    %v993 = vmax.f32 %v677, 0.0
    %v994 = vmax.f32 %v742, 0.0
    %v995 = vmax.f32 %v807, 0.0
    %v996 = vmax.f32 %v872, 0.0
    %v997 = vmax.f32 %v420, 0.0
    %v998 = vmax.f32 %v485, 0.0
    %v999 = vmax.f32 %v550, 0.0
    %v1000 = vmax.f32 %v615, 0.0
    %v1001 = vmax.f32 %v680, 0.0
    %v1002 = vmax.f32 %v745, 0.0
    %v1003 = vmax.f32 %v810, 0.0
    %v1004 = vmax.f32 %v875, 0.0
    %v1005 = vld [vmem:[#allocation4] sm:$0xff]
    %v1006 = vld [vmem:[#allocation4 + $0x8] sm:$0xff]
    %v1007 = vld [vmem:[#allocation4 + $0x10] sm:$0xff]
    %v1008 = vld [vmem:[#allocation4 + $0x18] sm:$0xff]
    %v1009 = vld [vmem:[#allocation4 + $0x20] sm:$0xff]
    %v1010 = vld [vmem:[#allocation4 + $0x28] sm:$0xff]
    %v1011 = vld [vmem:[#allocation4 + $0x30] sm:$0xff]
    %v1012 = vld [vmem:[#allocation4 + $0x38] sm:$0xff]
    %v1013 = vld [vmem:[#allocation4 + $0x40] sm:$0xff]
    %v1014 = vld [vmem:[#allocation4 + $0x48] sm:$0xff]
    %v1015 = vld [vmem:[#allocation4 + $0x50] sm:$0xff]
    %v1016 = vld [vmem:[#allocation4 + $0x58] sm:$0xff]
    %v1017 = vld [vmem:[#allocation4 + $0x60] sm:$0xff]
    %v1018 = vld [vmem:[#allocation4 + $0x68] sm:$0xff]
    %v1019 = vld [vmem:[#allocation4 + $0x70] sm:$0xff]
    %v1020 = vld [vmem:[#allocation4 + $0x78] sm:$0xff]
    %v1021 = vld [vmem:[#allocation4 + $0x80] sm:$0xff]
    %v1022 = vld [vmem:[#allocation4 + $0x88] sm:$0xff]
    %v1023 = vld [vmem:[#allocation4 + $0x90] sm:$0xff]
    %v1024 = vld [vmem:[#allocation4 + $0x98] sm:$0xff]
    %v1025 = vld [vmem:[#allocation4 + $0xa0] sm:$0xff]
    %v1026 = vld [vmem:[#allocation4 + $0xa8] sm:$0xff]
    %v1027 = vld [vmem:[#allocation4 + $0xb0] sm:$0xff]
    %v1028 = vld [vmem:[#allocation4 + $0xb8] sm:$0xff]
    %v1029 = vld [vmem:[#allocation4 + $0xc0] sm:$0xff]
    %v1030 = vld [vmem:[#allocation4 + $0xc8] sm:$0xff]
    %v1031 = vld [vmem:[#allocation4 + $0xd0] sm:$0xff]
    %v1032 = vld [vmem:[#allocation4 + $0xd8] sm:$0xff]
    %v1033 = vld [vmem:[#allocation4 + $0xe0] sm:$0xff]
    %v1034 = vld [vmem:[#allocation4 + $0xe8] sm:$0xff]
    %v1035 = vld [vmem:[#allocation4 + $0xf0] sm:$0xff]
    %v1036 = vld [vmem:[#allocation4 + $0xf8] sm:$0xff]
    %v1037 = vld [vmem:[#allocation4 + $0x100] sm:$0xff]
    %v1038 = vld [vmem:[#allocation4 + $0x108] sm:$0xff]
    %v1039 = vld [vmem:[#allocation4 + $0x110] sm:$0xff]
    %v1040 = vld [vmem:[#allocation4 + $0x118] sm:$0xff]
    %v1041 = vld [vmem:[#allocation4 + $0x120] sm:$0xff]
    %v1042 = vld [vmem:[#allocation4 + $0x128] sm:$0xff]
    %v1043 = vld [vmem:[#allocation4 + $0x130] sm:$0xff]
    %v1044 = vld [vmem:[#allocation4 + $0x138] sm:$0xff]
    %v1045 = vld [vmem:[#allocation4 + $0x140] sm:$0xff]
    %v1046 = vld [vmem:[#allocation4 + $0x148] sm:$0xff]
    %v1047 = vld [vmem:[#allocation4 + $0x150] sm:$0xff]
    %v1048 = vld [vmem:[#allocation4 + $0x158] sm:$0xff]
    %v1049 = vld [vmem:[#allocation4 + $0x160] sm:$0xff]
    %v1050 = vld [vmem:[#allocation4 + $0x168] sm:$0xff]
    %v1051 = vld [vmem:[#allocation4 + $0x170] sm:$0xff]
    %v1052 = vld [vmem:[#allocation4 + $0x178] sm:$0xff]
    %v1053 = vld [vmem:[#allocation4 + $0x180] sm:$0xff]
    %v1054 = vld [vmem:[#allocation4 + $0x188] sm:$0xff]
    %v1055 = vld [vmem:[#allocation4 + $0x190] sm:$0xff]
    %v1056 = vld [vmem:[#allocation4 + $0x198] sm:$0xff]
    %v1057 = vld [vmem:[#allocation4 + $0x1a0] sm:$0xff]
    %v1058 = vld [vmem:[#allocation4 + $0x1a8] sm:$0xff]
    %v1059 = vld [vmem:[#allocation4 + $0x1b0] sm:$0xff]
    %v1060 = vld [vmem:[#allocation4 + $0x1b8] sm:$0xff]
    %v1061 = vld [vmem:[#allocation4 + $0x1c0] sm:$0xff]
    %v1062 = vld [vmem:[#allocation4 + $0x1c8] sm:$0xff]
    %v1063 = vld [vmem:[#allocation4 + $0x1d0] sm:$0xff]
    %v1064 = vld [vmem:[#allocation4 + $0x1d8] sm:$0xff]
    %v1065 = vld [vmem:[#allocation4 + $0x1e0] sm:$0xff]
    %v1066 = vld [vmem:[#allocation4 + $0x1e8] sm:$0xff]
    %v1067 = vld [vmem:[#allocation4 + $0x1f0] sm:$0xff]
    %v1068 = vld [vmem:[#allocation4 + $0x1f8] sm:$0xff]
    %v1069 = vld [vmem:[#allocation4 + $0x200] sm:$0xff]
    %v1070 = vld [vmem:[#allocation4 + $0x208] sm:$0xff]
    %v1071 = vld [vmem:[#allocation4 + $0x210] sm:$0xff]
    %v1072 = vld [vmem:[#allocation4 + $0x218] sm:$0xff]
    %v1073 = vld [vmem:[#allocation4 + $0x220] sm:$0xff]
    %v1074 = vld [vmem:[#allocation4 + $0x228] sm:$0xff]
    %v1075 = vld [vmem:[#allocation4 + $0x230] sm:$0xff]
    %v1076 = vld [vmem:[#allocation4 + $0x238] sm:$0xff]
    %v1077 = vld [vmem:[#allocation4 + $0x240] sm:$0xff]
    %v1078 = vld [vmem:[#allocation4 + $0x248] sm:$0xff]
    %v1079 = vld [vmem:[#allocation4 + $0x250] sm:$0xff]
    %v1080 = vld [vmem:[#allocation4 + $0x258] sm:$0xff]
    %v1081 = vld [vmem:[#allocation4 + $0x260] sm:$0xff]
    %v1082 = vld [vmem:[#allocation4 + $0x268] sm:$0xff]
    %v1083 = vld [vmem:[#allocation4 + $0x270] sm:$0xff]
    %v1084 = vld [vmem:[#allocation4 + $0x278] sm:$0xff]
    %v1085 = vld [vmem:[#allocation4 + $0x280] sm:$0xff]
    %v1086 = vld [vmem:[#allocation4 + $0x288] sm:$0xff]
    %v1087 = vld [vmem:[#allocation4 + $0x290] sm:$0xff]
    %v1088 = vld [vmem:[#allocation4 + $0x298] sm:$0xff]
    %v1089 = vld [vmem:[#allocation4 + $0x2a0] sm:$0xff]
    %v1090 = vld [vmem:[#allocation4 + $0x2a8] sm:$0xff]
    %v1091 = vld [vmem:[#allocation4 + $0x2b0] sm:$0xff]
    %v1092 = vld [vmem:[#allocation4 + $0x2b8] sm:$0xff]
    %v1093 = vld [vmem:[#allocation4 + $0x2c0] sm:$0xff]
    %v1094 = vld [vmem:[#allocation4 + $0x2c8] sm:$0xff]
    %v1095 = vld [vmem:[#allocation4 + $0x2d0] sm:$0xff]
    %v1096 = vld [vmem:[#allocation4 + $0x2d8] sm:$0xff]
    %v1097 = vld [vmem:[#allocation4 + $0x2e0] sm:$0xff]
    %v1098 = vld [vmem:[#allocation4 + $0x2e8] sm:$0xff]
    %v1099 = vld [vmem:[#allocation4 + $0x2f0] sm:$0xff]
    %v1100 = vld [vmem:[#allocation4 + $0x2f8] sm:$0xff]
    %v1101 = vld [vmem:[#allocation4 + $0x300] sm:$0xff]
    %v1102 = vld [vmem:[#allocation4 + $0x308] sm:$0xff]
    %v1103 = vld [vmem:[#allocation4 + $0x310] sm:$0xff]
    %v1104 = vld [vmem:[#allocation4 + $0x318] sm:$0xff]
    %v1105 = vld [vmem:[#allocation4 + $0x320] sm:$0xff]
    %v1106 = vld [vmem:[#allocation4 + $0x328] sm:$0xff]
    %v1107 = vld [vmem:[#allocation4 + $0x330] sm:$0xff]
    %v1108 = vld [vmem:[#allocation4 + $0x338] sm:$0xff]
    %v1109 = vld [vmem:[#allocation4 + $0x340] sm:$0xff]
    %v1110 = vld [vmem:[#allocation4 + $0x348] sm:$0xff]
    %v1111 = vld [vmem:[#allocation4 + $0x350] sm:$0xff]
    %v1112 = vld [vmem:[#allocation4 + $0x358] sm:$0xff]
    %v1113 = vld [vmem:[#allocation4 + $0x360] sm:$0xff]
    %v1114 = vld [vmem:[#allocation4 + $0x368] sm:$0xff]
    %v1115 = vld [vmem:[#allocation4 + $0x370] sm:$0xff]
    %v1116 = vld [vmem:[#allocation4 + $0x378] sm:$0xff]
    %v1117 = vld [vmem:[#allocation4 + $0x380] sm:$0xff]
    %v1118 = vld [vmem:[#allocation4 + $0x388] sm:$0xff]
    %v1119 = vld [vmem:[#allocation4 + $0x390] sm:$0xff]
    %v1120 = vld [vmem:[#allocation4 + $0x398] sm:$0xff]
    %v1121 = vld [vmem:[#allocation4 + $0x3a0] sm:$0xff]
    %v1122 = vld [vmem:[#allocation4 + $0x3a8] sm:$0xff]
    %v1123 = vld [vmem:[#allocation4 + $0x3b0] sm:$0xff]
    %v1124 = vld [vmem:[#allocation4 + $0x3b8] sm:$0xff]
    %v1125 = vld [vmem:[#allocation4 + $0x3c0] sm:$0xff]
    %v1126 = vld [vmem:[#allocation4 + $0x3c8] sm:$0xff]
    %v1127 = vld [vmem:[#allocation4 + $0x3d0] sm:$0xff]
    %v1128 = vld [vmem:[#allocation4 + $0x3d8] sm:$0xff]
    %v1129 = vld [vmem:[#allocation4 + $0x3e0] sm:$0xff]
    %v1130 = vld [vmem:[#allocation4 + $0x3e8] sm:$0xff]
    %v1131 = vld [vmem:[#allocation4 + $0x3f0] sm:$0xff]
    %v1132 = vld [vmem:[#allocation4 + $0x3f8] sm:$0xff]
    %v1133 = vld [vmem:[%s5] sm:$0x3]
    %v1135 = vperm.slane %v1133, 0
    %v1136 = vperm.slane %v1133, 1
    %1139 = vmatpush.msra.mxu0 %v1035
    %1140 = vmatpush.msra.mxu0 %v1033
    %1141 = vmatpush.msra.mxu0 %v1031
    %1142 = vmatpush.msra.mxu0 %v1029
    %1143 = vmatpush.msra.mxu0 %v1027
    %1144 = vmatpush.msra.mxu0 %v1025
    %1145 = vmatpush.msra.mxu0 %v1023
    %1146 = vmatpush.msra.mxu0 %v1021
    %1147 = vmatpush.msra.mxu0 %v1019
    %1148 = vmatpush.msra.mxu0 %v1017
    %1149 = vmatpush.msra.mxu0 %v1015
    %1150 = vmatpush.msra.mxu0 %v1013
    %1151 = vmatpush.msra.mxu0 %v1011
    %1152 = vmatpush.msra.mxu0 %v1009
    %1153 = vmatpush.msra.mxu0 %v1007
    %1154 = vmatpush.msra.mxu0 %v1005
    %1155 = vmatmul.f32.gmra.mxu0 %v877
    %v1156 = vpop.f32.mrf.mxu0
    %v1157 = vadd.f32 %v1135, %v1156
    %1158 = vmatmul.f32.gmra.mxu0 %v885
    %v1159 = vpop.f32.mrf.mxu0
    %v1160 = vadd.f32 %v1135, %v1159
    %1161 = vmatmul.f32.gmra.mxu0 %v893
    %v1162 = vpop.f32.mrf.mxu0
    %v1163 = vadd.f32 %v1135, %v1162
    %1164 = vmatmul.f32.gmra.mxu0 %v901
    %v1165 = vpop.f32.mrf.mxu0
    %v1166 = vadd.f32 %v1135, %v1165
    %1167 = vmatmul.f32.gmra.mxu0 %v909
    %v1168 = vpop.f32.mrf.mxu0
    %v1169 = vadd.f32 %v1135, %v1168
    %1170 = vmatmul.f32.gmra.mxu0 %v917
    %v1171 = vpop.f32.mrf.mxu0
    %v1172 = vadd.f32 %v1135, %v1171
    %1173 = vmatmul.f32.gmra.mxu0 %v925
    %v1174 = vpop.f32.mrf.mxu0
    %v1175 = vadd.f32 %v1135, %v1174
    %1176 = vmatmul.f32.gmra.mxu0 %v933
    %v1177 = vpop.f32.mrf.mxu0
    %v1178 = vadd.f32 %v1135, %v1177
    %1179 = vmatmul.f32.gmra.mxu0 %v941
    %v1180 = vpop.f32.mrf.mxu0
    %v1181 = vadd.f32 %v1135, %v1180
    %1182 = vmatmul.f32.gmra.mxu0 %v949
    %v1183 = vpop.f32.mrf.mxu0
    %v1184 = vadd.f32 %v1135, %v1183
    %1185 = vmatmul.f32.gmra.mxu0 %v957
    %v1186 = vpop.f32.mrf.mxu0
    %v1187 = vadd.f32 %v1135, %v1186
    %1188 = vmatmul.f32.gmra.mxu0 %v965
    %v1189 = vpop.f32.mrf.mxu0
    %v1190 = vadd.f32 %v1135, %v1189
    %1191 = vmatmul.f32.gmra.mxu0 %v973
    %v1192 = vpop.f32.mrf.mxu0
    %v1193 = vadd.f32 %v1135, %v1192
    %1194 = vmatmul.f32.gmra.mxu0 %v981
    %v1195 = vpop.f32.mrf.mxu0
    %v1196 = vadd.f32 %v1135, %v1195
    %1197 = vmatmul.f32.gmra.mxu0 %v989
    %v1198 = vpop.f32.mrf.mxu0
    %v1199 = vadd.f32 %v1135, %v1198
    %1200 = vmatmul.f32.gmra.mxu0 %v997
    %v1201 = vpop.f32.mrf.mxu0
    %v1202 = vadd.f32 %v1135, %v1201
    %1203 = vdwg.mxu0
    %1204 = vmatpush.msra.mxu0 %v1067
    %1205 = vmatpush.msra.mxu0 %v1065
    %1206 = vmatpush.msra.mxu0 %v1063
    %1207 = vmatpush.msra.mxu0 %v1061
    %1208 = vmatpush.msra.mxu0 %v1059
    %1209 = vmatpush.msra.mxu0 %v1057
    %1210 = vmatpush.msra.mxu0 %v1055
    %1211 = vmatpush.msra.mxu0 %v1053
    %1212 = vmatpush.msra.mxu0 %v1051
    %1213 = vmatpush.msra.mxu0 %v1049
    %1214 = vmatpush.msra.mxu0 %v1047
    %1215 = vmatpush.msra.mxu0 %v1045
    %1216 = vmatpush.msra.mxu0 %v1043
    %1217 = vmatpush.msra.mxu0 %v1041
    %1218 = vmatpush.msra.mxu0 %v1039
    %1219 = vmatpush.msra.mxu0 %v1037
    %1220 = vmatmul.f32.gmra.mxu0 %v878
    %v1221 = vpop.f32.mrf.mxu0
    %v1222 = vadd.f32 %v1157, %v1221
    %1223 = vmatmul.f32.gmra.mxu0 %v886
    %v1224 = vpop.f32.mrf.mxu0
    %v1225 = vadd.f32 %v1160, %v1224
    %1226 = vmatmul.f32.gmra.mxu0 %v894
    %v1227 = vpop.f32.mrf.mxu0
    %v1228 = vadd.f32 %v1163, %v1227
    %1229 = vmatmul.f32.gmra.mxu0 %v902
    %v1230 = vpop.f32.mrf.mxu0
    %v1231 = vadd.f32 %v1166, %v1230
    %1232 = vmatmul.f32.gmra.mxu0 %v910
    %v1233 = vpop.f32.mrf.mxu0
    %v1234 = vadd.f32 %v1169, %v1233
    %1235 = vmatmul.f32.gmra.mxu0 %v918
    %v1236 = vpop.f32.mrf.mxu0
    %v1237 = vadd.f32 %v1172, %v1236
    %1238 = vmatmul.f32.gmra.mxu0 %v926
    %v1239 = vpop.f32.mrf.mxu0
    %v1240 = vadd.f32 %v1175, %v1239
    %1241 = vmatmul.f32.gmra.mxu0 %v934
    %v1242 = vpop.f32.mrf.mxu0
    %v1243 = vadd.f32 %v1178, %v1242
    %1244 = vmatmul.f32.gmra.mxu0 %v942
    %v1245 = vpop.f32.mrf.mxu0
    %v1246 = vadd.f32 %v1181, %v1245
    %1247 = vmatmul.f32.gmra.mxu0 %v950
    %v1248 = vpop.f32.mrf.mxu0
    %v1249 = vadd.f32 %v1184, %v1248
    %1250 = vmatmul.f32.gmra.mxu0 %v958
    %v1251 = vpop.f32.mrf.mxu0
    %v1252 = vadd.f32 %v1187, %v1251
    %1253 = vmatmul.f32.gmra.mxu0 %v966
    %v1254 = vpop.f32.mrf.mxu0
    %v1255 = vadd.f32 %v1190, %v1254
    %1256 = vmatmul.f32.gmra.mxu0 %v974
    %v1257 = vpop.f32.mrf.mxu0
    %v1258 = vadd.f32 %v1193, %v1257
    %1259 = vmatmul.f32.gmra.mxu0 %v982
    %v1260 = vpop.f32.mrf.mxu0
    %v1261 = vadd.f32 %v1196, %v1260
    %1262 = vmatmul.f32.gmra.mxu0 %v990
    %v1263 = vpop.f32.mrf.mxu0
    %v1264 = vadd.f32 %v1199, %v1263
    %1265 = vmatmul.f32.gmra.mxu0 %v998
    %v1266 = vpop.f32.mrf.mxu0
    %v1267 = vadd.f32 %v1202, %v1266
    %1268 = vdwg.mxu0
    %1269 = vmatpush.msra.mxu0 %v1099
    %1270 = vmatpush.msra.mxu0 %v1097
    %1271 = vmatpush.msra.mxu0 %v1095
    %1272 = vmatpush.msra.mxu0 %v1093
    %1273 = vmatpush.msra.mxu0 %v1091
    %1274 = vmatpush.msra.mxu0 %v1089
    %1275 = vmatpush.msra.mxu0 %v1087
    %1276 = vmatpush.msra.mxu0 %v1085
    %1277 = vmatpush.msra.mxu0 %v1083
    %1278 = vmatpush.msra.mxu0 %v1081
    %1279 = vmatpush.msra.mxu0 %v1079
    %1280 = vmatpush.msra.mxu0 %v1077
    %1281 = vmatpush.msra.mxu0 %v1075
    %1282 = vmatpush.msra.mxu0 %v1073
    %1283 = vmatpush.msra.mxu0 %v1071
    %1284 = vmatpush.msra.mxu0 %v1069
    %1285 = vmatmul.f32.gmra.mxu0 %v879
    %v1286 = vpop.f32.mrf.mxu0
    %v1287 = vadd.f32 %v1222, %v1286
    %1288 = vmatmul.f32.gmra.mxu0 %v887
    %v1289 = vpop.f32.mrf.mxu0
    %v1290 = vadd.f32 %v1225, %v1289
    %1291 = vmatmul.f32.gmra.mxu0 %v895
    %v1292 = vpop.f32.mrf.mxu0
    %v1293 = vadd.f32 %v1228, %v1292
    %1294 = vmatmul.f32.gmra.mxu0 %v903
    %v1295 = vpop.f32.mrf.mxu0
    %v1296 = vadd.f32 %v1231, %v1295
    %1297 = vmatmul.f32.gmra.mxu0 %v911
    %v1298 = vpop.f32.mrf.mxu0
    %v1299 = vadd.f32 %v1234, %v1298
    %1300 = vmatmul.f32.gmra.mxu0 %v919
    %v1301 = vpop.f32.mrf.mxu0
    %v1302 = vadd.f32 %v1237, %v1301
    %1303 = vmatmul.f32.gmra.mxu0 %v927
    %v1304 = vpop.f32.mrf.mxu0
    %v1305 = vadd.f32 %v1240, %v1304
    %1306 = vmatmul.f32.gmra.mxu0 %v935
    %v1307 = vpop.f32.mrf.mxu0
    %v1308 = vadd.f32 %v1243, %v1307
    %1309 = vmatmul.f32.gmra.mxu0 %v943
    %v1310 = vpop.f32.mrf.mxu0
    %v1311 = vadd.f32 %v1246, %v1310
    %1312 = vmatmul.f32.gmra.mxu0 %v951
    %v1313 = vpop.f32.mrf.mxu0
    %v1314 = vadd.f32 %v1249, %v1313
    %1315 = vmatmul.f32.gmra.mxu0 %v959
    %v1316 = vpop.f32.mrf.mxu0
    %v1317 = vadd.f32 %v1252, %v1316
    %1318 = vmatmul.f32.gmra.mxu0 %v967
    %v1319 = vpop.f32.mrf.mxu0
    %v1320 = vadd.f32 %v1255, %v1319
    %1321 = vmatmul.f32.gmra.mxu0 %v975
    %v1322 = vpop.f32.mrf.mxu0
    %v1323 = vadd.f32 %v1258, %v1322
    %1324 = vmatmul.f32.gmra.mxu0 %v983
    %v1325 = vpop.f32.mrf.mxu0
    %v1326 = vadd.f32 %v1261, %v1325
    %1327 = vmatmul.f32.gmra.mxu0 %v991
    %v1328 = vpop.f32.mrf.mxu0
    %v1329 = vadd.f32 %v1264, %v1328
    %1330 = vmatmul.f32.gmra.mxu0 %v999
    %v1331 = vpop.f32.mrf.mxu0
    %v1332 = vadd.f32 %v1267, %v1331
    %1333 = vdwg.mxu0
    %1334 = vmatpush.msra.mxu0 %v1131
    %1335 = vmatpush.msra.mxu0 %v1129
    %1336 = vmatpush.msra.mxu0 %v1127
    %1337 = vmatpush.msra.mxu0 %v1125
    %1338 = vmatpush.msra.mxu0 %v1123
    %1339 = vmatpush.msra.mxu0 %v1121
    %1340 = vmatpush.msra.mxu0 %v1119
    %1341 = vmatpush.msra.mxu0 %v1117
    %1342 = vmatpush.msra.mxu0 %v1115
    %1343 = vmatpush.msra.mxu0 %v1113
    %1344 = vmatpush.msra.mxu0 %v1111
    %1345 = vmatpush.msra.mxu0 %v1109
    %1346 = vmatpush.msra.mxu0 %v1107
    %1347 = vmatpush.msra.mxu0 %v1105
    %1348 = vmatpush.msra.mxu0 %v1103
    %1349 = vmatpush.msra.mxu0 %v1101
    %1350 = vmatmul.f32.gmra.mxu0 %v880
    %v1351 = vpop.f32.mrf.mxu0
    %v1352 = vadd.f32 %v1287, %v1351
    %1353 = vmatmul.f32.gmra.mxu0 %v888
    %v1354 = vpop.f32.mrf.mxu0
    %v1355 = vadd.f32 %v1290, %v1354
    %1356 = vmatmul.f32.gmra.mxu0 %v896
    %v1357 = vpop.f32.mrf.mxu0
    %v1358 = vadd.f32 %v1293, %v1357
    %1359 = vmatmul.f32.gmra.mxu0 %v904
    %v1360 = vpop.f32.mrf.mxu0
    %v1361 = vadd.f32 %v1296, %v1360
    %1362 = vmatmul.f32.gmra.mxu0 %v912
    %v1363 = vpop.f32.mrf.mxu0
    %v1364 = vadd.f32 %v1299, %v1363
    %1365 = vmatmul.f32.gmra.mxu0 %v920
    %v1366 = vpop.f32.mrf.mxu0
    %v1367 = vadd.f32 %v1302, %v1366
    %1368 = vmatmul.f32.gmra.mxu0 %v928
    %v1369 = vpop.f32.mrf.mxu0
    %v1370 = vadd.f32 %v1305, %v1369
    %1371 = vmatmul.f32.gmra.mxu0 %v936
    %v1372 = vpop.f32.mrf.mxu0
    %v1373 = vadd.f32 %v1308, %v1372
    %1374 = vmatmul.f32.gmra.mxu0 %v944
    %v1375 = vpop.f32.mrf.mxu0
    %v1376 = vadd.f32 %v1311, %v1375
    %1377 = vmatmul.f32.gmra.mxu0 %v952
    %v1378 = vpop.f32.mrf.mxu0
    %v1379 = vadd.f32 %v1314, %v1378
    %1380 = vmatmul.f32.gmra.mxu0 %v960
    %v1381 = vpop.f32.mrf.mxu0
    %v1382 = vadd.f32 %v1317, %v1381
    %1383 = vmatmul.f32.gmra.mxu0 %v968
    %v1384 = vpop.f32.mrf.mxu0
    %v1385 = vadd.f32 %v1320, %v1384
    %1386 = vmatmul.f32.gmra.mxu0 %v976
    %v1387 = vpop.f32.mrf.mxu0
    %v1388 = vadd.f32 %v1323, %v1387
    %1389 = vmatmul.f32.gmra.mxu0 %v984
    %v1390 = vpop.f32.mrf.mxu0
    %v1391 = vadd.f32 %v1326, %v1390
    %1392 = vmatmul.f32.gmra.mxu0 %v992
    %v1393 = vpop.f32.mrf.mxu0
    %v1394 = vadd.f32 %v1329, %v1393
    %1395 = vmatmul.f32.gmra.mxu0 %v1000
    %v1396 = vpop.f32.mrf.mxu0
    %v1397 = vadd.f32 %v1332, %v1396
    %1398 = vdwg.mxu0
    %1399 = vmatpush.msra.mxu0 %v1036
    %1400 = vmatpush.msra.mxu0 %v1034
    %1401 = vmatpush.msra.mxu0 %v1032
    %1402 = vmatpush.msra.mxu0 %v1030
    %1403 = vmatpush.msra.mxu0 %v1028
    %1404 = vmatpush.msra.mxu0 %v1026
    %1405 = vmatpush.msra.mxu0 %v1024
    %1406 = vmatpush.msra.mxu0 %v1022
    %1407 = vmatpush.msra.mxu0 %v1020
    %1408 = vmatpush.msra.mxu0 %v1018
    %1409 = vmatpush.msra.mxu0 %v1016
    %1410 = vmatpush.msra.mxu0 %v1014
    %1411 = vmatpush.msra.mxu0 %v1012
    %1412 = vmatpush.msra.mxu0 %v1010
    %1413 = vmatpush.msra.mxu0 %v1008
    %1414 = vmatpush.msra.mxu0 %v1006
    %1415 = vmatmul.f32.gmra.mxu0 %v877
    %v1416 = vpop.f32.mrf.mxu0
    %v1417 = vadd.f32 %v1136, %v1416
    %1418 = vmatmul.f32.gmra.mxu0 %v885
    %v1419 = vpop.f32.mrf.mxu0
    %v1420 = vadd.f32 %v1136, %v1419
    %1421 = vmatmul.f32.gmra.mxu0 %v893
    %v1422 = vpop.f32.mrf.mxu0
    %v1423 = vadd.f32 %v1136, %v1422
    %1424 = vmatmul.f32.gmra.mxu0 %v901
    %v1425 = vpop.f32.mrf.mxu0
    %v1426 = vadd.f32 %v1136, %v1425
    %1427 = vmatmul.f32.gmra.mxu0 %v909
    %v1428 = vpop.f32.mrf.mxu0
    %v1429 = vadd.f32 %v1136, %v1428
    %1430 = vmatmul.f32.gmra.mxu0 %v917
    %v1431 = vpop.f32.mrf.mxu0
    %v1432 = vadd.f32 %v1136, %v1431
    %1433 = vmatmul.f32.gmra.mxu0 %v925
    %v1434 = vpop.f32.mrf.mxu0
    %v1435 = vadd.f32 %v1136, %v1434
    %1436 = vmatmul.f32.gmra.mxu0 %v933
    %v1437 = vpop.f32.mrf.mxu0
    %v1438 = vadd.f32 %v1136, %v1437
    %1439 = vmatmul.f32.gmra.mxu0 %v941
    %v1440 = vpop.f32.mrf.mxu0
    %v1441 = vadd.f32 %v1136, %v1440
    %1442 = vmatmul.f32.gmra.mxu0 %v949
    %v1443 = vpop.f32.mrf.mxu0
    %v1444 = vadd.f32 %v1136, %v1443
    %1445 = vmatmul.f32.gmra.mxu0 %v957
    %v1446 = vpop.f32.mrf.mxu0
    %v1447 = vadd.f32 %v1136, %v1446
    %1448 = vmatmul.f32.gmra.mxu0 %v965
    %v1449 = vpop.f32.mrf.mxu0
    %v1450 = vadd.f32 %v1136, %v1449
    %1451 = vmatmul.f32.gmra.mxu0 %v973
    %v1452 = vpop.f32.mrf.mxu0
    %v1453 = vadd.f32 %v1136, %v1452
    %1454 = vmatmul.f32.gmra.mxu0 %v981
    %v1455 = vpop.f32.mrf.mxu0
    %v1456 = vadd.f32 %v1136, %v1455
    %1457 = vmatmul.f32.gmra.mxu0 %v989
    %v1458 = vpop.f32.mrf.mxu0
    %v1459 = vadd.f32 %v1136, %v1458
    %1460 = vmatmul.f32.gmra.mxu0 %v997
    %v1461 = vpop.f32.mrf.mxu0
    %v1462 = vadd.f32 %v1136, %v1461
    %1463 = vdwg.mxu0
    %1464 = vmatpush.msra.mxu0 %v1068
    %1465 = vmatpush.msra.mxu0 %v1066
    %1466 = vmatpush.msra.mxu0 %v1064
    %1467 = vmatpush.msra.mxu0 %v1062
    %1468 = vmatpush.msra.mxu0 %v1060
    %1469 = vmatpush.msra.mxu0 %v1058
    %1470 = vmatpush.msra.mxu0 %v1056
    %1471 = vmatpush.msra.mxu0 %v1054
    %1472 = vmatpush.msra.mxu0 %v1052
    %1473 = vmatpush.msra.mxu0 %v1050
    %1474 = vmatpush.msra.mxu0 %v1048
    %1475 = vmatpush.msra.mxu0 %v1046
    %1476 = vmatpush.msra.mxu0 %v1044
    %1477 = vmatpush.msra.mxu0 %v1042
    %1478 = vmatpush.msra.mxu0 %v1040
    %1479 = vmatpush.msra.mxu0 %v1038
    %1480 = vmatmul.f32.gmra.mxu0 %v878
    %v1481 = vpop.f32.mrf.mxu0
    %v1482 = vadd.f32 %v1417, %v1481
    %1483 = vmatmul.f32.gmra.mxu0 %v886
    %v1484 = vpop.f32.mrf.mxu0
    %v1485 = vadd.f32 %v1420, %v1484
    %1486 = vmatmul.f32.gmra.mxu0 %v894
    %v1487 = vpop.f32.mrf.mxu0
    %v1488 = vadd.f32 %v1423, %v1487
    %1489 = vmatmul.f32.gmra.mxu0 %v902
    %v1490 = vpop.f32.mrf.mxu0
    %v1491 = vadd.f32 %v1426, %v1490
    %1492 = vmatmul.f32.gmra.mxu0 %v910
    %v1493 = vpop.f32.mrf.mxu0
    %v1494 = vadd.f32 %v1429, %v1493
    %1495 = vmatmul.f32.gmra.mxu0 %v918
    %v1496 = vpop.f32.mrf.mxu0
    %v1497 = vadd.f32 %v1432, %v1496
    %1498 = vmatmul.f32.gmra.mxu0 %v926
    %v1499 = vpop.f32.mrf.mxu0
    %v1500 = vadd.f32 %v1435, %v1499
    %1501 = vmatmul.f32.gmra.mxu0 %v934
    %v1502 = vpop.f32.mrf.mxu0
    %v1503 = vadd.f32 %v1438, %v1502
    %1504 = vmatmul.f32.gmra.mxu0 %v942
    %v1505 = vpop.f32.mrf.mxu0
    %v1506 = vadd.f32 %v1441, %v1505
    %1507 = vmatmul.f32.gmra.mxu0 %v950
    %v1508 = vpop.f32.mrf.mxu0
    %v1509 = vadd.f32 %v1444, %v1508
    %1510 = vmatmul.f32.gmra.mxu0 %v958
    %v1511 = vpop.f32.mrf.mxu0
    %v1512 = vadd.f32 %v1447, %v1511
    %1513 = vmatmul.f32.gmra.mxu0 %v966
    %v1514 = vpop.f32.mrf.mxu0
    %v1515 = vadd.f32 %v1450, %v1514
    %1516 = vmatmul.f32.gmra.mxu0 %v974
    %v1517 = vpop.f32.mrf.mxu0
    %v1518 = vadd.f32 %v1453, %v1517
    %1519 = vmatmul.f32.gmra.mxu0 %v982
    %v1520 = vpop.f32.mrf.mxu0
    %v1521 = vadd.f32 %v1456, %v1520
    %1522 = vmatmul.f32.gmra.mxu0 %v990
    %v1523 = vpop.f32.mrf.mxu0
    %v1524 = vadd.f32 %v1459, %v1523
    %1525 = vmatmul.f32.gmra.mxu0 %v998
    %v1526 = vpop.f32.mrf.mxu0
    %v1527 = vadd.f32 %v1462, %v1526
    %1528 = vdwg.mxu0
    %1529 = vmatpush.msra.mxu0 %v1100
    %1530 = vmatpush.msra.mxu0 %v1098
    %1531 = vmatpush.msra.mxu0 %v1096
    %1532 = vmatpush.msra.mxu0 %v1094
    %1533 = vmatpush.msra.mxu0 %v1092
    %1534 = vmatpush.msra.mxu0 %v1090
    %1535 = vmatpush.msra.mxu0 %v1088
    %1536 = vmatpush.msra.mxu0 %v1086
    %1537 = vmatpush.msra.mxu0 %v1084
    %1538 = vmatpush.msra.mxu0 %v1082
    %1539 = vmatpush.msra.mxu0 %v1080
    %1540 = vmatpush.msra.mxu0 %v1078
    %1541 = vmatpush.msra.mxu0 %v1076
    %1542 = vmatpush.msra.mxu0 %v1074
    %1543 = vmatpush.msra.mxu0 %v1072
    %1544 = vmatpush.msra.mxu0 %v1070
    %1545 = vmatmul.f32.gmra.mxu0 %v879
    %v1546 = vpop.f32.mrf.mxu0
    %v1547 = vadd.f32 %v1482, %v1546
    %1548 = vmatmul.f32.gmra.mxu0 %v887
    %v1549 = vpop.f32.mrf.mxu0
    %v1550 = vadd.f32 %v1485, %v1549
    %1551 = vmatmul.f32.gmra.mxu0 %v895
    %v1552 = vpop.f32.mrf.mxu0
    %v1553 = vadd.f32 %v1488, %v1552
    %1554 = vmatmul.f32.gmra.mxu0 %v903
    %v1555 = vpop.f32.mrf.mxu0
    %v1556 = vadd.f32 %v1491, %v1555
    %1557 = vmatmul.f32.gmra.mxu0 %v911
    %v1558 = vpop.f32.mrf.mxu0
    %v1559 = vadd.f32 %v1494, %v1558
    %1560 = vmatmul.f32.gmra.mxu0 %v919
    %v1561 = vpop.f32.mrf.mxu0
    %v1562 = vadd.f32 %v1497, %v1561
    %1563 = vmatmul.f32.gmra.mxu0 %v927
    %v1564 = vpop.f32.mrf.mxu0
    %v1565 = vadd.f32 %v1500, %v1564
    %1566 = vmatmul.f32.gmra.mxu0 %v935
    %v1567 = vpop.f32.mrf.mxu0
    %v1568 = vadd.f32 %v1503, %v1567
    %1569 = vmatmul.f32.gmra.mxu0 %v943
    %v1570 = vpop.f32.mrf.mxu0
    %v1571 = vadd.f32 %v1506, %v1570
    %1572 = vmatmul.f32.gmra.mxu0 %v951
    %v1573 = vpop.f32.mrf.mxu0
    %v1574 = vadd.f32 %v1509, %v1573
    %1575 = vmatmul.f32.gmra.mxu0 %v959
    %v1576 = vpop.f32.mrf.mxu0
    %v1577 = vadd.f32 %v1512, %v1576
    %1578 = vmatmul.f32.gmra.mxu0 %v967
    %v1579 = vpop.f32.mrf.mxu0
    %v1580 = vadd.f32 %v1515, %v1579
    %1581 = vmatmul.f32.gmra.mxu0 %v975
    %v1582 = vpop.f32.mrf.mxu0
    %v1583 = vadd.f32 %v1518, %v1582
    %1584 = vmatmul.f32.gmra.mxu0 %v983
    %v1585 = vpop.f32.mrf.mxu0
    %v1586 = vadd.f32 %v1521, %v1585
    %1587 = vmatmul.f32.gmra.mxu0 %v991
    %v1588 = vpop.f32.mrf.mxu0
    %v1589 = vadd.f32 %v1524, %v1588
    %1590 = vmatmul.f32.gmra.mxu0 %v999
    %v1591 = vpop.f32.mrf.mxu0
    %v1592 = vadd.f32 %v1527, %v1591
    %1593 = vdwg.mxu0
    %1594 = vmatpush.msra.mxu0 %v1132
    %1595 = vmatpush.msra.mxu0 %v1130
    %1596 = vmatpush.msra.mxu0 %v1128
    %1597 = vmatpush.msra.mxu0 %v1126
    %1598 = vmatpush.msra.mxu0 %v1124
    %1599 = vmatpush.msra.mxu0 %v1122
    %1600 = vmatpush.msra.mxu0 %v1120
    %1601 = vmatpush.msra.mxu0 %v1118
    %1602 = vmatpush.msra.mxu0 %v1116
    %1603 = vmatpush.msra.mxu0 %v1114
    %1604 = vmatpush.msra.mxu0 %v1112
    %1605 = vmatpush.msra.mxu0 %v1110
    %1606 = vmatpush.msra.mxu0 %v1108
    %1607 = vmatpush.msra.mxu0 %v1106
    %1608 = vmatpush.msra.mxu0 %v1104
    %1609 = vmatpush.msra.mxu0 %v1102
    %1610 = vmatmul.f32.gmra.mxu0 %v880
    %v1611 = vpop.f32.mrf.mxu0
    %v1612 = vadd.f32 %v1547, %v1611
    %1613 = vmatmul.f32.gmra.mxu0 %v888
    %v1614 = vpop.f32.mrf.mxu0
    %v1615 = vadd.f32 %v1550, %v1614
    %1616 = vmatmul.f32.gmra.mxu0 %v896
    %v1617 = vpop.f32.mrf.mxu0
    %v1618 = vadd.f32 %v1553, %v1617
    %1619 = vmatmul.f32.gmra.mxu0 %v904
    %v1620 = vpop.f32.mrf.mxu0
    %v1621 = vadd.f32 %v1556, %v1620
    %1622 = vmatmul.f32.gmra.mxu0 %v912
    %v1623 = vpop.f32.mrf.mxu0
    %v1624 = vadd.f32 %v1559, %v1623
    %1625 = vmatmul.f32.gmra.mxu0 %v920
    %v1626 = vpop.f32.mrf.mxu0
    %v1627 = vadd.f32 %v1562, %v1626
    %1628 = vmatmul.f32.gmra.mxu0 %v928
    %v1629 = vpop.f32.mrf.mxu0
    %v1630 = vadd.f32 %v1565, %v1629
    %1631 = vmatmul.f32.gmra.mxu0 %v936
    %v1632 = vpop.f32.mrf.mxu0
    %v1633 = vadd.f32 %v1568, %v1632
    %1634 = vmatmul.f32.gmra.mxu0 %v944
    %v1635 = vpop.f32.mrf.mxu0
    %v1636 = vadd.f32 %v1571, %v1635
    %1637 = vmatmul.f32.gmra.mxu0 %v952
    %v1638 = vpop.f32.mrf.mxu0
    %v1639 = vadd.f32 %v1574, %v1638
    %1640 = vmatmul.f32.gmra.mxu0 %v960
    %v1641 = vpop.f32.mrf.mxu0
    %v1642 = vadd.f32 %v1577, %v1641
    %1643 = vmatmul.f32.gmra.mxu0 %v968
    %v1644 = vpop.f32.mrf.mxu0
    %v1645 = vadd.f32 %v1580, %v1644
    %1646 = vmatmul.f32.gmra.mxu0 %v976
    %v1647 = vpop.f32.mrf.mxu0
    %v1648 = vadd.f32 %v1583, %v1647
    %1649 = vmatmul.f32.gmra.mxu0 %v984
    %v1650 = vpop.f32.mrf.mxu0
    %v1651 = vadd.f32 %v1586, %v1650
    %1652 = vmatmul.f32.gmra.mxu0 %v992
    %v1653 = vpop.f32.mrf.mxu0
    %v1654 = vadd.f32 %v1589, %v1653
    %1655 = vmatmul.f32.gmra.mxu0 %v1000
    %v1656 = vpop.f32.mrf.mxu0
    %v1657 = vadd.f32 %v1592, %v1656
    %1658 = vdwg.mxu0
    %v1659 = vmax.f32 %v1352, 0.0
    %v1660 = vmax.f32 %v1612, 0.0
    %v1661 = vmax.f32 %v1355, 0.0
    %v1662 = vmax.f32 %v1615, 0.0
    %v1663 = vmax.f32 %v1358, 0.0
    %v1664 = vmax.f32 %v1618, 0.0
    %v1665 = vmax.f32 %v1361, 0.0
    %v1666 = vmax.f32 %v1621, 0.0
    %v1667 = vmax.f32 %v1364, 0.0
    %v1668 = vmax.f32 %v1624, 0.0
    %v1669 = vmax.f32 %v1367, 0.0
    %v1670 = vmax.f32 %v1627, 0.0
    %v1671 = vmax.f32 %v1370, 0.0
    %v1672 = vmax.f32 %v1630, 0.0
    %v1673 = vmax.f32 %v1373, 0.0
    %v1674 = vmax.f32 %v1633, 0.0
    %v1675 = vmax.f32 %v1376, 0.0
    %v1676 = vmax.f32 %v1636, 0.0
    %v1677 = vmax.f32 %v1379, 0.0
    %v1678 = vmax.f32 %v1639, 0.0
    %v1679 = vmax.f32 %v1382, 0.0
    %v1680 = vmax.f32 %v1642, 0.0
    %v1681 = vmax.f32 %v1385, 0.0
    %v1682 = vmax.f32 %v1645, 0.0
    %v1683 = vmax.f32 %v1388, 0.0
    %v1684 = vmax.f32 %v1648, 0.0
    %v1685 = vmax.f32 %v1391, 0.0
    %v1686 = vmax.f32 %v1651, 0.0
    %v1687 = vmax.f32 %v1394, 0.0
    %v1688 = vmax.f32 %v1654, 0.0
    %v1689 = vmax.f32 %v1397, 0.0
    %v1690 = vmax.f32 %v1657, 0.0
    %v1691 = vld [vmem:[#allocation6] sm:$0xff]
    %v1692 = vld [vmem:[#allocation6 + $0x8] sm:$0xff]
    %v1693 = vld [vmem:[#allocation6 + $0x10] sm:$0xff]
    %v1694 = vld [vmem:[#allocation6 + $0x18] sm:$0xff]
    %v1695 = vld [vmem:[#allocation6 + $0x20] sm:$0xff]
    %v1696 = vld [vmem:[#allocation6 + $0x28] sm:$0xff]
    %v1697 = vld [vmem:[#allocation6 + $0x30] sm:$0xff]
    %v1698 = vld [vmem:[#allocation6 + $0x38] sm:$0xff]
    %v1699 = vld [vmem:[#allocation6 + $0x40] sm:$0xff]
    %v1700 = vld [vmem:[#allocation6 + $0x48] sm:$0xff]
    %v1701 = vld [vmem:[#allocation6 + $0x50] sm:$0xff]
    %v1702 = vld [vmem:[#allocation6 + $0x58] sm:$0xff]
    %v1703 = vld [vmem:[#allocation6 + $0x60] sm:$0xff]
    %v1704 = vld [vmem:[#allocation6 + $0x68] sm:$0xff]
    %v1705 = vld [vmem:[#allocation6 + $0x70] sm:$0xff]
    %v1706 = vld [vmem:[#allocation6 + $0x78] sm:$0xff]
    %v1707 = vld [vmem:[#allocation6 + $0x80] sm:$0xff]
    %v1708 = vld [vmem:[#allocation6 + $0x88] sm:$0xff]
    %v1709 = vld [vmem:[#allocation6 + $0x90] sm:$0xff]
    %v1710 = vld [vmem:[#allocation6 + $0x98] sm:$0xff]
    %v1711 = vld [vmem:[#allocation6 + $0xa0] sm:$0xff]
    %v1712 = vld [vmem:[#allocation6 + $0xa8] sm:$0xff]
    %v1713 = vld [vmem:[#allocation6 + $0xb0] sm:$0xff]
    %v1714 = vld [vmem:[#allocation6 + $0xb8] sm:$0xff]
    %v1715 = vld [vmem:[#allocation6 + $0xc0] sm:$0xff]
    %v1716 = vld [vmem:[#allocation6 + $0xc8] sm:$0xff]
    %v1717 = vld [vmem:[#allocation6 + $0xd0] sm:$0xff]
    %v1718 = vld [vmem:[#allocation6 + $0xd8] sm:$0xff]
    %v1719 = vld [vmem:[#allocation6 + $0xe0] sm:$0xff]
    %v1720 = vld [vmem:[#allocation6 + $0xe8] sm:$0xff]
    %v1721 = vld [vmem:[#allocation6 + $0xf0] sm:$0xff]
    %v1722 = vld [vmem:[#allocation6 + $0xf8] sm:$0xff]
    %v1723 = vld [vmem:[%s7] sm:$0x1]
    %v1725 = vperm.slane %v1723, 0
    %1727 = vmatpush.msra.mxu0 %v1706
    %1728 = vmatpush.msra.mxu0 %v1705
    %1729 = vmatpush.msra.mxu0 %v1704
    %1730 = vmatpush.msra.mxu0 %v1703
    %1731 = vmatpush.msra.mxu0 %v1702
    %1732 = vmatpush.msra.mxu0 %v1701
    %1733 = vmatpush.msra.mxu0 %v1700
    %1734 = vmatpush.msra.mxu0 %v1699
    %1735 = vmatpush.msra.mxu0 %v1698
    %1736 = vmatpush.msra.mxu0 %v1697
    %1737 = vmatpush.msra.mxu0 %v1696
    %1738 = vmatpush.msra.mxu0 %v1695
    %1739 = vmatpush.msra.mxu0 %v1694
    %1740 = vmatpush.msra.mxu0 %v1693
    %1741 = vmatpush.msra.mxu0 %v1692
    %1742 = vmatpush.msra.mxu0 %v1691
    %1743 = vmatmul.f32.gmra.mxu0 %v1659
    %v1744 = vpop.f32.mrf.mxu0
    %v1745 = vadd.f32 %v1725, %v1744
    %1746 = vmatmul.f32.gmra.mxu0 %v1661
    %v1747 = vpop.f32.mrf.mxu0
    %v1748 = vadd.f32 %v1725, %v1747
    %1749 = vmatmul.f32.gmra.mxu0 %v1663
    %v1750 = vpop.f32.mrf.mxu0
    %v1751 = vadd.f32 %v1725, %v1750
    %1752 = vmatmul.f32.gmra.mxu0 %v1665
    %v1753 = vpop.f32.mrf.mxu0
    %v1754 = vadd.f32 %v1725, %v1753
    %1755 = vmatmul.f32.gmra.mxu0 %v1667
    %v1756 = vpop.f32.mrf.mxu0
    %v1757 = vadd.f32 %v1725, %v1756
    %1758 = vmatmul.f32.gmra.mxu0 %v1669
    %v1759 = vpop.f32.mrf.mxu0
    %v1760 = vadd.f32 %v1725, %v1759
    %1761 = vmatmul.f32.gmra.mxu0 %v1671
    %v1762 = vpop.f32.mrf.mxu0
    %v1763 = vadd.f32 %v1725, %v1762
    %1764 = vmatmul.f32.gmra.mxu0 %v1673
    %v1765 = vpop.f32.mrf.mxu0
    %v1766 = vadd.f32 %v1725, %v1765
    %1767 = vmatmul.f32.gmra.mxu0 %v1675
    %v1768 = vpop.f32.mrf.mxu0
    %v1769 = vadd.f32 %v1725, %v1768
    %1770 = vmatmul.f32.gmra.mxu0 %v1677
    %v1771 = vpop.f32.mrf.mxu0
    %v1772 = vadd.f32 %v1725, %v1771
    %1773 = vmatmul.f32.gmra.mxu0 %v1679
    %v1774 = vpop.f32.mrf.mxu0
    %v1775 = vadd.f32 %v1725, %v1774
    %1776 = vmatmul.f32.gmra.mxu0 %v1681
    %v1777 = vpop.f32.mrf.mxu0
    %v1778 = vadd.f32 %v1725, %v1777
    %1779 = vmatmul.f32.gmra.mxu0 %v1683
    %v1780 = vpop.f32.mrf.mxu0
    %v1781 = vadd.f32 %v1725, %v1780
    %1782 = vmatmul.f32.gmra.mxu0 %v1685
    %v1783 = vpop.f32.mrf.mxu0
    %v1784 = vadd.f32 %v1725, %v1783
    %1785 = vmatmul.f32.gmra.mxu0 %v1687
    %v1786 = vpop.f32.mrf.mxu0
    %v1787 = vadd.f32 %v1725, %v1786
    %1788 = vmatmul.f32.gmra.mxu0 %v1689
    %v1789 = vpop.f32.mrf.mxu0
    %v1790 = vadd.f32 %v1725, %v1789
    %1791 = vdwg.mxu0
    %1792 = vmatpush.msra.mxu0 %v1722
    %1793 = vmatpush.msra.mxu0 %v1721
    %1794 = vmatpush.msra.mxu0 %v1720
    %1795 = vmatpush.msra.mxu0 %v1719
    %1796 = vmatpush.msra.mxu0 %v1718
    %1797 = vmatpush.msra.mxu0 %v1717
    %1798 = vmatpush.msra.mxu0 %v1716
    %1799 = vmatpush.msra.mxu0 %v1715
    %1800 = vmatpush.msra.mxu0 %v1714
    %1801 = vmatpush.msra.mxu0 %v1713
    %1802 = vmatpush.msra.mxu0 %v1712
    %1803 = vmatpush.msra.mxu0 %v1711
    %1804 = vmatpush.msra.mxu0 %v1710
    %1805 = vmatpush.msra.mxu0 %v1709
    %1806 = vmatpush.msra.mxu0 %v1708
    %1807 = vmatpush.msra.mxu0 %v1707
    %1808 = vmatmul.f32.gmra.mxu0 %v1660
    %v1809 = vpop.f32.mrf.mxu0
    %v1810 = vadd.f32 %v1745, %v1809
    %1811 = vmatmul.f32.gmra.mxu0 %v1662
    %v1812 = vpop.f32.mrf.mxu0
    %v1813 = vadd.f32 %v1748, %v1812
    %1814 = vmatmul.f32.gmra.mxu0 %v1664
    %v1815 = vpop.f32.mrf.mxu0
    %v1816 = vadd.f32 %v1751, %v1815
    %1817 = vmatmul.f32.gmra.mxu0 %v1666
    %v1818 = vpop.f32.mrf.mxu0
    %v1819 = vadd.f32 %v1754, %v1818
    %1820 = vmatmul.f32.gmra.mxu0 %v1668
    %v1821 = vpop.f32.mrf.mxu0
    %v1822 = vadd.f32 %v1757, %v1821
    %1823 = vmatmul.f32.gmra.mxu0 %v1670
    %v1824 = vpop.f32.mrf.mxu0
    %v1825 = vadd.f32 %v1760, %v1824
    %1826 = vmatmul.f32.gmra.mxu0 %v1672
    %v1827 = vpop.f32.mrf.mxu0
    %v1828 = vadd.f32 %v1763, %v1827
    %1829 = vmatmul.f32.gmra.mxu0 %v1674
    %v1830 = vpop.f32.mrf.mxu0
    %v1831 = vadd.f32 %v1766, %v1830
    %1832 = vmatmul.f32.gmra.mxu0 %v1676
    %v1833 = vpop.f32.mrf.mxu0
    %v1834 = vadd.f32 %v1769, %v1833
    %1835 = vmatmul.f32.gmra.mxu0 %v1678
    %v1836 = vpop.f32.mrf.mxu0
    %v1837 = vadd.f32 %v1772, %v1836
    %1838 = vmatmul.f32.gmra.mxu0 %v1680
    %v1839 = vpop.f32.mrf.mxu0
    %v1840 = vadd.f32 %v1775, %v1839
    %1841 = vmatmul.f32.gmra.mxu0 %v1682
    %v1842 = vpop.f32.mrf.mxu0
    %v1843 = vadd.f32 %v1778, %v1842
    %1844 = vmatmul.f32.gmra.mxu0 %v1684
    %v1845 = vpop.f32.mrf.mxu0
    %v1846 = vadd.f32 %v1781, %v1845
    %1847 = vmatmul.f32.gmra.mxu0 %v1686
    %v1848 = vpop.f32.mrf.mxu0
    %v1849 = vadd.f32 %v1784, %v1848
    %1850 = vmatmul.f32.gmra.mxu0 %v1688
    %v1851 = vpop.f32.mrf.mxu0
    %v1852 = vadd.f32 %v1787, %v1851
    %1853 = vmatmul.f32.gmra.mxu0 %v1690
    %v1854 = vpop.f32.mrf.mxu0
    %v1855 = vadd.f32 %v1790, %v1854
    %1856 = vdwg.mxu0
    %v1857 = vmax.f32 %v1810, 0.0
    %v1858 = vmax.f32 %v1813, 0.0
    %v1859 = vmax.f32 %v1816, 0.0
    %v1860 = vmax.f32 %v1819, 0.0
    %v1861 = vmax.f32 %v1822, 0.0
    %v1862 = vmax.f32 %v1825, 0.0
    %v1863 = vmax.f32 %v1828, 0.0
    %v1864 = vmax.f32 %v1831, 0.0
    %v1865 = vmax.f32 %v1834, 0.0
    %v1866 = vmax.f32 %v1837, 0.0
    %v1867 = vmax.f32 %v1840, 0.0
    %v1868 = vmax.f32 %v1843, 0.0
    %v1869 = vmax.f32 %v1846, 0.0
    %v1870 = vmax.f32 %v1849, 0.0
    %v1871 = vmax.f32 %v1852, 0.0
    %v1872 = vmax.f32 %v1855, 0.0
    %v1873 = vld [vmem:[%s8] sm:$0x1]
    %v1875 = vperm.slane %v1873, 0
    %v1877 = vmul.f32 %v1857, %v1875
    %v1878 = vmul.f32 %v1858, %v1875
    %v1879 = vmul.f32 %v1859, %v1875
    %v1880 = vmul.f32 %v1860, %v1875
    %v1881 = vmul.f32 %v1861, %v1875
    %v1882 = vmul.f32 %v1862, %v1875
    %v1883 = vmul.f32 %v1863, %v1875
    %v1884 = vmul.f32 %v1864, %v1875
    %v1885 = vmul.f32 %v1865, %v1875
    %v1886 = vmul.f32 %v1866, %v1875
    %v1887 = vmul.f32 %v1867, %v1875
    %v1888 = vmul.f32 %v1868, %v1875
    %v1889 = vmul.f32 %v1869, %v1875
    %v1890 = vmul.f32 %v1870, %v1875
    %v1891 = vmul.f32 %v1871, %v1875
    %v1892 = vmul.f32 %v1872, %v1875
    %1893 = vadd.xlane.f32.xlu0 %v1877
    %v1894 = vpop.xlane.xlu0 %1893
    %1895 = vadd.xlane.f32.xlu0 %v1878
    %v1896 = vpop.xlane.xlu0 %1895
    %1897 = vadd.xlane.f32.xlu0 %v1879
    %v1898 = vpop.xlane.xlu0 %1897
    %1899 = vadd.xlane.f32.xlu0 %v1880
    %v1900 = vpop.xlane.xlu0 %1899
    %1901 = vadd.xlane.f32.xlu0 %v1881
    %v1902 = vpop.xlane.xlu0 %1901
    %1903 = vadd.xlane.f32.xlu0 %v1882
    %v1904 = vpop.xlane.xlu0 %1903
    %1905 = vadd.xlane.f32.xlu0 %v1883
    %v1906 = vpop.xlane.xlu0 %1905
    %1907 = vadd.xlane.f32.xlu0 %v1884
    %v1908 = vpop.xlane.xlu0 %1907
    %1909 = vadd.xlane.f32.xlu0 %v1885
    %v1910 = vpop.xlane.xlu0 %1909
    %1911 = vadd.xlane.f32.xlu0 %v1886
    %v1912 = vpop.xlane.xlu0 %1911
    %1913 = vadd.xlane.f32.xlu0 %v1887
    %v1914 = vpop.xlane.xlu0 %1913
    %1915 = vadd.xlane.f32.xlu0 %v1888
    %v1916 = vpop.xlane.xlu0 %1915
    %1917 = vadd.xlane.f32.xlu0 %v1889
    %v1918 = vpop.xlane.xlu0 %1917
    %1919 = vadd.xlane.f32.xlu0 %v1890
    %v1920 = vpop.xlane.xlu0 %1919
    %1921 = vadd.xlane.f32.xlu0 %v1891
    %v1922 = vpop.xlane.xlu0 %1921
    %1923 = vadd.xlane.f32.xlu0 %v1892
    %v1924 = vpop.xlane.xlu0 %1923
    %v1925 = vld [vmem:[#allocation2] sm:$0x1]
    %v1927 = vperm.slane %v1925, 0
    %v1929 = vadd.f32 %v1894, %v1927
    %v1930 = vadd.f32 %v1896, %v1927
    %v1931 = vadd.f32 %v1898, %v1927
    %v1932 = vadd.f32 %v1900, %v1927
    %v1933 = vadd.f32 %v1902, %v1927
    %v1934 = vadd.f32 %v1904, %v1927
    %v1935 = vadd.f32 %v1906, %v1927
    %v1936 = vadd.f32 %v1908, %v1927
    %v1937 = vadd.f32 %v1910, %v1927
    %v1938 = vadd.f32 %v1912, %v1927
    %v1939 = vadd.f32 %v1914, %v1927
    %v1940 = vadd.f32 %v1916, %v1927
    %v1941 = vadd.f32 %v1918, %v1927
    %v1942 = vadd.f32 %v1920, %v1927
    %v1943 = vadd.f32 %v1922, %v1927
    %v1944 = vadd.f32 %v1924, %v1927
    %v1945 = vld [vmem:[#allocation8] sm:$0xff]
    %v1946 = vld [vmem:[#allocation8 + $0x8] sm:$0xff]
    %v1947 = vld [vmem:[#allocation8 + $0x10] sm:$0xff]
    %v1948 = vld [vmem:[#allocation8 + $0x18] sm:$0xff]
    %v1949 = vld [vmem:[#allocation8 + $0x20] sm:$0xff]
    %v1950 = vld [vmem:[#allocation8 + $0x28] sm:$0xff]
    %v1951 = vld [vmem:[#allocation8 + $0x30] sm:$0xff]
    %v1952 = vld [vmem:[#allocation8 + $0x38] sm:$0xff]
    %v1953 = vld [vmem:[#allocation8 + $0x40] sm:$0xff]
    %v1954 = vld [vmem:[#allocation8 + $0x48] sm:$0xff]
    %v1955 = vld [vmem:[#allocation8 + $0x50] sm:$0xff]
    %v1956 = vld [vmem:[#allocation8 + $0x58] sm:$0xff]
    %v1957 = vld [vmem:[#allocation8 + $0x60] sm:$0xff]
    %v1958 = vld [vmem:[#allocation8 + $0x68] sm:$0xff]
    %v1959 = vld [vmem:[#allocation8 + $0x70] sm:$0xff]
    %v1960 = vld [vmem:[#allocation8 + $0x78] sm:$0xff]
    %v1961 = vld [vmem:[#allocation8 + $0x80] sm:$0xff]
    %v1962 = vld [vmem:[#allocation8 + $0x88] sm:$0xff]
    %v1963 = vld [vmem:[#allocation8 + $0x90] sm:$0xff]
    %v1964 = vld [vmem:[#allocation8 + $0x98] sm:$0xff]
    %v1965 = vld [vmem:[#allocation8 + $0xa0] sm:$0xff]
    %v1966 = vld [vmem:[#allocation8 + $0xa8] sm:$0xff]
    %v1967 = vld [vmem:[#allocation8 + $0xb0] sm:$0xff]
    %v1968 = vld [vmem:[#allocation8 + $0xb8] sm:$0xff]
    %v1969 = vld [vmem:[#allocation8 + $0xc0] sm:$0xff]
    %v1970 = vld [vmem:[#allocation8 + $0xc8] sm:$0xff]
    %v1971 = vld [vmem:[#allocation8 + $0xd0] sm:$0xff]
    %v1972 = vld [vmem:[#allocation8 + $0xd8] sm:$0xff]
    %v1973 = vld [vmem:[#allocation8 + $0xe0] sm:$0xff]
    %v1974 = vld [vmem:[#allocation8 + $0xe8] sm:$0xff]
    %v1975 = vld [vmem:[#allocation8 + $0xf0] sm:$0xff]
    %v1976 = vld [vmem:[#allocation8 + $0xf8] sm:$0xff]
    %v1977 = vld [vmem:[#allocation8 + $0x100] sm:$0xff]
    %v1978 = vld [vmem:[#allocation8 + $0x108] sm:$0xff]
    %v1979 = vld [vmem:[#allocation8 + $0x110] sm:$0xff]
    %v1980 = vld [vmem:[#allocation8 + $0x118] sm:$0xff]
    %v1981 = vld [vmem:[#allocation8 + $0x120] sm:$0xff]
    %v1982 = vld [vmem:[#allocation8 + $0x128] sm:$0xff]
    %v1983 = vld [vmem:[#allocation8 + $0x130] sm:$0xff]
    %v1984 = vld [vmem:[#allocation8 + $0x138] sm:$0xff]
    %v1985 = vld [vmem:[#allocation8 + $0x140] sm:$0xff]
    %v1986 = vld [vmem:[#allocation8 + $0x148] sm:$0xff]
    %v1987 = vld [vmem:[#allocation8 + $0x150] sm:$0xff]
    %v1988 = vld [vmem:[#allocation8 + $0x158] sm:$0xff]
    %v1989 = vld [vmem:[#allocation8 + $0x160] sm:$0xff]
    %v1990 = vld [vmem:[#allocation8 + $0x168] sm:$0xff]
    %v1991 = vld [vmem:[#allocation8 + $0x170] sm:$0xff]
    %v1992 = vld [vmem:[#allocation8 + $0x178] sm:$0xff]
    %v1993 = vld [vmem:[#allocation8 + $0x180] sm:$0xff]
    %v1994 = vld [vmem:[#allocation8 + $0x188] sm:$0xff]
    %v1995 = vld [vmem:[#allocation8 + $0x190] sm:$0xff]
    %v1996 = vld [vmem:[#allocation8 + $0x198] sm:$0xff]
    %v1997 = vld [vmem:[#allocation8 + $0x1a0] sm:$0xff]
    %v1998 = vld [vmem:[#allocation8 + $0x1a8] sm:$0xff]
    %v1999 = vld [vmem:[#allocation8 + $0x1b0] sm:$0xff]
    %v2000 = vld [vmem:[#allocation8 + $0x1b8] sm:$0xff]
    %v2001 = vld [vmem:[#allocation8 + $0x1c0] sm:$0xff]
    %v2002 = vld [vmem:[#allocation8 + $0x1c8] sm:$0xff]
    %v2003 = vld [vmem:[#allocation8 + $0x1d0] sm:$0xff]
    %v2004 = vld [vmem:[#allocation8 + $0x1d8] sm:$0xff]
    %v2005 = vld [vmem:[#allocation8 + $0x1e0] sm:$0xff]
    %v2006 = vld [vmem:[#allocation8 + $0x1e8] sm:$0xff]
    %v2007 = vld [vmem:[#allocation8 + $0x1f0] sm:$0xff]
    %v2008 = vld [vmem:[#allocation8 + $0x1f8] sm:$0xff]
    %v2009 = vld [vmem:[#allocation8 + $0x200] sm:$0xff]
    %v2010 = vld [vmem:[#allocation8 + $0x208] sm:$0xff]
    %v2011 = vld [vmem:[#allocation8 + $0x210] sm:$0xff]
    %v2012 = vld [vmem:[#allocation8 + $0x218] sm:$0xff]
    %v2013 = vld [vmem:[#allocation8 + $0x220] sm:$0xff]
    %v2014 = vld [vmem:[#allocation8 + $0x228] sm:$0xff]
    %v2015 = vld [vmem:[#allocation8 + $0x230] sm:$0xff]
    %v2016 = vld [vmem:[#allocation8 + $0x238] sm:$0xff]
    %v2017 = vld [vmem:[#allocation8 + $0x240] sm:$0xff]
    %v2018 = vld [vmem:[#allocation8 + $0x248] sm:$0xff]
    %v2019 = vld [vmem:[#allocation8 + $0x250] sm:$0xff]
    %v2020 = vld [vmem:[#allocation8 + $0x258] sm:$0xff]
    %v2021 = vld [vmem:[#allocation8 + $0x260] sm:$0xff]
    %v2022 = vld [vmem:[#allocation8 + $0x268] sm:$0xff]
    %v2023 = vld [vmem:[#allocation8 + $0x270] sm:$0xff]
    %v2024 = vld [vmem:[#allocation8 + $0x278] sm:$0xff]
    %v2025 = vld [vmem:[#allocation8 + $0x280] sm:$0xff]
    %v2026 = vld [vmem:[#allocation8 + $0x288] sm:$0xff]
    %v2027 = vld [vmem:[#allocation8 + $0x290] sm:$0xff]
    %v2028 = vld [vmem:[#allocation8 + $0x298] sm:$0xff]
    %v2029 = vld [vmem:[#allocation8 + $0x2a0] sm:$0xff]
    %v2030 = vld [vmem:[#allocation8 + $0x2a8] sm:$0xff]
    %v2031 = vld [vmem:[#allocation8 + $0x2b0] sm:$0xff]
    %v2032 = vld [vmem:[#allocation8 + $0x2b8] sm:$0xff]
    %v2033 = vld [vmem:[#allocation8 + $0x2c0] sm:$0xff]
    %v2034 = vld [vmem:[#allocation8 + $0x2c8] sm:$0xff]
    %v2035 = vld [vmem:[#allocation8 + $0x2d0] sm:$0xff]
    %v2036 = vld [vmem:[#allocation8 + $0x2d8] sm:$0xff]
    %v2037 = vld [vmem:[#allocation8 + $0x2e0] sm:$0xff]
    %v2038 = vld [vmem:[#allocation8 + $0x2e8] sm:$0xff]
    %v2039 = vld [vmem:[#allocation8 + $0x2f0] sm:$0xff]
    %v2040 = vld [vmem:[#allocation8 + $0x2f8] sm:$0xff]
    %v2041 = vld [vmem:[#allocation8 + $0x300] sm:$0xff]
    %v2042 = vld [vmem:[#allocation8 + $0x308] sm:$0xff]
    %v2043 = vld [vmem:[#allocation8 + $0x310] sm:$0xff]
    %v2044 = vld [vmem:[#allocation8 + $0x318] sm:$0xff]
    %v2045 = vld [vmem:[#allocation8 + $0x320] sm:$0xff]
    %v2046 = vld [vmem:[#allocation8 + $0x328] sm:$0xff]
    %v2047 = vld [vmem:[#allocation8 + $0x330] sm:$0xff]
    %v2048 = vld [vmem:[#allocation8 + $0x338] sm:$0xff]
    %v2049 = vld [vmem:[#allocation8 + $0x340] sm:$0xff]
    %v2050 = vld [vmem:[#allocation8 + $0x348] sm:$0xff]
    %v2051 = vld [vmem:[#allocation8 + $0x350] sm:$0xff]
    %v2052 = vld [vmem:[#allocation8 + $0x358] sm:$0xff]
    %v2053 = vld [vmem:[#allocation8 + $0x360] sm:$0xff]
    %v2054 = vld [vmem:[#allocation8 + $0x368] sm:$0xff]
    %v2055 = vld [vmem:[#allocation8 + $0x370] sm:$0xff]
    %v2056 = vld [vmem:[#allocation8 + $0x378] sm:$0xff]
    %v2057 = vld [vmem:[#allocation8 + $0x380] sm:$0xff]
    %v2058 = vld [vmem:[#allocation8 + $0x388] sm:$0xff]
    %v2059 = vld [vmem:[#allocation8 + $0x390] sm:$0xff]
    %v2060 = vld [vmem:[#allocation8 + $0x398] sm:$0xff]
    %v2061 = vld [vmem:[#allocation8 + $0x3a0] sm:$0xff]
    %v2062 = vld [vmem:[#allocation8 + $0x3a8] sm:$0xff]
    %v2063 = vld [vmem:[#allocation8 + $0x3b0] sm:$0xff]
    %v2064 = vld [vmem:[#allocation8 + $0x3b8] sm:$0xff]
    %v2065 = vld [vmem:[#allocation8 + $0x3c0] sm:$0xff]
    %v2066 = vld [vmem:[#allocation8 + $0x3c8] sm:$0xff]
    %v2067 = vld [vmem:[#allocation8 + $0x3d0] sm:$0xff]
    %v2068 = vld [vmem:[#allocation8 + $0x3d8] sm:$0xff]
    %v2069 = vld [vmem:[#allocation8 + $0x3e0] sm:$0xff]
    %v2070 = vld [vmem:[#allocation8 + $0x3e8] sm:$0xff]
    %v2071 = vld [vmem:[#allocation8 + $0x3f0] sm:$0xff]
    %v2072 = vld [vmem:[#allocation8 + $0x3f8] sm:$0xff]
    %v2073 = vld [vmem:[%s11] sm:$0x3]
    %v2075 = vperm.slane %v2073, 0
    %v2076 = vperm.slane %v2073, 1
    %2079 = vmatpush.msra.mxu0 %v1975
    %2080 = vmatpush.msra.mxu0 %v1973
    %2081 = vmatpush.msra.mxu0 %v1971
    %2082 = vmatpush.msra.mxu0 %v1969
    %2083 = vmatpush.msra.mxu0 %v1967
    %2084 = vmatpush.msra.mxu0 %v1965
    %2085 = vmatpush.msra.mxu0 %v1963
    %2086 = vmatpush.msra.mxu0 %v1961
    %2087 = vmatpush.msra.mxu0 %v1959
    %2088 = vmatpush.msra.mxu0 %v1957
    %2089 = vmatpush.msra.mxu0 %v1955
    %2090 = vmatpush.msra.mxu0 %v1953
    %2091 = vmatpush.msra.mxu0 %v1951
    %2092 = vmatpush.msra.mxu0 %v1949
    %2093 = vmatpush.msra.mxu0 %v1947
    %2094 = vmatpush.msra.mxu0 %v1945
    %2095 = vmatmul.f32.gmra.mxu0 %v881
    %v2096 = vpop.f32.mrf.mxu0
    %v2097 = vadd.f32 %v2075, %v2096
    %2098 = vmatmul.f32.gmra.mxu0 %v889
    %v2099 = vpop.f32.mrf.mxu0
    %v2100 = vadd.f32 %v2075, %v2099
    %2101 = vmatmul.f32.gmra.mxu0 %v897
    %v2102 = vpop.f32.mrf.mxu0
    %v2103 = vadd.f32 %v2075, %v2102
    %2104 = vmatmul.f32.gmra.mxu0 %v905
    %v2105 = vpop.f32.mrf.mxu0
    %v2106 = vadd.f32 %v2075, %v2105
    %2107 = vmatmul.f32.gmra.mxu0 %v913
    %v2108 = vpop.f32.mrf.mxu0
    %v2109 = vadd.f32 %v2075, %v2108
    %2110 = vmatmul.f32.gmra.mxu0 %v921
    %v2111 = vpop.f32.mrf.mxu0
    %v2112 = vadd.f32 %v2075, %v2111
    %2113 = vmatmul.f32.gmra.mxu0 %v929
    %v2114 = vpop.f32.mrf.mxu0
    %v2115 = vadd.f32 %v2075, %v2114
    %2116 = vmatmul.f32.gmra.mxu0 %v937
    %v2117 = vpop.f32.mrf.mxu0
    %v2118 = vadd.f32 %v2075, %v2117
    %2119 = vmatmul.f32.gmra.mxu0 %v945
    %v2120 = vpop.f32.mrf.mxu0
    %v2121 = vadd.f32 %v2075, %v2120
    %2122 = vmatmul.f32.gmra.mxu0 %v953
    %v2123 = vpop.f32.mrf.mxu0
    %v2124 = vadd.f32 %v2075, %v2123
    %2125 = vmatmul.f32.gmra.mxu0 %v961
    %v2126 = vpop.f32.mrf.mxu0
    %v2127 = vadd.f32 %v2075, %v2126
    %2128 = vmatmul.f32.gmra.mxu0 %v969
    %v2129 = vpop.f32.mrf.mxu0
    %v2130 = vadd.f32 %v2075, %v2129
    %2131 = vmatmul.f32.gmra.mxu0 %v977
    %v2132 = vpop.f32.mrf.mxu0
    %v2133 = vadd.f32 %v2075, %v2132
    %2134 = vmatmul.f32.gmra.mxu0 %v985
    %v2135 = vpop.f32.mrf.mxu0
    %v2136 = vadd.f32 %v2075, %v2135
    %2137 = vmatmul.f32.gmra.mxu0 %v993
    %v2138 = vpop.f32.mrf.mxu0
    %v2139 = vadd.f32 %v2075, %v2138
    %2140 = vmatmul.f32.gmra.mxu0 %v1001
    %v2141 = vpop.f32.mrf.mxu0
    %v2142 = vadd.f32 %v2075, %v2141
    %2143 = vdwg.mxu0
    %2144 = vmatpush.msra.mxu0 %v2007
    %2145 = vmatpush.msra.mxu0 %v2005
    %2146 = vmatpush.msra.mxu0 %v2003
    %2147 = vmatpush.msra.mxu0 %v2001
    %2148 = vmatpush.msra.mxu0 %v1999
    %2149 = vmatpush.msra.mxu0 %v1997
    %2150 = vmatpush.msra.mxu0 %v1995
    %2151 = vmatpush.msra.mxu0 %v1993
    %2152 = vmatpush.msra.mxu0 %v1991
    %2153 = vmatpush.msra.mxu0 %v1989
    %2154 = vmatpush.msra.mxu0 %v1987
    %2155 = vmatpush.msra.mxu0 %v1985
    %2156 = vmatpush.msra.mxu0 %v1983
    %2157 = vmatpush.msra.mxu0 %v1981
    %2158 = vmatpush.msra.mxu0 %v1979
    %2159 = vmatpush.msra.mxu0 %v1977
    %2160 = vmatmul.f32.gmra.mxu0 %v882
    %v2161 = vpop.f32.mrf.mxu0
    %v2162 = vadd.f32 %v2097, %v2161
    %2163 = vmatmul.f32.gmra.mxu0 %v890
    %v2164 = vpop.f32.mrf.mxu0
    %v2165 = vadd.f32 %v2100, %v2164
    %2166 = vmatmul.f32.gmra.mxu0 %v898
    %v2167 = vpop.f32.mrf.mxu0
    %v2168 = vadd.f32 %v2103, %v2167
    %2169 = vmatmul.f32.gmra.mxu0 %v906
    %v2170 = vpop.f32.mrf.mxu0
    %v2171 = vadd.f32 %v2106, %v2170
    %2172 = vmatmul.f32.gmra.mxu0 %v914
    %v2173 = vpop.f32.mrf.mxu0
    %v2174 = vadd.f32 %v2109, %v2173
    %2175 = vmatmul.f32.gmra.mxu0 %v922
    %v2176 = vpop.f32.mrf.mxu0
    %v2177 = vadd.f32 %v2112, %v2176
    %2178 = vmatmul.f32.gmra.mxu0 %v930
    %v2179 = vpop.f32.mrf.mxu0
    %v2180 = vadd.f32 %v2115, %v2179
    %2181 = vmatmul.f32.gmra.mxu0 %v938
    %v2182 = vpop.f32.mrf.mxu0
    %v2183 = vadd.f32 %v2118, %v2182
    %2184 = vmatmul.f32.gmra.mxu0 %v946
    %v2185 = vpop.f32.mrf.mxu0
    %v2186 = vadd.f32 %v2121, %v2185
    %2187 = vmatmul.f32.gmra.mxu0 %v954
    %v2188 = vpop.f32.mrf.mxu0
    %v2189 = vadd.f32 %v2124, %v2188
    %2190 = vmatmul.f32.gmra.mxu0 %v962
    %v2191 = vpop.f32.mrf.mxu0
    %v2192 = vadd.f32 %v2127, %v2191
    %2193 = vmatmul.f32.gmra.mxu0 %v970
    %v2194 = vpop.f32.mrf.mxu0
    %v2195 = vadd.f32 %v2130, %v2194
    %2196 = vmatmul.f32.gmra.mxu0 %v978
    %v2197 = vpop.f32.mrf.mxu0
    %v2198 = vadd.f32 %v2133, %v2197
    %2199 = vmatmul.f32.gmra.mxu0 %v986
    %v2200 = vpop.f32.mrf.mxu0
    %v2201 = vadd.f32 %v2136, %v2200
    %2202 = vmatmul.f32.gmra.mxu0 %v994
    %v2203 = vpop.f32.mrf.mxu0
    %v2204 = vadd.f32 %v2139, %v2203
    %2205 = vmatmul.f32.gmra.mxu0 %v1002
    %v2206 = vpop.f32.mrf.mxu0
    %v2207 = vadd.f32 %v2142, %v2206
    %2208 = vdwg.mxu0
    %2209 = vmatpush.msra.mxu0 %v2039
    %2210 = vmatpush.msra.mxu0 %v2037
    %2211 = vmatpush.msra.mxu0 %v2035
    %2212 = vmatpush.msra.mxu0 %v2033
    %2213 = vmatpush.msra.mxu0 %v2031
    %2214 = vmatpush.msra.mxu0 %v2029
    %2215 = vmatpush.msra.mxu0 %v2027
    %2216 = vmatpush.msra.mxu0 %v2025
    %2217 = vmatpush.msra.mxu0 %v2023
    %2218 = vmatpush.msra.mxu0 %v2021
    %2219 = vmatpush.msra.mxu0 %v2019
    %2220 = vmatpush.msra.mxu0 %v2017
    %2221 = vmatpush.msra.mxu0 %v2015
    %2222 = vmatpush.msra.mxu0 %v2013
    %2223 = vmatpush.msra.mxu0 %v2011
    %2224 = vmatpush.msra.mxu0 %v2009
    %2225 = vmatmul.f32.gmra.mxu0 %v883
    %v2226 = vpop.f32.mrf.mxu0
    %v2227 = vadd.f32 %v2162, %v2226
    %2228 = vmatmul.f32.gmra.mxu0 %v891
    %v2229 = vpop.f32.mrf.mxu0
    %v2230 = vadd.f32 %v2165, %v2229
    %2231 = vmatmul.f32.gmra.mxu0 %v899
    %v2232 = vpop.f32.mrf.mxu0
    %v2233 = vadd.f32 %v2168, %v2232
    %2234 = vmatmul.f32.gmra.mxu0 %v907
    %v2235 = vpop.f32.mrf.mxu0
    %v2236 = vadd.f32 %v2171, %v2235
    %2237 = vmatmul.f32.gmra.mxu0 %v915
    %v2238 = vpop.f32.mrf.mxu0
    %v2239 = vadd.f32 %v2174, %v2238
    %2240 = vmatmul.f32.gmra.mxu0 %v923
    %v2241 = vpop.f32.mrf.mxu0
    %v2242 = vadd.f32 %v2177, %v2241
    %2243 = vmatmul.f32.gmra.mxu0 %v931
    %v2244 = vpop.f32.mrf.mxu0
    %v2245 = vadd.f32 %v2180, %v2244
    %2246 = vmatmul.f32.gmra.mxu0 %v939
    %v2247 = vpop.f32.mrf.mxu0
    %v2248 = vadd.f32 %v2183, %v2247
    %2249 = vmatmul.f32.gmra.mxu0 %v947
    %v2250 = vpop.f32.mrf.mxu0
    %v2251 = vadd.f32 %v2186, %v2250
    %2252 = vmatmul.f32.gmra.mxu0 %v955
    %v2253 = vpop.f32.mrf.mxu0
    %v2254 = vadd.f32 %v2189, %v2253
    %2255 = vmatmul.f32.gmra.mxu0 %v963
    %v2256 = vpop.f32.mrf.mxu0
    %v2257 = vadd.f32 %v2192, %v2256
    %2258 = vmatmul.f32.gmra.mxu0 %v971
    %v2259 = vpop.f32.mrf.mxu0
    %v2260 = vadd.f32 %v2195, %v2259
    %2261 = vmatmul.f32.gmra.mxu0 %v979
    %v2262 = vpop.f32.mrf.mxu0
    %v2263 = vadd.f32 %v2198, %v2262
    %2264 = vmatmul.f32.gmra.mxu0 %v987
    %v2265 = vpop.f32.mrf.mxu0
    %v2266 = vadd.f32 %v2201, %v2265
    %2267 = vmatmul.f32.gmra.mxu0 %v995
    %v2268 = vpop.f32.mrf.mxu0
    %v2269 = vadd.f32 %v2204, %v2268
    %2270 = vmatmul.f32.gmra.mxu0 %v1003
    %v2271 = vpop.f32.mrf.mxu0
    %v2272 = vadd.f32 %v2207, %v2271
    %2273 = vdwg.mxu0
    %2274 = vmatpush.msra.mxu0 %v2071
    %2275 = vmatpush.msra.mxu0 %v2069
    %2276 = vmatpush.msra.mxu0 %v2067
    %2277 = vmatpush.msra.mxu0 %v2065
    %2278 = vmatpush.msra.mxu0 %v2063
    %2279 = vmatpush.msra.mxu0 %v2061
    %2280 = vmatpush.msra.mxu0 %v2059
    %2281 = vmatpush.msra.mxu0 %v2057
    %2282 = vmatpush.msra.mxu0 %v2055
    %2283 = vmatpush.msra.mxu0 %v2053
    %2284 = vmatpush.msra.mxu0 %v2051
    %2285 = vmatpush.msra.mxu0 %v2049
    %2286 = vmatpush.msra.mxu0 %v2047
    %2287 = vmatpush.msra.mxu0 %v2045
    %2288 = vmatpush.msra.mxu0 %v2043
    %2289 = vmatpush.msra.mxu0 %v2041
    %2290 = vmatmul.f32.gmra.mxu0 %v884
    %v2291 = vpop.f32.mrf.mxu0
    %v2292 = vadd.f32 %v2227, %v2291
    %2293 = vmatmul.f32.gmra.mxu0 %v892
    %v2294 = vpop.f32.mrf.mxu0
    %v2295 = vadd.f32 %v2230, %v2294
    %2296 = vmatmul.f32.gmra.mxu0 %v900
    %v2297 = vpop.f32.mrf.mxu0
    %v2298 = vadd.f32 %v2233, %v2297
    %2299 = vmatmul.f32.gmra.mxu0 %v908
    %v2300 = vpop.f32.mrf.mxu0
    %v2301 = vadd.f32 %v2236, %v2300
    %2302 = vmatmul.f32.gmra.mxu0 %v916
    %v2303 = vpop.f32.mrf.mxu0
    %v2304 = vadd.f32 %v2239, %v2303
    %2305 = vmatmul.f32.gmra.mxu0 %v924
    %v2306 = vpop.f32.mrf.mxu0
    %v2307 = vadd.f32 %v2242, %v2306
    %2308 = vmatmul.f32.gmra.mxu0 %v932
    %v2309 = vpop.f32.mrf.mxu0
    %v2310 = vadd.f32 %v2245, %v2309
    %2311 = vmatmul.f32.gmra.mxu0 %v940
    %v2312 = vpop.f32.mrf.mxu0
    %v2313 = vadd.f32 %v2248, %v2312
    %2314 = vmatmul.f32.gmra.mxu0 %v948
    %v2315 = vpop.f32.mrf.mxu0
    %v2316 = vadd.f32 %v2251, %v2315
    %2317 = vmatmul.f32.gmra.mxu0 %v956
    %v2318 = vpop.f32.mrf.mxu0
    %v2319 = vadd.f32 %v2254, %v2318
    %2320 = vmatmul.f32.gmra.mxu0 %v964
    %v2321 = vpop.f32.mrf.mxu0
    %v2322 = vadd.f32 %v2257, %v2321
    %2323 = vmatmul.f32.gmra.mxu0 %v972
    %v2324 = vpop.f32.mrf.mxu0
    %v2325 = vadd.f32 %v2260, %v2324
    %2326 = vmatmul.f32.gmra.mxu0 %v980
    %v2327 = vpop.f32.mrf.mxu0
    %v2328 = vadd.f32 %v2263, %v2327
    %2329 = vmatmul.f32.gmra.mxu0 %v988
    %v2330 = vpop.f32.mrf.mxu0
    %v2331 = vadd.f32 %v2266, %v2330
    %2332 = vmatmul.f32.gmra.mxu0 %v996
    %v2333 = vpop.f32.mrf.mxu0
    %v2334 = vadd.f32 %v2269, %v2333
    %2335 = vmatmul.f32.gmra.mxu0 %v1004
    %v2336 = vpop.f32.mrf.mxu0
    %v2337 = vadd.f32 %v2272, %v2336
    %2338 = vdwg.mxu0
    %2339 = vmatpush.msra.mxu0 %v1976
    %2340 = vmatpush.msra.mxu0 %v1974
    %2341 = vmatpush.msra.mxu0 %v1972
    %2342 = vmatpush.msra.mxu0 %v1970
    %2343 = vmatpush.msra.mxu0 %v1968
    %2344 = vmatpush.msra.mxu0 %v1966
    %2345 = vmatpush.msra.mxu0 %v1964
    %2346 = vmatpush.msra.mxu0 %v1962
    %2347 = vmatpush.msra.mxu0 %v1960
    %2348 = vmatpush.msra.mxu0 %v1958
    %2349 = vmatpush.msra.mxu0 %v1956
    %2350 = vmatpush.msra.mxu0 %v1954
    %2351 = vmatpush.msra.mxu0 %v1952
    %2352 = vmatpush.msra.mxu0 %v1950
    %2353 = vmatpush.msra.mxu0 %v1948
    %2354 = vmatpush.msra.mxu0 %v1946
    %2355 = vmatmul.f32.gmra.mxu0 %v881
    %v2356 = vpop.f32.mrf.mxu0
    %v2357 = vadd.f32 %v2076, %v2356
    %2358 = vmatmul.f32.gmra.mxu0 %v889
    %v2359 = vpop.f32.mrf.mxu0
    %v2360 = vadd.f32 %v2076, %v2359
    %2361 = vmatmul.f32.gmra.mxu0 %v897
    %v2362 = vpop.f32.mrf.mxu0
    %v2363 = vadd.f32 %v2076, %v2362
    %2364 = vmatmul.f32.gmra.mxu0 %v905
    %v2365 = vpop.f32.mrf.mxu0
    %v2366 = vadd.f32 %v2076, %v2365
    %2367 = vmatmul.f32.gmra.mxu0 %v913
    %v2368 = vpop.f32.mrf.mxu0
    %v2369 = vadd.f32 %v2076, %v2368
    %2370 = vmatmul.f32.gmra.mxu0 %v921
    %v2371 = vpop.f32.mrf.mxu0
    %v2372 = vadd.f32 %v2076, %v2371
    %2373 = vmatmul.f32.gmra.mxu0 %v929
    %v2374 = vpop.f32.mrf.mxu0
    %v2375 = vadd.f32 %v2076, %v2374
    %2376 = vmatmul.f32.gmra.mxu0 %v937
    %v2377 = vpop.f32.mrf.mxu0
    %v2378 = vadd.f32 %v2076, %v2377
    %2379 = vmatmul.f32.gmra.mxu0 %v945
    %v2380 = vpop.f32.mrf.mxu0
    %v2381 = vadd.f32 %v2076, %v2380
    %2382 = vmatmul.f32.gmra.mxu0 %v953
    %v2383 = vpop.f32.mrf.mxu0
    %v2384 = vadd.f32 %v2076, %v2383
    %2385 = vmatmul.f32.gmra.mxu0 %v961
    %v2386 = vpop.f32.mrf.mxu0
    %v2387 = vadd.f32 %v2076, %v2386
    %2388 = vmatmul.f32.gmra.mxu0 %v969
    %v2389 = vpop.f32.mrf.mxu0
    %v2390 = vadd.f32 %v2076, %v2389
    %2391 = vmatmul.f32.gmra.mxu0 %v977
    %v2392 = vpop.f32.mrf.mxu0
    %v2393 = vadd.f32 %v2076, %v2392
    %2394 = vmatmul.f32.gmra.mxu0 %v985
    %v2395 = vpop.f32.mrf.mxu0
    %v2396 = vadd.f32 %v2076, %v2395
    %2397 = vmatmul.f32.gmra.mxu0 %v993
    %v2398 = vpop.f32.mrf.mxu0
    %v2399 = vadd.f32 %v2076, %v2398
    %2400 = vmatmul.f32.gmra.mxu0 %v1001
    %v2401 = vpop.f32.mrf.mxu0
    %v2402 = vadd.f32 %v2076, %v2401
    %2403 = vdwg.mxu0
    %2404 = vmatpush.msra.mxu0 %v2008
    %2405 = vmatpush.msra.mxu0 %v2006
    %2406 = vmatpush.msra.mxu0 %v2004
    %2407 = vmatpush.msra.mxu0 %v2002
    %2408 = vmatpush.msra.mxu0 %v2000
    %2409 = vmatpush.msra.mxu0 %v1998
    %2410 = vmatpush.msra.mxu0 %v1996
    %2411 = vmatpush.msra.mxu0 %v1994
    %2412 = vmatpush.msra.mxu0 %v1992
    %2413 = vmatpush.msra.mxu0 %v1990
    %2414 = vmatpush.msra.mxu0 %v1988
    %2415 = vmatpush.msra.mxu0 %v1986
    %2416 = vmatpush.msra.mxu0 %v1984
    %2417 = vmatpush.msra.mxu0 %v1982
    %2418 = vmatpush.msra.mxu0 %v1980
    %2419 = vmatpush.msra.mxu0 %v1978
    %2420 = vmatmul.f32.gmra.mxu0 %v882
    %v2421 = vpop.f32.mrf.mxu0
    %v2422 = vadd.f32 %v2357, %v2421
    %2423 = vmatmul.f32.gmra.mxu0 %v890
    %v2424 = vpop.f32.mrf.mxu0
    %v2425 = vadd.f32 %v2360, %v2424
    %2426 = vmatmul.f32.gmra.mxu0 %v898
    %v2427 = vpop.f32.mrf.mxu0
    %v2428 = vadd.f32 %v2363, %v2427
    %2429 = vmatmul.f32.gmra.mxu0 %v906
    %v2430 = vpop.f32.mrf.mxu0
    %v2431 = vadd.f32 %v2366, %v2430
    %2432 = vmatmul.f32.gmra.mxu0 %v914
    %v2433 = vpop.f32.mrf.mxu0
    %v2434 = vadd.f32 %v2369, %v2433
    %2435 = vmatmul.f32.gmra.mxu0 %v922
    %v2436 = vpop.f32.mrf.mxu0
    %v2437 = vadd.f32 %v2372, %v2436
    %2438 = vmatmul.f32.gmra.mxu0 %v930
    %v2439 = vpop.f32.mrf.mxu0
    %v2440 = vadd.f32 %v2375, %v2439
    %2441 = vmatmul.f32.gmra.mxu0 %v938
    %v2442 = vpop.f32.mrf.mxu0
    %v2443 = vadd.f32 %v2378, %v2442
    %2444 = vmatmul.f32.gmra.mxu0 %v946
    %v2445 = vpop.f32.mrf.mxu0
    %v2446 = vadd.f32 %v2381, %v2445
    %2447 = vmatmul.f32.gmra.mxu0 %v954
    %v2448 = vpop.f32.mrf.mxu0
    %v2449 = vadd.f32 %v2384, %v2448
    %2450 = vmatmul.f32.gmra.mxu0 %v962
    %v2451 = vpop.f32.mrf.mxu0
    %v2452 = vadd.f32 %v2387, %v2451
    %2453 = vmatmul.f32.gmra.mxu0 %v970
    %v2454 = vpop.f32.mrf.mxu0
    %v2455 = vadd.f32 %v2390, %v2454
    %2456 = vmatmul.f32.gmra.mxu0 %v978
    %v2457 = vpop.f32.mrf.mxu0
    %v2458 = vadd.f32 %v2393, %v2457
    %2459 = vmatmul.f32.gmra.mxu0 %v986
    %v2460 = vpop.f32.mrf.mxu0
    %v2461 = vadd.f32 %v2396, %v2460
    %2462 = vmatmul.f32.gmra.mxu0 %v994
    %v2463 = vpop.f32.mrf.mxu0
    %v2464 = vadd.f32 %v2399, %v2463
    %2465 = vmatmul.f32.gmra.mxu0 %v1002
    %v2466 = vpop.f32.mrf.mxu0
    %v2467 = vadd.f32 %v2402, %v2466
    %2468 = vdwg.mxu0
    %2469 = vmatpush.msra.mxu0 %v2040
    %2470 = vmatpush.msra.mxu0 %v2038
    %2471 = vmatpush.msra.mxu0 %v2036
    %2472 = vmatpush.msra.mxu0 %v2034
    %2473 = vmatpush.msra.mxu0 %v2032
    %2474 = vmatpush.msra.mxu0 %v2030
    %2475 = vmatpush.msra.mxu0 %v2028
    %2476 = vmatpush.msra.mxu0 %v2026
    %2477 = vmatpush.msra.mxu0 %v2024
    %2478 = vmatpush.msra.mxu0 %v2022
    %2479 = vmatpush.msra.mxu0 %v2020
    %2480 = vmatpush.msra.mxu0 %v2018
    %2481 = vmatpush.msra.mxu0 %v2016
    %2482 = vmatpush.msra.mxu0 %v2014
    %2483 = vmatpush.msra.mxu0 %v2012
    %2484 = vmatpush.msra.mxu0 %v2010
    %2485 = vmatmul.f32.gmra.mxu0 %v883
    %v2486 = vpop.f32.mrf.mxu0
    %v2487 = vadd.f32 %v2422, %v2486
    %2488 = vmatmul.f32.gmra.mxu0 %v891
    %v2489 = vpop.f32.mrf.mxu0
    %v2490 = vadd.f32 %v2425, %v2489
    %2491 = vmatmul.f32.gmra.mxu0 %v899
    %v2492 = vpop.f32.mrf.mxu0
    %v2493 = vadd.f32 %v2428, %v2492
    %2494 = vmatmul.f32.gmra.mxu0 %v907
    %v2495 = vpop.f32.mrf.mxu0
    %v2496 = vadd.f32 %v2431, %v2495
    %2497 = vmatmul.f32.gmra.mxu0 %v915
    %v2498 = vpop.f32.mrf.mxu0
    %v2499 = vadd.f32 %v2434, %v2498
    %2500 = vmatmul.f32.gmra.mxu0 %v923
    %v2501 = vpop.f32.mrf.mxu0
    %v2502 = vadd.f32 %v2437, %v2501
    %2503 = vmatmul.f32.gmra.mxu0 %v931
    %v2504 = vpop.f32.mrf.mxu0
    %v2505 = vadd.f32 %v2440, %v2504
    %2506 = vmatmul.f32.gmra.mxu0 %v939
    %v2507 = vpop.f32.mrf.mxu0
    %v2508 = vadd.f32 %v2443, %v2507
    %2509 = vmatmul.f32.gmra.mxu0 %v947
    %v2510 = vpop.f32.mrf.mxu0
    %v2511 = vadd.f32 %v2446, %v2510
    %2512 = vmatmul.f32.gmra.mxu0 %v955
    %v2513 = vpop.f32.mrf.mxu0
    %v2514 = vadd.f32 %v2449, %v2513
    %2515 = vmatmul.f32.gmra.mxu0 %v963
    %v2516 = vpop.f32.mrf.mxu0
    %v2517 = vadd.f32 %v2452, %v2516
    %2518 = vmatmul.f32.gmra.mxu0 %v971
    %v2519 = vpop.f32.mrf.mxu0
    %v2520 = vadd.f32 %v2455, %v2519
    %2521 = vmatmul.f32.gmra.mxu0 %v979
    %v2522 = vpop.f32.mrf.mxu0
    %v2523 = vadd.f32 %v2458, %v2522
    %2524 = vmatmul.f32.gmra.mxu0 %v987
    %v2525 = vpop.f32.mrf.mxu0
    %v2526 = vadd.f32 %v2461, %v2525
    %2527 = vmatmul.f32.gmra.mxu0 %v995
    %v2528 = vpop.f32.mrf.mxu0
    %v2529 = vadd.f32 %v2464, %v2528
    %2530 = vmatmul.f32.gmra.mxu0 %v1003
    %v2531 = vpop.f32.mrf.mxu0
    %v2532 = vadd.f32 %v2467, %v2531
    %2533 = vdwg.mxu0
    %2534 = vmatpush.msra.mxu0 %v2072
    %2535 = vmatpush.msra.mxu0 %v2070
    %2536 = vmatpush.msra.mxu0 %v2068
    %2537 = vmatpush.msra.mxu0 %v2066
    %2538 = vmatpush.msra.mxu0 %v2064
    %2539 = vmatpush.msra.mxu0 %v2062
    %2540 = vmatpush.msra.mxu0 %v2060
    %2541 = vmatpush.msra.mxu0 %v2058
    %2542 = vmatpush.msra.mxu0 %v2056
    %2543 = vmatpush.msra.mxu0 %v2054
    %2544 = vmatpush.msra.mxu0 %v2052
    %2545 = vmatpush.msra.mxu0 %v2050
    %2546 = vmatpush.msra.mxu0 %v2048
    %2547 = vmatpush.msra.mxu0 %v2046
    %2548 = vmatpush.msra.mxu0 %v2044
    %2549 = vmatpush.msra.mxu0 %v2042
    %2550 = vmatmul.f32.gmra.mxu0 %v884
    %v2551 = vpop.f32.mrf.mxu0
    %v2552 = vadd.f32 %v2487, %v2551
    %2553 = vmatmul.f32.gmra.mxu0 %v892
    %v2554 = vpop.f32.mrf.mxu0
    %v2555 = vadd.f32 %v2490, %v2554
    %2556 = vmatmul.f32.gmra.mxu0 %v900
    %v2557 = vpop.f32.mrf.mxu0
    %v2558 = vadd.f32 %v2493, %v2557
    %2559 = vmatmul.f32.gmra.mxu0 %v908
    %v2560 = vpop.f32.mrf.mxu0
    %v2561 = vadd.f32 %v2496, %v2560
    %2562 = vmatmul.f32.gmra.mxu0 %v916
    %v2563 = vpop.f32.mrf.mxu0
    %v2564 = vadd.f32 %v2499, %v2563
    %2565 = vmatmul.f32.gmra.mxu0 %v924
    %v2566 = vpop.f32.mrf.mxu0
    %v2567 = vadd.f32 %v2502, %v2566
    %2568 = vmatmul.f32.gmra.mxu0 %v932
    %v2569 = vpop.f32.mrf.mxu0
    %v2570 = vadd.f32 %v2505, %v2569
    %2571 = vmatmul.f32.gmra.mxu0 %v940
    %v2572 = vpop.f32.mrf.mxu0
    %v2573 = vadd.f32 %v2508, %v2572
    %2574 = vmatmul.f32.gmra.mxu0 %v948
    %v2575 = vpop.f32.mrf.mxu0
    %v2576 = vadd.f32 %v2511, %v2575
    %2577 = vmatmul.f32.gmra.mxu0 %v956
    %v2578 = vpop.f32.mrf.mxu0
    %v2579 = vadd.f32 %v2514, %v2578
    %2580 = vmatmul.f32.gmra.mxu0 %v964
    %v2581 = vpop.f32.mrf.mxu0
    %v2582 = vadd.f32 %v2517, %v2581
    %2583 = vmatmul.f32.gmra.mxu0 %v972
    %v2584 = vpop.f32.mrf.mxu0
    %v2585 = vadd.f32 %v2520, %v2584
    %2586 = vmatmul.f32.gmra.mxu0 %v980
    %v2587 = vpop.f32.mrf.mxu0
    %v2588 = vadd.f32 %v2523, %v2587
    %2589 = vmatmul.f32.gmra.mxu0 %v988
    %v2590 = vpop.f32.mrf.mxu0
    %v2591 = vadd.f32 %v2526, %v2590
    %2592 = vmatmul.f32.gmra.mxu0 %v996
    %v2593 = vpop.f32.mrf.mxu0
    %v2594 = vadd.f32 %v2529, %v2593
    %2595 = vmatmul.f32.gmra.mxu0 %v1004
    %v2596 = vpop.f32.mrf.mxu0
    %v2597 = vadd.f32 %v2532, %v2596
    %2598 = vdwg.mxu0
    %v2599 = vmax.f32 %v2292, 0.0
    %v2600 = vmax.f32 %v2552, 0.0
    %v2601 = vmax.f32 %v2295, 0.0
    %v2602 = vmax.f32 %v2555, 0.0
    %v2603 = vmax.f32 %v2298, 0.0
    %v2604 = vmax.f32 %v2558, 0.0
    %v2605 = vmax.f32 %v2301, 0.0
    %v2606 = vmax.f32 %v2561, 0.0
    %v2607 = vmax.f32 %v2304, 0.0
    %v2608 = vmax.f32 %v2564, 0.0
    %v2609 = vmax.f32 %v2307, 0.0
    %v2610 = vmax.f32 %v2567, 0.0
    %v2611 = vmax.f32 %v2310, 0.0
    %v2612 = vmax.f32 %v2570, 0.0
    %v2613 = vmax.f32 %v2313, 0.0
    %v2614 = vmax.f32 %v2573, 0.0
    %v2615 = vmax.f32 %v2316, 0.0
    %v2616 = vmax.f32 %v2576, 0.0
    %v2617 = vmax.f32 %v2319, 0.0
    %v2618 = vmax.f32 %v2579, 0.0
    %v2619 = vmax.f32 %v2322, 0.0
    %v2620 = vmax.f32 %v2582, 0.0
    %v2621 = vmax.f32 %v2325, 0.0
    %v2622 = vmax.f32 %v2585, 0.0
    %v2623 = vmax.f32 %v2328, 0.0
    %v2624 = vmax.f32 %v2588, 0.0
    %v2625 = vmax.f32 %v2331, 0.0
    %v2626 = vmax.f32 %v2591, 0.0
    %v2627 = vmax.f32 %v2334, 0.0
    %v2628 = vmax.f32 %v2594, 0.0
    %v2629 = vmax.f32 %v2337, 0.0
    %v2630 = vmax.f32 %v2597, 0.0
    %v2631 = vld [vmem:[#allocation9] sm:$0xff]
    %v2632 = vld [vmem:[#allocation9 + $0x8] sm:$0xff]
    %v2633 = vld [vmem:[#allocation9 + $0x10] sm:$0xff]
    %v2634 = vld [vmem:[#allocation9 + $0x18] sm:$0xff]
    %v2635 = vld [vmem:[#allocation9 + $0x20] sm:$0xff]
    %v2636 = vld [vmem:[#allocation9 + $0x28] sm:$0xff]
    %v2637 = vld [vmem:[#allocation9 + $0x30] sm:$0xff]
    %v2638 = vld [vmem:[#allocation9 + $0x38] sm:$0xff]
    %v2639 = vld [vmem:[#allocation9 + $0x40] sm:$0xff]
    %v2640 = vld [vmem:[#allocation9 + $0x48] sm:$0xff]
    %v2641 = vld [vmem:[#allocation9 + $0x50] sm:$0xff]
    %v2642 = vld [vmem:[#allocation9 + $0x58] sm:$0xff]
    %v2643 = vld [vmem:[#allocation9 + $0x60] sm:$0xff]
    %v2644 = vld [vmem:[#allocation9 + $0x68] sm:$0xff]
    %v2645 = vld [vmem:[#allocation9 + $0x70] sm:$0xff]
    %v2646 = vld [vmem:[#allocation9 + $0x78] sm:$0xff]
    %v2647 = vld [vmem:[#allocation9 + $0x80] sm:$0xff]
    %v2648 = vld [vmem:[#allocation9 + $0x88] sm:$0xff]
    %v2649 = vld [vmem:[#allocation9 + $0x90] sm:$0xff]
    %v2650 = vld [vmem:[#allocation9 + $0x98] sm:$0xff]
    %v2651 = vld [vmem:[#allocation9 + $0xa0] sm:$0xff]
    %v2652 = vld [vmem:[#allocation9 + $0xa8] sm:$0xff]
    %v2653 = vld [vmem:[#allocation9 + $0xb0] sm:$0xff]
    %v2654 = vld [vmem:[#allocation9 + $0xb8] sm:$0xff]
    %v2655 = vld [vmem:[#allocation9 + $0xc0] sm:$0xff]
    %v2656 = vld [vmem:[#allocation9 + $0xc8] sm:$0xff]
    %v2657 = vld [vmem:[#allocation9 + $0xd0] sm:$0xff]
    %v2658 = vld [vmem:[#allocation9 + $0xd8] sm:$0xff]
    %v2659 = vld [vmem:[#allocation9 + $0xe0] sm:$0xff]
    %v2660 = vld [vmem:[#allocation9 + $0xe8] sm:$0xff]
    %v2661 = vld [vmem:[#allocation9 + $0xf0] sm:$0xff]
    %v2662 = vld [vmem:[#allocation9 + $0xf8] sm:$0xff]
    %v2663 = vld [vmem:[%s13] sm:$0x1]
    %v2665 = vperm.slane %v2663, 0
    %2667 = vmatpush.msra.mxu0 %v2646
    %2668 = vmatpush.msra.mxu0 %v2645
    %2669 = vmatpush.msra.mxu0 %v2644
    %2670 = vmatpush.msra.mxu0 %v2643
    %2671 = vmatpush.msra.mxu0 %v2642
    %2672 = vmatpush.msra.mxu0 %v2641
    %2673 = vmatpush.msra.mxu0 %v2640
    %2674 = vmatpush.msra.mxu0 %v2639
    %2675 = vmatpush.msra.mxu0 %v2638
    %2676 = vmatpush.msra.mxu0 %v2637
    %2677 = vmatpush.msra.mxu0 %v2636
    %2678 = vmatpush.msra.mxu0 %v2635
    %2679 = vmatpush.msra.mxu0 %v2634
    %2680 = vmatpush.msra.mxu0 %v2633
    %2681 = vmatpush.msra.mxu0 %v2632
    %2682 = vmatpush.msra.mxu0 %v2631
    %2683 = vmatmul.f32.gmra.mxu0 %v2599
    %v2684 = vpop.f32.mrf.mxu0
    %v2685 = vadd.f32 %v2665, %v2684
    %2686 = vmatmul.f32.gmra.mxu0 %v2601
    %v2687 = vpop.f32.mrf.mxu0
    %v2688 = vadd.f32 %v2665, %v2687
    %2689 = vmatmul.f32.gmra.mxu0 %v2603
    %v2690 = vpop.f32.mrf.mxu0
    %v2691 = vadd.f32 %v2665, %v2690
    %2692 = vmatmul.f32.gmra.mxu0 %v2605
    %v2693 = vpop.f32.mrf.mxu0
    %v2694 = vadd.f32 %v2665, %v2693
    %2695 = vmatmul.f32.gmra.mxu0 %v2607
    %v2696 = vpop.f32.mrf.mxu0
    %v2697 = vadd.f32 %v2665, %v2696
    %2698 = vmatmul.f32.gmra.mxu0 %v2609
    %v2699 = vpop.f32.mrf.mxu0
    %v2700 = vadd.f32 %v2665, %v2699
    %2701 = vmatmul.f32.gmra.mxu0 %v2611
    %v2702 = vpop.f32.mrf.mxu0
    %v2703 = vadd.f32 %v2665, %v2702
    %2704 = vmatmul.f32.gmra.mxu0 %v2613
    %v2705 = vpop.f32.mrf.mxu0
    %v2706 = vadd.f32 %v2665, %v2705
    %2707 = vmatmul.f32.gmra.mxu0 %v2615
    %v2708 = vpop.f32.mrf.mxu0
    %v2709 = vadd.f32 %v2665, %v2708
    %2710 = vmatmul.f32.gmra.mxu0 %v2617
    %v2711 = vpop.f32.mrf.mxu0
    %v2712 = vadd.f32 %v2665, %v2711
    %2713 = vmatmul.f32.gmra.mxu0 %v2619
    %v2714 = vpop.f32.mrf.mxu0
    %v2715 = vadd.f32 %v2665, %v2714
    %2716 = vmatmul.f32.gmra.mxu0 %v2621
    %v2717 = vpop.f32.mrf.mxu0
    %v2718 = vadd.f32 %v2665, %v2717
    %2719 = vmatmul.f32.gmra.mxu0 %v2623
    %v2720 = vpop.f32.mrf.mxu0
    %v2721 = vadd.f32 %v2665, %v2720
    %2722 = vmatmul.f32.gmra.mxu0 %v2625
    %v2723 = vpop.f32.mrf.mxu0
    %v2724 = vadd.f32 %v2665, %v2723
    %2725 = vmatmul.f32.gmra.mxu0 %v2627
    %v2726 = vpop.f32.mrf.mxu0
    %v2727 = vadd.f32 %v2665, %v2726
    %2728 = vmatmul.f32.gmra.mxu0 %v2629
    %v2729 = vpop.f32.mrf.mxu0
    %v2730 = vadd.f32 %v2665, %v2729
    %2731 = vdwg.mxu0
    %2732 = vmatpush.msra.mxu0 %v2662
    %2733 = vmatpush.msra.mxu0 %v2661
    %2734 = vmatpush.msra.mxu0 %v2660
    %2735 = vmatpush.msra.mxu0 %v2659
    %2736 = vmatpush.msra.mxu0 %v2658
    %2737 = vmatpush.msra.mxu0 %v2657
    %2738 = vmatpush.msra.mxu0 %v2656
    %2739 = vmatpush.msra.mxu0 %v2655
    %2740 = vmatpush.msra.mxu0 %v2654
    %2741 = vmatpush.msra.mxu0 %v2653
    %2742 = vmatpush.msra.mxu0 %v2652
    %2743 = vmatpush.msra.mxu0 %v2651
    %2744 = vmatpush.msra.mxu0 %v2650
    %2745 = vmatpush.msra.mxu0 %v2649
    %2746 = vmatpush.msra.mxu0 %v2648
    %2747 = vmatpush.msra.mxu0 %v2647
    %2748 = vmatmul.f32.gmra.mxu0 %v2600
    %v2749 = vpop.f32.mrf.mxu0
    %v2750 = vadd.f32 %v2685, %v2749
    %2751 = vmatmul.f32.gmra.mxu0 %v2602
    %v2752 = vpop.f32.mrf.mxu0
    %v2753 = vadd.f32 %v2688, %v2752
    %2754 = vmatmul.f32.gmra.mxu0 %v2604
    %v2755 = vpop.f32.mrf.mxu0
    %v2756 = vadd.f32 %v2691, %v2755
    %2757 = vmatmul.f32.gmra.mxu0 %v2606
    %v2758 = vpop.f32.mrf.mxu0
    %v2759 = vadd.f32 %v2694, %v2758
    %2760 = vmatmul.f32.gmra.mxu0 %v2608
    %v2761 = vpop.f32.mrf.mxu0
    %v2762 = vadd.f32 %v2697, %v2761
    %2763 = vmatmul.f32.gmra.mxu0 %v2610
    %v2764 = vpop.f32.mrf.mxu0
    %v2765 = vadd.f32 %v2700, %v2764
    %2766 = vmatmul.f32.gmra.mxu0 %v2612
    %v2767 = vpop.f32.mrf.mxu0
    %v2768 = vadd.f32 %v2703, %v2767
    %2769 = vmatmul.f32.gmra.mxu0 %v2614
    %v2770 = vpop.f32.mrf.mxu0
    %v2771 = vadd.f32 %v2706, %v2770
    %2772 = vmatmul.f32.gmra.mxu0 %v2616
    %v2773 = vpop.f32.mrf.mxu0
    %v2774 = vadd.f32 %v2709, %v2773
    %2775 = vmatmul.f32.gmra.mxu0 %v2618
    %v2776 = vpop.f32.mrf.mxu0
    %v2777 = vadd.f32 %v2712, %v2776
    %2778 = vmatmul.f32.gmra.mxu0 %v2620
    %v2779 = vpop.f32.mrf.mxu0
    %v2780 = vadd.f32 %v2715, %v2779
    %2781 = vmatmul.f32.gmra.mxu0 %v2622
    %v2782 = vpop.f32.mrf.mxu0
    %v2783 = vadd.f32 %v2718, %v2782
    %2784 = vmatmul.f32.gmra.mxu0 %v2624
    %v2785 = vpop.f32.mrf.mxu0
    %v2786 = vadd.f32 %v2721, %v2785
    %2787 = vmatmul.f32.gmra.mxu0 %v2626
    %v2788 = vpop.f32.mrf.mxu0
    %v2789 = vadd.f32 %v2724, %v2788
    %2790 = vmatmul.f32.gmra.mxu0 %v2628
    %v2791 = vpop.f32.mrf.mxu0
    %v2792 = vadd.f32 %v2727, %v2791
    %2793 = vmatmul.f32.gmra.mxu0 %v2630
    %v2794 = vpop.f32.mrf.mxu0
    %v2795 = vadd.f32 %v2730, %v2794
    %2796 = vdwg.mxu0
    %v2797 = vmax.f32 %v2750, 0.0
    %v2798 = vmax.f32 %v2753, 0.0
    %v2799 = vmax.f32 %v2756, 0.0
    %v2800 = vmax.f32 %v2759, 0.0
    %v2801 = vmax.f32 %v2762, 0.0
    %v2802 = vmax.f32 %v2765, 0.0
    %v2803 = vmax.f32 %v2768, 0.0
    %v2804 = vmax.f32 %v2771, 0.0
    %v2805 = vmax.f32 %v2774, 0.0
    %v2806 = vmax.f32 %v2777, 0.0
    %v2807 = vmax.f32 %v2780, 0.0
    %v2808 = vmax.f32 %v2783, 0.0
    %v2809 = vmax.f32 %v2786, 0.0
    %v2810 = vmax.f32 %v2789, 0.0
    %v2811 = vmax.f32 %v2792, 0.0
    %v2812 = vmax.f32 %v2795, 0.0
    %v2813 = vld [vmem:[%s14] sm:$0x1]
    %v2815 = vperm.slane %v2813, 0
    %v2817 = vmul.f32 %v2797, %v2815
    %v2818 = vmul.f32 %v2798, %v2815
    %v2819 = vmul.f32 %v2799, %v2815
    %v2820 = vmul.f32 %v2800, %v2815
    %v2821 = vmul.f32 %v2801, %v2815
    %v2822 = vmul.f32 %v2802, %v2815
    %v2823 = vmul.f32 %v2803, %v2815
    %v2824 = vmul.f32 %v2804, %v2815
    %v2825 = vmul.f32 %v2805, %v2815
    %v2826 = vmul.f32 %v2806, %v2815
    %v2827 = vmul.f32 %v2807, %v2815
    %v2828 = vmul.f32 %v2808, %v2815
    %v2829 = vmul.f32 %v2809, %v2815
    %v2830 = vmul.f32 %v2810, %v2815
    %v2831 = vmul.f32 %v2811, %v2815
    %v2832 = vmul.f32 %v2812, %v2815
    %2833 = vadd.xlane.f32.xlu0 %v2817
    %v2834 = vpop.xlane.xlu0 %2833
    %2835 = vadd.xlane.f32.xlu0 %v2818
    %v2836 = vpop.xlane.xlu0 %2835
    %2837 = vadd.xlane.f32.xlu0 %v2819
    %v2838 = vpop.xlane.xlu0 %2837
    %2839 = vadd.xlane.f32.xlu0 %v2820
    %v2840 = vpop.xlane.xlu0 %2839
    %2841 = vadd.xlane.f32.xlu0 %v2821
    %v2842 = vpop.xlane.xlu0 %2841
    %2843 = vadd.xlane.f32.xlu0 %v2822
    %v2844 = vpop.xlane.xlu0 %2843
    %2845 = vadd.xlane.f32.xlu0 %v2823
    %v2846 = vpop.xlane.xlu0 %2845
    %2847 = vadd.xlane.f32.xlu0 %v2824
    %v2848 = vpop.xlane.xlu0 %2847
    %2849 = vadd.xlane.f32.xlu0 %v2825
    %v2850 = vpop.xlane.xlu0 %2849
    %2851 = vadd.xlane.f32.xlu0 %v2826
    %v2852 = vpop.xlane.xlu0 %2851
    %2853 = vadd.xlane.f32.xlu0 %v2827
    %v2854 = vpop.xlane.xlu0 %2853
    %2855 = vadd.xlane.f32.xlu0 %v2828
    %v2856 = vpop.xlane.xlu0 %2855
    %2857 = vadd.xlane.f32.xlu0 %v2829
    %v2858 = vpop.xlane.xlu0 %2857
    %2859 = vadd.xlane.f32.xlu0 %v2830
    %v2860 = vpop.xlane.xlu0 %2859
    %2861 = vadd.xlane.f32.xlu0 %v2831
    %v2862 = vpop.xlane.xlu0 %2861
    %2863 = vadd.xlane.f32.xlu0 %v2832
    %v2864 = vpop.xlane.xlu0 %2863
    %v2865 = vld [vmem:[#allocation3] sm:$0x1]
    %v2867 = vperm.slane %v2865, 0
    %v2869 = vadd.f32 %v2834, %v2867
    %v2870 = vadd.f32 %v2836, %v2867
    %v2871 = vadd.f32 %v2838, %v2867
    %v2872 = vadd.f32 %v2840, %v2867
    %v2873 = vadd.f32 %v2842, %v2867
    %v2874 = vadd.f32 %v2844, %v2867
    %v2875 = vadd.f32 %v2846, %v2867
    %v2876 = vadd.f32 %v2848, %v2867
    %v2877 = vadd.f32 %v2850, %v2867
    %v2878 = vadd.f32 %v2852, %v2867
    %v2879 = vadd.f32 %v2854, %v2867
    %v2880 = vadd.f32 %v2856, %v2867
    %v2881 = vadd.f32 %v2858, %v2867
    %v2882 = vadd.f32 %v2860, %v2867
    %v2883 = vadd.f32 %v2862, %v2867
    %v2884 = vadd.f32 %v2864, %v2867
    %2901 = vrot.lane.b32.xlu0 %v2869, 1
    %v2902 = vpop.permute.xlu0 %2901
    %2903 = vrot.lane.b32.xlu0 %v2870, 1
    %v2904 = vpop.permute.xlu0 %2903
    %2905 = vrot.lane.b32.xlu0 %v2871, 1
    %v2906 = vpop.permute.xlu0 %2905
    %2907 = vrot.lane.b32.xlu0 %v2872, 1
    %v2908 = vpop.permute.xlu0 %2907
    %2909 = vrot.lane.b32.xlu0 %v2873, 1
    %v2910 = vpop.permute.xlu0 %2909
    %2911 = vrot.lane.b32.xlu0 %v2874, 1
    %v2912 = vpop.permute.xlu0 %2911
    %2913 = vrot.lane.b32.xlu0 %v2875, 1
    %v2914 = vpop.permute.xlu0 %2913
    %2915 = vrot.lane.b32.xlu0 %v2876, 1
    %v2916 = vpop.permute.xlu0 %2915
    %2917 = vrot.lane.b32.xlu0 %v2877, 1
    %v2918 = vpop.permute.xlu0 %2917
    %2919 = vrot.lane.b32.xlu0 %v2878, 1
    %v2920 = vpop.permute.xlu0 %2919
    %2921 = vrot.lane.b32.xlu0 %v2879, 1
    %v2922 = vpop.permute.xlu0 %2921
    %2923 = vrot.lane.b32.xlu0 %v2880, 1
    %v2924 = vpop.permute.xlu0 %2923
    %2925 = vrot.lane.b32.xlu0 %v2881, 1
    %v2926 = vpop.permute.xlu0 %2925
    %2927 = vrot.lane.b32.xlu0 %v2882, 1
    %v2928 = vpop.permute.xlu0 %2927
    %2929 = vrot.lane.b32.xlu0 %v2883, 1
    %v2930 = vpop.permute.xlu0 %2929
    %2931 = vrot.lane.b32.xlu0 %v2884, 1
    %v2932 = vpop.permute.xlu0 %2931
    %vm2949 = vcmask 7168
    %v2950 = vsel %vm2949, %v1929, %v2902
    %v2951 = vsel %vm2949, %v1930, %v2904
    %v2952 = vsel %vm2949, %v1931, %v2906
    %v2953 = vsel %vm2949, %v1932, %v2908
    %v2954 = vsel %vm2949, %v1933, %v2910
    %v2955 = vsel %vm2949, %v1934, %v2912
    %v2956 = vsel %vm2949, %v1935, %v2914
    %v2957 = vsel %vm2949, %v1936, %v2916
    %v2958 = vsel %vm2949, %v1937, %v2918
    %v2959 = vsel %vm2949, %v1938, %v2920
    %v2960 = vsel %vm2949, %v1939, %v2922
    %v2961 = vsel %vm2949, %v1940, %v2924
    %v2962 = vsel %vm2949, %v1941, %v2926
    %v2963 = vsel %vm2949, %v1942, %v2928
    %v2964 = vsel %vm2949, %v1943, %v2930
    %v2965 = vsel %vm2949, %v1944, %v2932
    %vm2966 = vcmask 15360
    %2967 = vst.msk [vmem:[%s16] sm:$0xff] %vm2966, %v2950
    %2968 = vst.msk [vmem:[%s16 + $0x8] sm:$0xff] %vm2966, %v2951
    %2969 = vst.msk [vmem:[%s16 + $0x10] sm:$0xff] %vm2966, %v2952
    %2970 = vst.msk [vmem:[%s16 + $0x18] sm:$0xff] %vm2966, %v2953
    %2971 = vst.msk [vmem:[%s16 + $0x20] sm:$0xff] %vm2966, %v2954
    %2972 = vst.msk [vmem:[%s16 + $0x28] sm:$0xff] %vm2966, %v2955
    %2973 = vst.msk [vmem:[%s16 + $0x30] sm:$0xff] %vm2966, %v2956
    %2974 = vst.msk [vmem:[%s16 + $0x38] sm:$0xff] %vm2966, %v2957
    %2975 = vst.msk [vmem:[%s16 + $0x40] sm:$0xff] %vm2966, %v2958
    %2976 = vst.msk [vmem:[%s16 + $0x48] sm:$0xff] %vm2966, %v2959
    %2977 = vst.msk [vmem:[%s16 + $0x50] sm:$0xff] %vm2966, %v2960
    %2978 = vst.msk [vmem:[%s16 + $0x58] sm:$0xff] %vm2966, %v2961
    %2979 = vst.msk [vmem:[%s16 + $0x60] sm:$0xff] %vm2966, %v2962
    %2980 = vst.msk [vmem:[%s16 + $0x68] sm:$0xff] %vm2966, %v2963
    %2981 = vst.msk [vmem:[%s16 + $0x70] sm:$0xff] %vm2966, %v2964
    %2982 = vst.msk [vmem:[%s16 + $0x78] sm:$0xff] %vm2966, %v2965
    // Predicated region
    $region82: #{critic_td3_forward.1} parent=1 // pred_check
      _
    $region83: #{critic_td3_forward.1} parent=1 // pred_check_branch
      %2984 = sbr.rel (0) target = $region85
    $region84: #{critic_td3_forward.1} parent=1 // pred_region
      _
    $region85: #{critic_td3_forward.1} parent=1 // pred_fallthru
      _
    // Predicated region
    $region86: #{critic_td3_forward.1} parent=1 // pred_check
      _
    $region87: #{critic_td3_forward.1} parent=1 // pred_check_branch
      %2986 = sbr.rel (0) target = $region89
    $region88: #{critic_td3_forward.1} parent=1 // pred_region
      _
    $region89: #{critic_td3_forward.1} parent=1 // pred_fallthru
      _
    %2987 = vsyncpa [#allocation5], 1
    %2988 = vsyncpa [#allocation7], 1
    %2989 = vsyncpa [#allocation10], 1

</llo_original>
